<compile_context>
chip_gen: v7x
topology: tpu7x:2x2x1
jax: 0.10.0
libtpu: 0.0.40
codegen_flags: <defaults>
</compile_context>

<pallas_src>
import functools

import jax
import jax.numpy as jnp
import numpy as np
from jax.experimental import pallas as pl
from jax.experimental.pallas import tpu as pltpu


_VMEM_LIMIT_BYTES = 48 * 1024 * 1024  # < 64 MiB (v7x per-TC physical), > v5e/v6e scoped default.


def _cparams(*dims):
    return pltpu.CompilerParams(dimension_semantics=dims,
                                vmem_limit_bytes=_VMEM_LIMIT_BYTES)


def _channel_tile(c, target):
    """Largest channel tile <= target keeping blocks (8,128)-legal: full C or a 128-multiple
    divisor of C."""
    if c <= target:
        return c
    for d in range(target - target % 128, 0, -128):
        if c % d == 0:
            return d
    return c


def _spatial_tile(hw, target):
    if hw <= target:
        return hw
    for d in range(target - target % 8, 0, -8):
        if hw % d == 0:
            return d
    return hw


# ----------------------------------------------------------------------------
# Kernels
# ----------------------------------------------------------------------------
def gn_stats_kernel(x_ref, g_ref, b_ref, scale_ref, shift_ref, sum_ref, ssq_ref,
                    *, num_groups, eps, hw):
    """Streaming GroupNorm statistics -> per-(batch, channel) scale/shift (f32).

    grid = (B, HW_tiles); x block (1, ts, C).  scale = gamma * inv_std(group(c)),
    shift = beta - mean(group(c)) * scale, so the conv kernel can apply GN as x*scale+shift.
    """
    s = pl.program_id(1)

    @pl.when(s == 0)
    def _():
        sum_ref[...] = jnp.zeros_like(sum_ref)
        ssq_ref[...] = jnp.zeros_like(ssq_ref)

    x = x_ref[0]                                          # (ts, C) f32
    sum_ref[...] += jnp.sum(x, axis=0, keepdims=True)     # (1, C)
    ssq_ref[...] += jnp.sum(x * x, axis=0, keepdims=True)

    @pl.when(s == pl.num_programs(1) - 1)
    def _():
        C = x_ref.shape[-1]
        G = num_groups
        Cg = C // G
        # Group membership matrices via 2-D iota (no in-kernel transpose).
        c2g = (jax.lax.broadcasted_iota(jnp.int32, (C, G), 0) // Cg ==
               jax.lax.broadcasted_iota(jnp.int32, (C, G), 1)).astype(jnp.float32)
        g2c = (jax.lax.broadcasted_iota(jnp.int32, (G, C), 1) // Cg ==
               jax.lax.broadcasted_iota(jnp.int32, (G, C), 0)).astype(jnp.float32)
        n = float(hw * Cg)
        g_sum = jnp.dot(sum_ref[...], c2g, preferred_element_type=jnp.float32)  # (1, G)
        g_ssq = jnp.dot(ssq_ref[...], c2g, preferred_element_type=jnp.float32)
        mean_g = g_sum / n
        # Single-pass E[x^2]-mean^2; fine in f32 at these magnitudes (review note).
        var_g = g_ssq / n - mean_g * mean_g
        inv_g = jax.lax.rsqrt(var_g + eps)
        mean_c = jnp.dot(mean_g, g2c, preferred_element_type=jnp.float32)       # (1, C)
        inv_c = jnp.dot(inv_g, g2c, preferred_element_type=jnp.float32)
        scale = g_ref[...] * inv_c
        shift = b_ref[...] - mean_c * scale
        scale_ref[0] = scale
        shift_ref[0] = shift


def _conv3x3_partial(x_ref, sc_ref, sh_ref, w_ref, *, H, W, apply_gn):
    """One K-tile partial of a 3x3 SAME conv on the (optionally GN+SiLU'd) activation.

    x_ref: (1, H, W, tk) f32, w_ref: (3, 3, tk, tn) bf16.  Returns (H*W, tn) f32.
    The 1-px halo is built in-register (bf16 zeros) -> no HBM-side jnp.pad.
    The 3 dw taps are folded into the K dimension (3 matmuls, K = 3*tk).
    """
    x = x_ref[0]                                          # (H, W, tk) f32
    if apply_gn:
        y = x * sc_ref[0] + sh_ref[0]                     # GroupNorm as scale/shift
        act = y * jax.nn.sigmoid(y)                       # SiLU
    else:
        act = x
    act = act.astype(jnp.bfloat16)                        # MXU inputs in bf16
    tk = act.shape[-1]
    tn = w_ref.shape[-1]

    zrow = jnp.zeros((1, W, tk), jnp.bfloat16)
    a = jnp.concatenate([zrow, act, zrow], axis=0)        # (H+2, W, tk)
    zcol = jnp.zeros((H + 2, 1, tk), jnp.bfloat16)
    ap = jnp.concatenate([zcol, a, zcol], axis=1)         # (H+2, W+2, tk)
    # Three dw-shifted views built once, concatenated along channels (K = 3*tk).
    xcat = jnp.concatenate([ap[:, 0:W, :], ap[:, 1:W + 1, :], ap[:, 2:W + 2, :]],
                           axis=-1)                       # (H+2, W, 3*tk)

    part = jnp.zeros((H * W, tn), jnp.float32)
    for dh in range(3):                                   # dh shift = cheap leading-dim slice
        xs = xcat[dh:dh + H].reshape(H * W, 3 * tk)
        ws = w_ref[dh].reshape(3 * tk, tn)                # [dw*tk + cin, cout]
        part = part + jnp.dot(xs, ws, preferred_element_type=jnp.float32)
    return part


def conv3x3_gn_time_kernel(x_ref, sc_ref, sh_ref, w_ref, b_ref, t_ref, o_ref, acc_ref,
                           *, H, W):
    k = pl.program_id(2)

    @pl.when(k == 0)
    def _():
        acc_ref[...] = jnp.zeros_like(acc_ref)

    acc_ref[...] += _conv3x3_partial(x_ref, sc_ref, sh_ref, w_ref, H=H, W=W, apply_gn=True)

    @pl.when(k == pl.num_programs(2) - 1)
    def _():
        o_ref[0] = (acc_ref[...] + b_ref[...] + t_ref[0]).astype(o_ref.dtype)


def conv3x3_gn_res_kernel(x_ref, sc_ref, sh_ref, w_ref, b_ref, r_ref, o_ref, acc_ref,
                          *, H, W):
    k = pl.program_id(2)

    @pl.when(k == 0)
    def _():
        acc_ref[...] = jnp.zeros_like(acc_ref)

    acc_ref[...] += _conv3x3_partial(x_ref, sc_ref, sh_ref, w_ref, H=H, W=W, apply_gn=True)

    @pl.when(k == pl.num_programs(2) - 1)
    def _():
        o_ref[0] = (acc_ref[...] + b_ref[...] + r_ref[0]).astype(o_ref.dtype)


def conv3x3_plain_kernel(x_ref, w_ref, b_ref, o_ref, acc_ref, *, H, W):
    k = pl.program_id(2)

    @pl.when(k == 0)
    def _():
        acc_ref[...] = jnp.zeros_like(acc_ref)

    acc_ref[...] += _conv3x3_partial(x_ref, None, None, w_ref, H=H, W=W, apply_gn=False)

    @pl.when(k == pl.num_programs(2) - 1)
    def _():
        o_ref[0] = (acc_ref[...] + b_ref[...]).astype(o_ref.dtype)


def conv1x1_kernel(x_ref, w_ref, b_ref, o_ref, acc_ref):
    k = pl.program_id(2)

    @pl.when(k == 0)
    def _():
        acc_ref[...] = jnp.zeros_like(acc_ref)

    acc_ref[...] += jnp.dot(x_ref[0].astype(jnp.bfloat16), w_ref[...],
                            preferred_element_type=jnp.float32)

    @pl.when(k == pl.num_programs(2) - 1)
    def _():
        o_ref[0] = (acc_ref[...] + b_ref[...]).astype(o_ref.dtype)


def time_linear_kernel(t_ref, w_ref, b_ref, o_ref):
    t = t_ref[...]
    t = t * jax.nn.sigmoid(t)                             # SiLU in f32
    o_ref[...] = (jnp.dot(t.astype(jnp.bfloat16), w_ref[...],
                          preferred_element_type=jnp.float32) + b_ref[...]).astype(o_ref.dtype)


# ----------------------------------------------------------------------------
# Pallas wrappers
# ----------------------------------------------------------------------------
def gn_scale_shift(x, gamma, beta, *, num_groups=32, eps=1e-5, tile_s=1024):
    """Per-(batch, channel) GroupNorm scale/shift, streamed over spatial tiles."""
    B, H, W, C = x.shape
    HW = H * W
    ts = _spatial_tile(HW, tile_s)
    xf = x.reshape(B, HW, C)
    kern = functools.partial(gn_stats_kernel, num_groups=num_groups, eps=eps, hw=HW)
    scale, shift = pl.pallas_call(
        kern,
        out_shape=(jax.ShapeDtypeStruct((B, 1, C), jnp.float32),
                   jax.ShapeDtypeStruct((B, 1, C), jnp.float32)),
        grid=(B, HW // ts),
        in_specs=[
            pl.BlockSpec((1, ts, C), lambda b, s: (b, s, 0)),
            pl.BlockSpec((1, C), lambda b, s: (0, 0)),
            pl.BlockSpec((1, C), lambda b, s: (0, 0)),
        ],
        out_specs=(pl.BlockSpec((1, 1, C), lambda b, s: (b, 0, 0)),
                   pl.BlockSpec((1, 1, C), lambda b, s: (b, 0, 0))),
        scratch_shapes=[pltpu.VMEM((1, C), jnp.float32),
                        pltpu.VMEM((1, C), jnp.float32)],
        compiler_params=_cparams("parallel", "arbitrary"),
    )(xf, gamma.reshape(1, C), beta.reshape(1, C))
    return scale, shift


def fused_conv3x3(x, w, b, *, scale=None, shift=None, time_emb=None, residual=None,
                  tile_k=256, tile_n=256):
    """3x3 SAME conv, K/N-tiled with an f32 VMEM accumulator.

    Optionally fuses a preceding GroupNorm+SiLU (scale/shift per (b, c)) into the input
    path and a per-channel time add or a residual add into the epilogue.
    residual must be lane-dense (B, H*W, Cout); time_emb is (B, 1, Cout).
    """
    B, H, W, Cin = x.shape
    Cout = w.shape[-1]
    HW = H * W
    tk = _channel_tile(Cin, tile_k)
    tn = _channel_tile(Cout, tile_n)
    grid = (B, Cout // tn, Cin // tk)

    w_bf = w.astype(jnp.bfloat16)
    b2 = b.reshape(1, Cout).astype(jnp.float32)

    x_spec = pl.BlockSpec((1, H, W, tk), lambda bb, n, k: (bb, 0, 0, k))
    w_spec = pl.BlockSpec((3, 3, tk, tn), lambda bb, n, k: (0, 0, k, n))
    b_spec = pl.BlockSpec((1, tn), lambda bb, n, k: (0, n))
    o_spec = pl.BlockSpec((1, HW, tn), lambda bb, n, k: (bb, 0, n))
    out_shape = jax.ShapeDtypeStruct((B, HW, Cout), jnp.float32)
    scratch = [pltpu.VMEM((HW, tn), jnp.float32)]
    cparams = _cparams("parallel", "parallel", "arbitrary")

    if scale is not None:
        sc_spec = pl.BlockSpec((1, 1, tk), lambda bb, n, k: (bb, 0, k))
        sh_spec = pl.BlockSpec((1, 1, tk), lambda bb, n, k: (bb, 0, k))
        if time_emb is not None:
            t_spec = pl.BlockSpec((1, 1, tn), lambda bb, n, k: (bb, 0, n))
            out = pl.pallas_call(
                functools.partial(conv3x3_gn_time_kernel, H=H, W=W),
                out_shape=out_shape, grid=grid,
                in_specs=[x_spec, sc_spec, sh_spec, w_spec, b_spec, t_spec],
                out_specs=o_spec, scratch_shapes=scratch, compiler_params=cparams,
            )(x, scale, shift, w_bf, b2, time_emb)
        else:
            r_spec = pl.BlockSpec((1, HW, tn), lambda bb, n, k: (bb, 0, n))
            out = pl.pallas_call(
                functools.partial(conv3x3_gn_res_kernel, H=H, W=W),
                out_shape=out_shape, grid=grid,
                in_specs=[x_spec, sc_spec, sh_spec, w_spec, b_spec, r_spec],
                out_specs=o_spec, scratch_shapes=scratch, compiler_params=cparams,
            )(x, scale, shift, w_bf, b2, residual)
    else:
        out = pl.pallas_call(
            functools.partial(conv3x3_plain_kernel, H=H, W=W),
            out_shape=out_shape, grid=grid,
            in_specs=[x_spec, w_spec, b_spec],
            out_specs=o_spec, scratch_shapes=scratch, compiler_params=cparams,
        )(x, w_bf, b2)
    return out.reshape(B, H, W, Cout)


def conv1x1(x, w, b, *, tile_k=256, tile_n=256):
    """1x1 conv (residual projection), K/N-tiled. Returns lane-dense (B, H*W, Cout)."""
    B, H, W, Cin = x.shape
    Cout = w.shape[-1]
    HW = H * W
    tk = _channel_tile(Cin, tile_k)
    tn = _channel_tile(Cout, tile_n)
    grid = (B, Cout // tn, Cin // tk)
    return pl.pallas_call(
        conv1x1_kernel,
        out_shape=jax.ShapeDtypeStruct((B, HW, Cout), jnp.float32),
        grid=grid,
        in_specs=[
            pl.BlockSpec((1, HW, tk), lambda bb, n, k: (bb, 0, k)),
            pl.BlockSpec((tk, tn), lambda bb, n, k: (k, n)),
            pl.BlockSpec((1, tn), lambda bb, n, k: (0, n)),
        ],
        out_specs=pl.BlockSpec((1, HW, tn), lambda bb, n, k: (bb, 0, n)),
        scratch_shapes=[pltpu.VMEM((HW, tn), jnp.float32)],
        compiler_params=_cparams("parallel", "parallel", "arbitrary"),
    )(x.reshape(B, HW, Cin), w.astype(jnp.bfloat16), b.reshape(1, Cout))


def time_linear(t, w, b):
    """SiLU(time) followed by one merged Linear (1280 -> 3*Cout for the 3 Resnets)."""
    B, D = t.shape
    N = w.shape[-1]
    return pl.pallas_call(
        time_linear_kernel,
        out_shape=jax.ShapeDtypeStruct((B, N), jnp.float32),
        grid=(1,),
        in_specs=[
            pl.BlockSpec((B, D), lambda i: (0, 0)),
            pl.BlockSpec((D, N), lambda i: (0, 0)),
            pl.BlockSpec((1, N), lambda i: (0, 0)),
        ],
        out_specs=pl.BlockSpec((B, N), lambda i: (0, 0)),
        compiler_params=_cparams("arbitrary"),
    )(t, w.astype(jnp.bfloat16), b.reshape(1, N))


# ----------------------------------------------------------------------------
# Module forward (Pallas-backed)
# ----------------------------------------------------------------------------
def resnet_forward(p, x, t_emb, *, tile_k, tile_n):
    B, H, W, Cin = x.shape
    sc0, sh0 = gn_scale_shift(x, p["gn0_g"], p["gn0_b"])
    h = fused_conv3x3(x, p["conv0_w"], p["conv0_b"], scale=sc0, shift=sh0,
                      time_emb=t_emb, tile_k=tile_k, tile_n=tile_n)     # GN+SiLU+conv+time
    if "res_w" in p:
        res = conv1x1(x, p["res_w"], p["res_b"], tile_k=tile_k, tile_n=tile_n)
    else:
        res = x.reshape(B, H * W, Cin)
    sc1, sh1 = gn_scale_shift(h, p["gn1_g"], p["gn1_b"])
    return fused_conv3x3(h, p["conv1_w"], p["conv1_b"], scale=sc1, shift=sh1,
                         residual=res, tile_k=tile_k, tile_n=tile_n)    # GN+SiLU+conv+res


def upblock_forward(params, out_vae, time, out_down, *, tile_k=256, tile_n=256):
    B = time.shape[0]
    Cout = params["res0"]["conv0_b"].shape[0]
    # One merged SiLU + Linear(1280, 3*Cout) for the three Resnet time embeddings.
    w_all = jnp.concatenate([params[r]["time_w"] for r in ("res0", "res1", "res2")], axis=1)
    b_all = jnp.concatenate([params[r]["time_b"] for r in ("res0", "res1", "res2")], axis=0)
    t_all = time_linear(time, w_all, b_all)                             # (B, 3*Cout)

    down = list(out_down)
    x = out_vae
    for i, name in enumerate(("res0", "res1", "res2")):
        t_emb = t_all[:, i * Cout:(i + 1) * Cout].reshape(B, 1, Cout)
        # TODO(synk): fuse the channel concat into the conv kernels as two K-partial inputs
        # to avoid materialising the concatenated activation in HBM.
        x = resnet_forward(params[name], jnp.concatenate([x, down.pop()], axis=-1),
                           t_emb, tile_k=tile_k, tile_n=tile_n)
    if "out_w" in params:
        # TODO(synk): fuse the nearest-2x upsample into the conv (parity-decomposed output
        # blocks); kept as XLA data movement to stay within proven Mosaic layout patterns.
        x = jnp.repeat(jnp.repeat(x, 2, axis=1), 2, axis=2)
        x = fused_conv3x3(x, params["out_w"], params["out_b"], tile_k=tile_k, tile_n=tile_n)
    return x


# ----------------------------------------------------------------------------
# Pure-JAX reference (mirrors PyTorch semantics, f32) for verification
# ----------------------------------------------------------------------------
def ref_gn_silu(x, g, b, G=32, eps=1e-5):
    B, H, W, C = x.shape
    xg = x.reshape(B, H, W, G, C // G)
    mean = xg.mean(axis=(1, 2, 4), keepdims=True)
    var = ((xg - mean) ** 2).mean(axis=(1, 2, 4), keepdims=True)
    y = ((xg - mean) / jnp.sqrt(var + eps)).reshape(B, H, W, C) * g + b
    return y * jax.nn.sigmoid(y)


def ref_conv3x3(x, w, b):
    y = jax.lax.conv_general_dilated(
        x, w, (1, 1), "SAME", dimension_numbers=("NHWC", "HWIO", "NHWC"))
    return y + b


def ref_resnet(p, x, t):
    temb = jnp.dot(jax.nn.silu(t), p["time_w"]) + p["time_b"]
    h = ref_conv3x3(ref_gn_silu(x, p["gn0_g"], p["gn0_b"]), p["conv0_w"], p["conv0_b"])
    h = h + temb[:, None, None, :]
    res = (jnp.einsum("bhwc,cd->bhwd", x, p["res_w"]) + p["res_b"]) if "res_w" in p else x
    h = ref_conv3x3(ref_gn_silu(h, p["gn1_g"], p["gn1_b"]), p["conv1_w"], p["conv1_b"])
    return res + h


def ref_upblock(params, out_vae, t, out_down):
    down = list(out_down)
    x = ref_resnet(params["res0"], jnp.concatenate([out_vae, down.pop()], -1), t)
    x = ref_resnet(params["res1"], jnp.concatenate([x, down.pop()], -1), t)
    x = ref_resnet(params["res2"], jnp.concatenate([x, down.pop()], -1), t)
    if "out_w" in params:
        x = jnp.repeat(jnp.repeat(x, 2, 1), 2, 2)
        x = ref_conv3x3(x, params["out_w"], params["out_b"])
    return x


# ----------------------------------------------------------------------------
# Deterministic parameter init (shapes follow the PyTorch __init__)
# ----------------------------------------------------------------------------
def make_resnet_params(key, cin, cout):
    ks = jax.random.split(key, 12)
    p = {
        "time_w": 0.03 * jax.random.normal(ks[0], (1280, cout), jnp.float32),
        "time_b": 0.02 * jax.random.normal(ks[1], (cout,), jnp.float32),
        "gn0_g": 1.0 + 0.1 * jax.random.normal(ks[2], (cin,), jnp.float32),
        "gn0_b": 0.05 * jax.random.normal(ks[3], (cin,), jnp.float32),
        "conv0_w": 0.05 * jax.random.normal(ks[4], (3, 3, cin, cout), jnp.float32),
        "conv0_b": 0.02 * jax.random.normal(ks[5], (cout,), jnp.float32),
        "gn1_g": 1.0 + 0.1 * jax.random.normal(ks[6], (cout,), jnp.float32),
        "gn1_b": 0.05 * jax.random.normal(ks[7], (cout,), jnp.float32),
        "conv1_w": 0.05 * jax.random.normal(ks[8], (3, 3, cout, cout), jnp.float32),
        "conv1_b": 0.02 * jax.random.normal(ks[9], (cout,), jnp.float32),
    }
    if cin != cout:
        p["res_w"] = 0.05 * jax.random.normal(ks[10], (cin, cout), jnp.float32)
        p["res_b"] = 0.02 * jax.random.normal(ks[11], (cout,), jnp.float32)
    return p


def make_upblock_params(key, dim_in, dim_out, dim_prev, add_up):
    k0, k1, k2, k3, k4 = jax.random.split(key, 5)
    params = {
        "res0": make_resnet_params(k0, dim_out + dim_prev, dim_out),
        "res1": make_resnet_params(k1, dim_out + dim_out, dim_out),
        "res2": make_resnet_params(k2, dim_in + dim_out, dim_out),
    }
    if add_up:
        params["out_w"] = 0.05 * jax.random.normal(k3, (3, 3, dim_out, dim_out), jnp.float32)
        params["out_b"] = 0.02 * jax.random.normal(k4, (dim_out,), jnp.float32)
    return params


# ----------------------------------------------------------------------------
if __name__ == "__main__":
    # Channels must be divisible by 32 (GroupNorm); sizes chosen so the K/N-tiled conv
    # path (multiple K and N tiles of 128) is actually exercised while staying small.
    B, H, W = 2, 8, 8
    dim_in, dim_out, dim_prev = 128, 256, 128
    add_up = True

    key = jax.random.PRNGKey(0)
    kp, kv, kt, kd0, kd1, kd2 = jax.random.split(key, 6)

    params = make_upblock_params(kp, dim_in, dim_out, dim_prev, add_up)

    out_vae = jax.random.normal(kv, (B, H, W, dim_prev), jnp.float32)
    time = jax.random.normal(kt, (B, 1280), jnp.float32)
    # out_down is popped from the end: last element pairs with res0, etc.
    out_down = [
        jax.random.normal(kd0, (B, H, W, dim_in), jnp.float32),    # consumed by res2
        jax.random.normal(kd1, (B, H, W, dim_out), jnp.float32),   # consumed by res1
        jax.random.normal(kd2, (B, H, W, dim_out), jnp.float32),   # consumed by res0
    ]

    out = upblock_forward(params, out_vae, time, out_down, tile_k=128, tile_n=128)
    out = jax.block_until_ready(out)

    ref = jax.block_until_ready(ref_upblock(params, out_vae, time, out_down))

    # The kernels use bf16 MXU inputs with f32 accumulation (per TPU best practice), while
    # the reference is pure f32; compare with normalized error metrics sized for bf16.
    out_np = np.asarray(out, dtype=np.float64)
    ref_np = np.asarray(ref, dtype=np.float64)
    rms = np.sqrt(np.mean(ref_np ** 2))
    rel_rms = np.sqrt(np.mean((out_np - ref_np) ** 2)) / rms
    max_rel = np.max(np.abs(out_np - ref_np)) / rms
    assert out_np.shape == ref_np.shape, (out_np.shape, ref_np.shape)
    assert rel_rms < 2.5e-2, f"rel_rms too large: {rel_rms}"
    assert max_rel < 1.5e-1, f"max normalized error too large: {max_rel}"

    print("KERNEL_OK")
</pallas_src>

<mosaic_0001>
module attributes {stable_mosaic.version = 11 : i64} {
  func.func @time_linear_kernel(%arg0: i32, %arg1: memref<2x1280xf32, #tpu.memory_space<vmem>>, %arg2: memref<1280x768xbf16, #tpu.memory_space<vmem>>, %arg3: memref<1x768xf32, #tpu.memory_space<vmem>>, %arg4: memref<2x768xf32, #tpu.memory_space<vmem>>) attributes {dimension_semantics = [#tpu.dimension_semantics<arbitrary>], iteration_bounds = array<i64: 1>, scalar_prefetch = 0 : i64, scratch_operands = 0 : i64, tpu.core_type = #tpu.core_type<tc>, window_params = [{pipeline_mode = #tpu.pipeline_mode<synchronous>, transform_indices = @transform_0, window_bounds = array<i64: 2, 1280>}, {pipeline_mode = #tpu.pipeline_mode<synchronous>, transform_indices = @transform_1, window_bounds = array<i64: 1280, 768>}, {pipeline_mode = #tpu.pipeline_mode<synchronous>, transform_indices = @transform_2, window_bounds = array<i64: 1, 768>}, {pipeline_mode = #tpu.pipeline_mode<synchronous>, transform_indices = @transform_3, window_bounds = array<i64: 2, 768>}]} {
    %c0 = arith.constant 0 : index
    %c0_0 = arith.constant 0 : index
    %0 = vector.load %arg1[%c0, %c0_0] : memref<2x1280xf32, #tpu.memory_space<vmem>>, vector<2x1280xf32>
    %1 = arith.negf %0 : vector<2x1280xf32>
    %2 = math.exp %1 : vector<2x1280xf32>
    %cst = arith.constant 1.000000e+00 : f32
    %3 = vector.broadcast %cst : f32 to vector<2x1280xf32>
    %4 = arith.addf %3, %2 : vector<2x1280xf32>
    %5 = arith.divf %3, %4 : vector<2x1280xf32>
    %6 = arith.mulf %0, %5 : vector<2x1280xf32>
    %7 = arith.truncf %6 : vector<2x1280xf32> to vector<2x1280xbf16>
    %c0_1 = arith.constant 0 : index
    %c0_2 = arith.constant 0 : index
    %8 = vector.load %arg2[%c0_1, %c0_2] : memref<1280x768xbf16, #tpu.memory_space<vmem>>, vector<1280x768xbf16>
    %cst_3 = arith.constant dense<0.000000e+00> : vector<2x768xf32>
    %9 = tpu.matmul %7, %8, %cst_3 {dimension_numbers = #tpu.dot_dimension_numbers<[1], [0], [0], [1], [0, 0, 1, 1], [], []>} : vector<2x1280xbf16>, vector<1280x768xbf16>, vector<2x768xf32> -> vector<2x768xf32>
    %c0_4 = arith.constant 0 : index
    %c0_5 = arith.constant 0 : index
    %10 = vector.load %arg3[%c0_4, %c0_5] : memref<1x768xf32, #tpu.memory_space<vmem>>, vector<1x768xf32>
    %11 = vector.broadcast %10 : vector<1x768xf32> to vector<2x768xf32>
    %12 = arith.addf %9, %11 : vector<2x768xf32>
    %c0_6 = arith.constant 0 : index
    %c0_7 = arith.constant 0 : index
    %13 = vector.load %arg4[%c0_6, %c0_7] : memref<2x768xf32, #tpu.memory_space<vmem>>, vector<2x768xf32>
    tpu.vector_store %arg4[%c0_6, %c0_7], %12 {strides = array<i32>} : memref<2x768xf32, #tpu.memory_space<vmem>>, vector<2x768xf32>,
    return
  }
  func.func @transform_0(%arg0: i32) -> (i32, i32) {
    %c0_i32 = arith.constant 0 : i32
    %c0_i32_0 = arith.constant 0 : i32
    %c0_i32_1 = arith.constant 0 : i32
    return %c0_i32, %c0_i32_0 : i32, i32
  }
  func.func @transform_1(%arg0: i32) -> (i32, i32) {
    %c0_i32 = arith.constant 0 : i32
    %c0_i32_0 = arith.constant 0 : i32
    %c0_i32_1 = arith.constant 0 : i32
    return %c0_i32, %c0_i32_0 : i32, i32
  }
  func.func @transform_2(%arg0: i32) -> (i32, i32) {
    %c0_i32 = arith.constant 0 : i32
    %c0_i32_0 = arith.constant 0 : i32
    %c0_i32_1 = arith.constant 0 : i32
    return %c0_i32, %c0_i32_0 : i32, i32
  }
  func.func @transform_3(%arg0: i32) -> (i32, i32) {
    %c0_i32 = arith.constant 0 : i32
    %c0_i32_0 = arith.constant 0 : i32
    %c0_i32_1 = arith.constant 0 : i32
    return %c0_i32, %c0_i32_0 : i32, i32
  }
}

</mosaic_0001>

<llo_original>
// kernel: tpu_custom_call.1
$region0: #{tpu_custom_call.1}
  #allocation0 [shape = 'u32[]', space=smem, size = 0x4, offset = 0x4, fixed_abs, tag = 'smem constant byte address 0x4 - core index']
  #allocation1 [shape = 'u32[144,128]{1,0:T(1,128)}', space=vmem, size = 0x12000, scoped, tag = 'internal scratch']
  %s0 = inlined_call_operand.hbm [shape: f32[2,1280], index: 0, kind: input, shape index: {}]
  %s1 = inlined_call_operand.hbm [shape: bf16[1280,768], index: 1, kind: input, shape index: {}]
  %s2 = inlined_call_operand.hbm [shape: f32[1,768], index: 2, kind: input, shape index: {}]
  %s3 = inlined_call_operand.hbm [shape: f32[2,768], index: 3, kind: output, shape index: {}]
  %s4 = sld [smem:[#allocation0]]
  $region34: #{tpu_custom_call.1} parent=0
    _
  %s6 = ssub.s32 1, %s4
  %s7 = scalar_select 0, %s6, %s4
  $region1: #{tpu_custom_call.1} parent=0
    #allocation2 [shape = 'u8[10240]{0}', space=vmem, size = 0x2800, scoped, tag = 'input window, operand 0, single buffered']
    #allocation3 [shape = 's32[1]{0}', space=sflag, size = 0x4, scoped, tag = 'scoped memory for tpu_custom_call.1']
    #allocation4 [shape = 's32[1]{0}', space=sflag, size = 0x4, scoped, tag = 'scoped memory for tpu_custom_call.1']
    #allocation5 [shape = 'u8[1966080]{0}', space=vmem, size = 0x1e0000, scoped, tag = 'input window, operand 1, single buffered']
    #allocation6 [shape = 's32[1]{0}', space=sflag, size = 0x4, scoped, tag = 'scoped memory for tpu_custom_call.1']
    #allocation7 [shape = 'u8[3072]{0}', space=vmem, size = 0xc00, scoped, tag = 'input window, operand 2, single buffered']
    #allocation8 [shape = 'u8[6144]{0}', space=vmem, size = 0x1800, scoped, tag = 'output window, operand 0, single buffered']
    %8 = vsyncpa [#allocation3], 0
    %9 = vsyncpa [#allocation6], 0
    %10 = vsyncpa [#allocation4], 0
    // Predicated region
    $region2: #{tpu_custom_call.1} parent=1 // pred_check
      _
    $region3: #{tpu_custom_call.1} parent=1 // pred_check_branch
      %12 = sbr.rel (0) target = $region5
    $region4: #{tpu_custom_call.1} parent=1 // pred_region
      %s14 = ssub.s32 320, 320
      %15 = vsyncadd [#allocation3], %s14
      %s17 = sshll.u32 [#allocation2], 4
      %s18 = int_to_ptr.vmem [resolvable:$true] %s17
      %20 = dma.hbm_to_vmem [thread:$0]  %s0, 320, %s18, [#allocation3]
    $region5: #{tpu_custom_call.1} parent=1 // pred_fallthru
      _
    // Predicated region
    $region6: #{tpu_custom_call.1} parent=1 // pred_check
      _
    $region7: #{tpu_custom_call.1} parent=1 // pred_check_branch
      %22 = sbr.rel (0) target = $region9
    $region8: #{tpu_custom_call.1} parent=1 // pred_region
      %s24 = ssub.s32 61440, 61440
      %25 = vsyncadd [#allocation6], %s24
      %s26 = sshll.u32 [#allocation5], 4
      %s27 = int_to_ptr.vmem [resolvable:$true] %s26
      %32 = dma.hbm_to_vmem [thread:$0]  %s1, 61440, %s27, [#allocation6], 384, 384, 24
    $region9: #{tpu_custom_call.1} parent=1 // pred_fallthru
      _
    // Predicated region
    $region10: #{tpu_custom_call.1} parent=1 // pred_check
      _
    $region11: #{tpu_custom_call.1} parent=1 // pred_check_branch
      %34 = sbr.rel (0) target = $region13
    $region12: #{tpu_custom_call.1} parent=1 // pred_region
      %s36 = ssub.s32 96, 96
      %37 = vsyncadd [#allocation6], %s36
      %s39 = sshll.u32 [#allocation7], 4
      %s40 = int_to_ptr.vmem [resolvable:$true] %s39
      %42 = dma.hbm_to_vmem [thread:$0]  %s2, 96, %s40, [#allocation6]
    $region13: #{tpu_custom_call.1} parent=1 // pred_fallthru
      _
    // Predicated region
    $region14: #{tpu_custom_call.1} parent=1 // pred_check
      _
    $region15: #{tpu_custom_call.1} parent=1 // pred_check_branch
      %44 = sbr.rel (0) target = $region17
    $region16: #{tpu_custom_call.1} parent=1 // pred_region
      %45 = dma.done [#allocation3], 320
    $region17: #{tpu_custom_call.1} parent=1 // pred_fallthru
      _
    // Predicated region
    $region18: #{tpu_custom_call.1} parent=1 // pred_check
      _
    $region19: #{tpu_custom_call.1} parent=1 // pred_check_branch
      %47 = sbr.rel (0) target = $region21
    $region20: #{tpu_custom_call.1} parent=1 // pred_region
      %48 = dma.done [#allocation6], 61440
    $region21: #{tpu_custom_call.1} parent=1 // pred_fallthru
      _
    // Predicated region
    $region22: #{tpu_custom_call.1} parent=1 // pred_check
      _
    $region23: #{tpu_custom_call.1} parent=1 // pred_check_branch
      %50 = sbr.rel (0) target = $region25
    $region24: #{tpu_custom_call.1} parent=1 // pred_region
      %51 = dma.done [#allocation6], 96
    $region25: #{tpu_custom_call.1} parent=1 // pred_fallthru
      _
    %v52 = vld [vmem:[#allocation2] sm:$0xff]
    %v53 = vld [vmem:[#allocation2 + $0x8] sm:$0xff]
    %v54 = vld [vmem:[#allocation2 + $0x10] sm:$0xf]
    %v55 = vxor.u32 %v52, 2147483648
    %v56 = vxor.u32 %v53, 2147483648
    %v57 = vxor.u32 %v54, 2147483648
    %v58 = vmul.f32 %v55, 1.442695
    %v59 = vpow.pop %v58
    %v60 = vmul.f32 %v56, 1.442695
    %v61 = vpow.pop %v60
    %v62 = vmul.f32 %v57, 1.442695
    %v63 = vpow.pop %v62
    %v64 = vadd.f32 %v59, 1.0
    %v65 = vadd.f32 %v61, 1.0
    %v66 = vadd.f32 %v63, 1.0
    %v67 = vrcp.pop %v64
    %v68 = vmul.f32 1.0, %v67
    %v69 = vrcp.pop %v65
    %v70 = vmul.f32 1.0, %v69
    %v71 = vrcp.pop %v66
    %v72 = vmul.f32 1.0, %v71
    %v73 = vmul.f32 %v52, %v68
    %v74 = vmul.f32 %v53, %v70
    %v75 = vmul.f32 %v54, %v72
    %v79 = vcombine.high %v73, %v73
    %v81 = vunpack.c.l.s4 1983009808
    %v82 = vunpack.c.0.s8 %v81
    %v83 = vlaneseq
    %v84 = vshrl.u32 %v83, 7
    %v85 = vsub.s32 %v82, %v84
    %v86 = vrot.slane %v73, %v85
    %v88 = vunpack.c.l.s4 1983009808
    %v89 = vunpack.c.0.s8 %v88
    %v90 = vlaneseq
    %v91 = vshrl.u32 %v90, 7
    %v92 = vsub.s32 %v89, %v91
    %v93 = vrot.slane %v79, %v92
    %v94 = vcombine.high %v86, %v86
    %v95 = vcombine.high %v93, %v93
    %v96 = vcombine.high %v74, %v74
    %v98 = vunpack.c.l.s4 1983009808
    %v99 = vunpack.c.0.s8 %v98
    %v100 = vlaneseq
    %v101 = vshrl.u32 %v100, 7
    %v102 = vsub.s32 %v99, %v101
    %v103 = vrot.slane %v74, %v102
    %v105 = vunpack.c.l.s4 1983009808
    %v106 = vunpack.c.0.s8 %v105
    %v107 = vlaneseq
    %v108 = vshrl.u32 %v107, 7
    %v109 = vsub.s32 %v106, %v108
    %v110 = vrot.slane %v96, %v109
    %v111 = vcombine.high %v103, %v103
    %v112 = vcombine.high %v110, %v110
    %v114 = vunpack.c.l.s4 1983009808
    %v115 = vunpack.c.0.s8 %v114
    %v116 = vlaneseq
    %v117 = vshrl.u32 %v116, 7
    %v118 = vsub.s32 %v115, %v117
    %v119 = vrot.slane %v75, %v118
    %v120 = vcombine.high %v119, %v119
    %v131 = vpack.c.bf16 %v86, %v86
    %v132 = vpack.c.bf16 %v94, %v94
    %v133 = vpack.c.bf16 %v93, %v93
    %v134 = vpack.c.bf16 %v95, %v95
    %v135 = vpack.c.bf16 %v103, %v103
    %v136 = vpack.c.bf16 %v111, %v111
    %v137 = vpack.c.bf16 %v110, %v110
    %v138 = vpack.c.bf16 %v112, %v112
    %v139 = vpack.c.bf16 %v119, %v119
    %v140 = vpack.c.bf16 %v120, %v120
    %v141 = vld [vmem:[#allocation5] sm:$0xff]
    %v142 = vld [vmem:[#allocation5 + $0x8] sm:$0xff]
    %v143 = vld [vmem:[#allocation5 + $0x10] sm:$0xff]
    %v144 = vld [vmem:[#allocation5 + $0x18] sm:$0xff]
    %v145 = vld [vmem:[#allocation5 + $0x20] sm:$0xff]
    %v146 = vld [vmem:[#allocation5 + $0x28] sm:$0xff]
    %v147 = vld [vmem:[#allocation5 + $0x30] sm:$0xff]
    %v148 = vld [vmem:[#allocation5 + $0x38] sm:$0xff]
    %v149 = vld [vmem:[#allocation5 + $0x40] sm:$0xff]
    %v150 = vld [vmem:[#allocation5 + $0x48] sm:$0xff]
    %v151 = vld [vmem:[#allocation5 + $0x50] sm:$0xff]
    %v152 = vld [vmem:[#allocation5 + $0x58] sm:$0xff]
    %v153 = vld [vmem:[#allocation5 + $0x60] sm:$0xff]
    %v154 = vld [vmem:[#allocation5 + $0x68] sm:$0xff]
    %v155 = vld [vmem:[#allocation5 + $0x70] sm:$0xff]
    %v156 = vld [vmem:[#allocation5 + $0x78] sm:$0xff]
    %v157 = vld [vmem:[#allocation5 + $0x80] sm:$0xff]
    %v158 = vld [vmem:[#allocation5 + $0x88] sm:$0xff]
    %v159 = vld [vmem:[#allocation5 + $0x90] sm:$0xff]
    %v160 = vld [vmem:[#allocation5 + $0x98] sm:$0xff]
    %v161 = vld [vmem:[#allocation5 + $0xa0] sm:$0xff]
    %v162 = vld [vmem:[#allocation5 + $0xa8] sm:$0xff]
    %v163 = vld [vmem:[#allocation5 + $0xb0] sm:$0xff]
    %v164 = vld [vmem:[#allocation5 + $0xb8] sm:$0xff]
    %v165 = vld [vmem:[#allocation5 + $0xc0] sm:$0xff]
    %v166 = vld [vmem:[#allocation5 + $0xc8] sm:$0xff]
    %v167 = vld [vmem:[#allocation5 + $0xd0] sm:$0xff]
    %v168 = vld [vmem:[#allocation5 + $0xd8] sm:$0xff]
    %v169 = vld [vmem:[#allocation5 + $0xe0] sm:$0xff]
    %v170 = vld [vmem:[#allocation5 + $0xe8] sm:$0xff]
    %v171 = vld [vmem:[#allocation5 + $0xf0] sm:$0xff]
    %v172 = vld [vmem:[#allocation5 + $0xf8] sm:$0xff]
    %v173 = vld [vmem:[#allocation5 + $0x100] sm:$0xff]
    %v174 = vld [vmem:[#allocation5 + $0x108] sm:$0xff]
    %v175 = vld [vmem:[#allocation5 + $0x110] sm:$0xff]
    %v176 = vld [vmem:[#allocation5 + $0x118] sm:$0xff]
    %v177 = vld [vmem:[#allocation5 + $0x120] sm:$0xff]
    %v178 = vld [vmem:[#allocation5 + $0x128] sm:$0xff]
    %v179 = vld [vmem:[#allocation5 + $0x130] sm:$0xff]
    %v180 = vld [vmem:[#allocation5 + $0x138] sm:$0xff]
    %v181 = vld [vmem:[#allocation5 + $0x140] sm:$0xff]
    %v182 = vld [vmem:[#allocation5 + $0x148] sm:$0xff]
    %v183 = vld [vmem:[#allocation5 + $0x150] sm:$0xff]
    %v184 = vld [vmem:[#allocation5 + $0x158] sm:$0xff]
    %v185 = vld [vmem:[#allocation5 + $0x160] sm:$0xff]
    %v186 = vld [vmem:[#allocation5 + $0x168] sm:$0xff]
    %v187 = vld [vmem:[#allocation5 + $0x170] sm:$0xff]
    %v188 = vld [vmem:[#allocation5 + $0x178] sm:$0xff]
    %v189 = vld [vmem:[#allocation5 + $0x180] sm:$0xff]
    %v190 = vld [vmem:[#allocation5 + $0x188] sm:$0xff]
    %v191 = vld [vmem:[#allocation5 + $0x190] sm:$0xff]
    %v192 = vld [vmem:[#allocation5 + $0x198] sm:$0xff]
    %v193 = vld [vmem:[#allocation5 + $0x1a0] sm:$0xff]
    %v194 = vld [vmem:[#allocation5 + $0x1a8] sm:$0xff]
    %v195 = vld [vmem:[#allocation5 + $0x1b0] sm:$0xff]
    %v196 = vld [vmem:[#allocation5 + $0x1b8] sm:$0xff]
    %v197 = vld [vmem:[#allocation5 + $0x1c0] sm:$0xff]
    %v198 = vld [vmem:[#allocation5 + $0x1c8] sm:$0xff]
    %v199 = vld [vmem:[#allocation5 + $0x1d0] sm:$0xff]
    %v200 = vld [vmem:[#allocation5 + $0x1d8] sm:$0xff]
    %v201 = vld [vmem:[#allocation5 + $0x1e0] sm:$0xff]
    %v202 = vld [vmem:[#allocation5 + $0x1e8] sm:$0xff]
    %v203 = vld [vmem:[#allocation5 + $0x1f0] sm:$0xff]
    %v204 = vld [vmem:[#allocation5 + $0x1f8] sm:$0xff]
    %v205 = vld [vmem:[#allocation5 + $0x200] sm:$0xff]
    %v206 = vld [vmem:[#allocation5 + $0x208] sm:$0xff]
    %v207 = vld [vmem:[#allocation5 + $0x210] sm:$0xff]
    %v208 = vld [vmem:[#allocation5 + $0x218] sm:$0xff]
    %v209 = vld [vmem:[#allocation5 + $0x220] sm:$0xff]
    %v210 = vld [vmem:[#allocation5 + $0x228] sm:$0xff]
    %v211 = vld [vmem:[#allocation5 + $0x230] sm:$0xff]
    %v212 = vld [vmem:[#allocation5 + $0x238] sm:$0xff]
    %v213 = vld [vmem:[#allocation5 + $0x240] sm:$0xff]
    %v214 = vld [vmem:[#allocation5 + $0x248] sm:$0xff]
    %v215 = vld [vmem:[#allocation5 + $0x250] sm:$0xff]
    %v216 = vld [vmem:[#allocation5 + $0x258] sm:$0xff]
    %v217 = vld [vmem:[#allocation5 + $0x260] sm:$0xff]
    %v218 = vld [vmem:[#allocation5 + $0x268] sm:$0xff]
    %v219 = vld [vmem:[#allocation5 + $0x270] sm:$0xff]
    %v220 = vld [vmem:[#allocation5 + $0x278] sm:$0xff]
    %v221 = vld [vmem:[#allocation5 + $0x280] sm:$0xff]
    %v222 = vld [vmem:[#allocation5 + $0x288] sm:$0xff]
    %v223 = vld [vmem:[#allocation5 + $0x290] sm:$0xff]
    %v224 = vld [vmem:[#allocation5 + $0x298] sm:$0xff]
    %v225 = vld [vmem:[#allocation5 + $0x2a0] sm:$0xff]
    %v226 = vld [vmem:[#allocation5 + $0x2a8] sm:$0xff]
    %v227 = vld [vmem:[#allocation5 + $0x2b0] sm:$0xff]
    %v228 = vld [vmem:[#allocation5 + $0x2b8] sm:$0xff]
    %v229 = vld [vmem:[#allocation5 + $0x2c0] sm:$0xff]
    %v230 = vld [vmem:[#allocation5 + $0x2c8] sm:$0xff]
    %v231 = vld [vmem:[#allocation5 + $0x2d0] sm:$0xff]
    %v232 = vld [vmem:[#allocation5 + $0x2d8] sm:$0xff]
    %v233 = vld [vmem:[#allocation5 + $0x2e0] sm:$0xff]
    %v234 = vld [vmem:[#allocation5 + $0x2e8] sm:$0xff]
    %v235 = vld [vmem:[#allocation5 + $0x2f0] sm:$0xff]
    %v236 = vld [vmem:[#allocation5 + $0x2f8] sm:$0xff]
    %v237 = vld [vmem:[#allocation5 + $0x300] sm:$0xff]
    %v238 = vld [vmem:[#allocation5 + $0x308] sm:$0xff]
    %v239 = vld [vmem:[#allocation5 + $0x310] sm:$0xff]
    %v240 = vld [vmem:[#allocation5 + $0x318] sm:$0xff]
    %v241 = vld [vmem:[#allocation5 + $0x320] sm:$0xff]
    %v242 = vld [vmem:[#allocation5 + $0x328] sm:$0xff]
    %v243 = vld [vmem:[#allocation5 + $0x330] sm:$0xff]
    %v244 = vld [vmem:[#allocation5 + $0x338] sm:$0xff]
    %v245 = vld [vmem:[#allocation5 + $0x340] sm:$0xff]
    %v246 = vld [vmem:[#allocation5 + $0x348] sm:$0xff]
    %v247 = vld [vmem:[#allocation5 + $0x350] sm:$0xff]
    %v248 = vld [vmem:[#allocation5 + $0x358] sm:$0xff]
    %v249 = vld [vmem:[#allocation5 + $0x360] sm:$0xff]
    %v250 = vld [vmem:[#allocation5 + $0x368] sm:$0xff]
    %v251 = vld [vmem:[#allocation5 + $0x370] sm:$0xff]
    %v252 = vld [vmem:[#allocation5 + $0x378] sm:$0xff]
    %v253 = vld [vmem:[#allocation5 + $0x380] sm:$0xff]
    %v254 = vld [vmem:[#allocation5 + $0x388] sm:$0xff]
    %v255 = vld [vmem:[#allocation5 + $0x390] sm:$0xff]
    %v256 = vld [vmem:[#allocation5 + $0x398] sm:$0xff]
    %v257 = vld [vmem:[#allocation5 + $0x3a0] sm:$0xff]
    %v258 = vld [vmem:[#allocation5 + $0x3a8] sm:$0xff]
    %v259 = vld [vmem:[#allocation5 + $0x3b0] sm:$0xff]
    %v260 = vld [vmem:[#allocation5 + $0x3b8] sm:$0xff]
    %v261 = vld [vmem:[#allocation5 + $0x3c0] sm:$0xff]
    %v262 = vld [vmem:[#allocation5 + $0x3c8] sm:$0xff]
    %v263 = vld [vmem:[#allocation5 + $0x3d0] sm:$0xff]
    %v264 = vld [vmem:[#allocation5 + $0x3d8] sm:$0xff]
    %v265 = vld [vmem:[#allocation5 + $0x3e0] sm:$0xff]
    %v266 = vld [vmem:[#allocation5 + $0x3e8] sm:$0xff]
    %v267 = vld [vmem:[#allocation5 + $0x3f0] sm:$0xff]
    %v268 = vld [vmem:[#allocation5 + $0x3f8] sm:$0xff]
    %v269 = vld [vmem:[#allocation5 + $0x400] sm:$0xff]
    %v270 = vld [vmem:[#allocation5 + $0x408] sm:$0xff]
    %v271 = vld [vmem:[#allocation5 + $0x410] sm:$0xff]
    %v272 = vld [vmem:[#allocation5 + $0x418] sm:$0xff]
    %v273 = vld [vmem:[#allocation5 + $0x420] sm:$0xff]
    %v274 = vld [vmem:[#allocation5 + $0x428] sm:$0xff]
    %v275 = vld [vmem:[#allocation5 + $0x430] sm:$0xff]
    %v276 = vld [vmem:[#allocation5 + $0x438] sm:$0xff]
    %v277 = vld [vmem:[#allocation5 + $0x440] sm:$0xff]
    %v278 = vld [vmem:[#allocation5 + $0x448] sm:$0xff]
    %v279 = vld [vmem:[#allocation5 + $0x450] sm:$0xff]
    %v280 = vld [vmem:[#allocation5 + $0x458] sm:$0xff]
    %v281 = vld [vmem:[#allocation5 + $0x460] sm:$0xff]
    %v282 = vld [vmem:[#allocation5 + $0x468] sm:$0xff]
    %v283 = vld [vmem:[#allocation5 + $0x470] sm:$0xff]
    %v284 = vld [vmem:[#allocation5 + $0x478] sm:$0xff]
    %v285 = vld [vmem:[#allocation5 + $0x480] sm:$0xff]
    %v286 = vld [vmem:[#allocation5 + $0x488] sm:$0xff]
    %v287 = vld [vmem:[#allocation5 + $0x490] sm:$0xff]
    %v288 = vld [vmem:[#allocation5 + $0x498] sm:$0xff]
    %v289 = vld [vmem:[#allocation5 + $0x4a0] sm:$0xff]
    %v290 = vld [vmem:[#allocation5 + $0x4a8] sm:$0xff]
    %v291 = vld [vmem:[#allocation5 + $0x4b0] sm:$0xff]
    %v292 = vld [vmem:[#allocation5 + $0x4b8] sm:$0xff]
    %v293 = vld [vmem:[#allocation5 + $0x4c0] sm:$0xff]
    %v294 = vld [vmem:[#allocation5 + $0x4c8] sm:$0xff]
    %v295 = vld [vmem:[#allocation5 + $0x4d0] sm:$0xff]
    %v296 = vld [vmem:[#allocation5 + $0x4d8] sm:$0xff]
    %v297 = vld [vmem:[#allocation5 + $0x4e0] sm:$0xff]
    %v298 = vld [vmem:[#allocation5 + $0x4e8] sm:$0xff]
    %v299 = vld [vmem:[#allocation5 + $0x4f0] sm:$0xff]
    %v300 = vld [vmem:[#allocation5 + $0x4f8] sm:$0xff]
    %v301 = vld [vmem:[#allocation5 + $0x500] sm:$0xff]
    %v302 = vld [vmem:[#allocation5 + $0x508] sm:$0xff]
    %v303 = vld [vmem:[#allocation5 + $0x510] sm:$0xff]
    %v304 = vld [vmem:[#allocation5 + $0x518] sm:$0xff]
    %v305 = vld [vmem:[#allocation5 + $0x520] sm:$0xff]
    %v306 = vld [vmem:[#allocation5 + $0x528] sm:$0xff]
    %v307 = vld [vmem:[#allocation5 + $0x530] sm:$0xff]
    %v308 = vld [vmem:[#allocation5 + $0x538] sm:$0xff]
    %v309 = vld [vmem:[#allocation5 + $0x540] sm:$0xff]
    %v310 = vld [vmem:[#allocation5 + $0x548] sm:$0xff]
    %v311 = vld [vmem:[#allocation5 + $0x550] sm:$0xff]
    %v312 = vld [vmem:[#allocation5 + $0x558] sm:$0xff]
    %v313 = vld [vmem:[#allocation5 + $0x560] sm:$0xff]
    %v314 = vld [vmem:[#allocation5 + $0x568] sm:$0xff]
    %v315 = vld [vmem:[#allocation5 + $0x570] sm:$0xff]
    %v316 = vld [vmem:[#allocation5 + $0x578] sm:$0xff]
    %v317 = vld [vmem:[#allocation5 + $0x580] sm:$0xff]
    %v318 = vld [vmem:[#allocation5 + $0x588] sm:$0xff]
    %v319 = vld [vmem:[#allocation5 + $0x590] sm:$0xff]
    %v320 = vld [vmem:[#allocation5 + $0x598] sm:$0xff]
    %v321 = vld [vmem:[#allocation5 + $0x5a0] sm:$0xff]
    %v322 = vld [vmem:[#allocation5 + $0x5a8] sm:$0xff]
    %v323 = vld [vmem:[#allocation5 + $0x5b0] sm:$0xff]
    %v324 = vld [vmem:[#allocation5 + $0x5b8] sm:$0xff]
    %v325 = vld [vmem:[#allocation5 + $0x5c0] sm:$0xff]
    %v326 = vld [vmem:[#allocation5 + $0x5c8] sm:$0xff]
    %v327 = vld [vmem:[#allocation5 + $0x5d0] sm:$0xff]
    %v328 = vld [vmem:[#allocation5 + $0x5d8] sm:$0xff]
    %v329 = vld [vmem:[#allocation5 + $0x5e0] sm:$0xff]
    %v330 = vld [vmem:[#allocation5 + $0x5e8] sm:$0xff]
    %v331 = vld [vmem:[#allocation5 + $0x5f0] sm:$0xff]
    %v332 = vld [vmem:[#allocation5 + $0x5f8] sm:$0xff]
    %v333 = vld [vmem:[#allocation5 + $0x600] sm:$0xff]
    %v334 = vld [vmem:[#allocation5 + $0x608] sm:$0xff]
    %v335 = vld [vmem:[#allocation5 + $0x610] sm:$0xff]
    %v336 = vld [vmem:[#allocation5 + $0x618] sm:$0xff]
    %v337 = vld [vmem:[#allocation5 + $0x620] sm:$0xff]
    %v338 = vld [vmem:[#allocation5 + $0x628] sm:$0xff]
    %v339 = vld [vmem:[#allocation5 + $0x630] sm:$0xff]
    %v340 = vld [vmem:[#allocation5 + $0x638] sm:$0xff]
    %v341 = vld [vmem:[#allocation5 + $0x640] sm:$0xff]
    %v342 = vld [vmem:[#allocation5 + $0x648] sm:$0xff]
    %v343 = vld [vmem:[#allocation5 + $0x650] sm:$0xff]
    %v344 = vld [vmem:[#allocation5 + $0x658] sm:$0xff]
    %v345 = vld [vmem:[#allocation5 + $0x660] sm:$0xff]
    %v346 = vld [vmem:[#allocation5 + $0x668] sm:$0xff]
    %v347 = vld [vmem:[#allocation5 + $0x670] sm:$0xff]
    %v348 = vld [vmem:[#allocation5 + $0x678] sm:$0xff]
    %v349 = vld [vmem:[#allocation5 + $0x680] sm:$0xff]
    %v350 = vld [vmem:[#allocation5 + $0x688] sm:$0xff]
    %v351 = vld [vmem:[#allocation5 + $0x690] sm:$0xff]
    %v352 = vld [vmem:[#allocation5 + $0x698] sm:$0xff]
    %v353 = vld [vmem:[#allocation5 + $0x6a0] sm:$0xff]
    %v354 = vld [vmem:[#allocation5 + $0x6a8] sm:$0xff]
    %v355 = vld [vmem:[#allocation5 + $0x6b0] sm:$0xff]
    %v356 = vld [vmem:[#allocation5 + $0x6b8] sm:$0xff]
    %v357 = vld [vmem:[#allocation5 + $0x6c0] sm:$0xff]
    %v358 = vld [vmem:[#allocation5 + $0x6c8] sm:$0xff]
    %v359 = vld [vmem:[#allocation5 + $0x6d0] sm:$0xff]
    %v360 = vld [vmem:[#allocation5 + $0x6d8] sm:$0xff]
    %v361 = vld [vmem:[#allocation5 + $0x6e0] sm:$0xff]
    %v362 = vld [vmem:[#allocation5 + $0x6e8] sm:$0xff]
    %v363 = vld [vmem:[#allocation5 + $0x6f0] sm:$0xff]
    %v364 = vld [vmem:[#allocation5 + $0x6f8] sm:$0xff]
    %v365 = vld [vmem:[#allocation5 + $0x700] sm:$0xff]
    %v366 = vld [vmem:[#allocation5 + $0x708] sm:$0xff]
    %v367 = vld [vmem:[#allocation5 + $0x710] sm:$0xff]
    %v368 = vld [vmem:[#allocation5 + $0x718] sm:$0xff]
    %v369 = vld [vmem:[#allocation5 + $0x720] sm:$0xff]
    %v370 = vld [vmem:[#allocation5 + $0x728] sm:$0xff]
    %v371 = vld [vmem:[#allocation5 + $0x730] sm:$0xff]
    %v372 = vld [vmem:[#allocation5 + $0x738] sm:$0xff]
    %v373 = vld [vmem:[#allocation5 + $0x740] sm:$0xff]
    %v374 = vld [vmem:[#allocation5 + $0x748] sm:$0xff]
    %v375 = vld [vmem:[#allocation5 + $0x750] sm:$0xff]
    %v376 = vld [vmem:[#allocation5 + $0x758] sm:$0xff]
    %v377 = vld [vmem:[#allocation5 + $0x760] sm:$0xff]
    %v378 = vld [vmem:[#allocation5 + $0x768] sm:$0xff]
    %v379 = vld [vmem:[#allocation5 + $0x770] sm:$0xff]
    %v380 = vld [vmem:[#allocation5 + $0x778] sm:$0xff]
    %v381 = vld [vmem:[#allocation5 + $0x780] sm:$0xff]
    %v382 = vld [vmem:[#allocation5 + $0x788] sm:$0xff]
    %v383 = vld [vmem:[#allocation5 + $0x790] sm:$0xff]
    %v384 = vld [vmem:[#allocation5 + $0x798] sm:$0xff]
    %v385 = vld [vmem:[#allocation5 + $0x7a0] sm:$0xff]
    %v386 = vld [vmem:[#allocation5 + $0x7a8] sm:$0xff]
    %v387 = vld [vmem:[#allocation5 + $0x7b0] sm:$0xff]
    %v388 = vld [vmem:[#allocation5 + $0x7b8] sm:$0xff]
    %v389 = vld [vmem:[#allocation5 + $0x7c0] sm:$0xff]
    %v390 = vld [vmem:[#allocation5 + $0x7c8] sm:$0xff]
    %v391 = vld [vmem:[#allocation5 + $0x7d0] sm:$0xff]
    %v392 = vld [vmem:[#allocation5 + $0x7d8] sm:$0xff]
    %v393 = vld [vmem:[#allocation5 + $0x7e0] sm:$0xff]
    %v394 = vld [vmem:[#allocation5 + $0x7e8] sm:$0xff]
    %v395 = vld [vmem:[#allocation5 + $0x7f0] sm:$0xff]
    %v396 = vld [vmem:[#allocation5 + $0x7f8] sm:$0xff]
    %v397 = vld [vmem:[#allocation5 + $0x800] sm:$0xff]
    %v398 = vld [vmem:[#allocation5 + $0x808] sm:$0xff]
    %v399 = vld [vmem:[#allocation5 + $0x810] sm:$0xff]
    %v400 = vld [vmem:[#allocation5 + $0x818] sm:$0xff]
    %v401 = vld [vmem:[#allocation5 + $0x820] sm:$0xff]
    %v402 = vld [vmem:[#allocation5 + $0x828] sm:$0xff]
    %v403 = vld [vmem:[#allocation5 + $0x830] sm:$0xff]
    %v404 = vld [vmem:[#allocation5 + $0x838] sm:$0xff]
    %v405 = vld [vmem:[#allocation5 + $0x840] sm:$0xff]
    %v406 = vld [vmem:[#allocation5 + $0x848] sm:$0xff]
    %v407 = vld [vmem:[#allocation5 + $0x850] sm:$0xff]
    %v408 = vld [vmem:[#allocation5 + $0x858] sm:$0xff]
    %v409 = vld [vmem:[#allocation5 + $0x860] sm:$0xff]
    %v410 = vld [vmem:[#allocation5 + $0x868] sm:$0xff]
    %v411 = vld [vmem:[#allocation5 + $0x870] sm:$0xff]
    %v412 = vld [vmem:[#allocation5 + $0x878] sm:$0xff]
    %v413 = vld [vmem:[#allocation5 + $0x880] sm:$0xff]
    %v414 = vld [vmem:[#allocation5 + $0x888] sm:$0xff]
    %v415 = vld [vmem:[#allocation5 + $0x890] sm:$0xff]
    %v416 = vld [vmem:[#allocation5 + $0x898] sm:$0xff]
    %v417 = vld [vmem:[#allocation5 + $0x8a0] sm:$0xff]
    %v418 = vld [vmem:[#allocation5 + $0x8a8] sm:$0xff]
    %v419 = vld [vmem:[#allocation5 + $0x8b0] sm:$0xff]
    %v420 = vld [vmem:[#allocation5 + $0x8b8] sm:$0xff]
    %v421 = vld [vmem:[#allocation5 + $0x8c0] sm:$0xff]
    %v422 = vld [vmem:[#allocation5 + $0x8c8] sm:$0xff]
    %v423 = vld [vmem:[#allocation5 + $0x8d0] sm:$0xff]
    %v424 = vld [vmem:[#allocation5 + $0x8d8] sm:$0xff]
    %v425 = vld [vmem:[#allocation5 + $0x8e0] sm:$0xff]
    %v426 = vld [vmem:[#allocation5 + $0x8e8] sm:$0xff]
    %v427 = vld [vmem:[#allocation5 + $0x8f0] sm:$0xff]
    %v428 = vld [vmem:[#allocation5 + $0x8f8] sm:$0xff]
    %v429 = vld [vmem:[#allocation5 + $0x900] sm:$0xff]
    %v430 = vld [vmem:[#allocation5 + $0x908] sm:$0xff]
    %v431 = vld [vmem:[#allocation5 + $0x910] sm:$0xff]
    %v432 = vld [vmem:[#allocation5 + $0x918] sm:$0xff]
    %v433 = vld [vmem:[#allocation5 + $0x920] sm:$0xff]
    %v434 = vld [vmem:[#allocation5 + $0x928] sm:$0xff]
    %v435 = vld [vmem:[#allocation5 + $0x930] sm:$0xff]
    %v436 = vld [vmem:[#allocation5 + $0x938] sm:$0xff]
    %v437 = vld [vmem:[#allocation5 + $0x940] sm:$0xff]
    %v438 = vld [vmem:[#allocation5 + $0x948] sm:$0xff]
    %v439 = vld [vmem:[#allocation5 + $0x950] sm:$0xff]
    %v440 = vld [vmem:[#allocation5 + $0x958] sm:$0xff]
    %v441 = vld [vmem:[#allocation5 + $0x960] sm:$0xff]
    %v442 = vld [vmem:[#allocation5 + $0x968] sm:$0xff]
    %v443 = vld [vmem:[#allocation5 + $0x970] sm:$0xff]
    %v444 = vld [vmem:[#allocation5 + $0x978] sm:$0xff]
    %v445 = vld [vmem:[#allocation5 + $0x980] sm:$0xff]
    %v446 = vld [vmem:[#allocation5 + $0x988] sm:$0xff]
    %v447 = vld [vmem:[#allocation5 + $0x990] sm:$0xff]
    %v448 = vld [vmem:[#allocation5 + $0x998] sm:$0xff]
    %v449 = vld [vmem:[#allocation5 + $0x9a0] sm:$0xff]
    %v450 = vld [vmem:[#allocation5 + $0x9a8] sm:$0xff]
    %v451 = vld [vmem:[#allocation5 + $0x9b0] sm:$0xff]
    %v452 = vld [vmem:[#allocation5 + $0x9b8] sm:$0xff]
    %v453 = vld [vmem:[#allocation5 + $0x9c0] sm:$0xff]
    %v454 = vld [vmem:[#allocation5 + $0x9c8] sm:$0xff]
    %v455 = vld [vmem:[#allocation5 + $0x9d0] sm:$0xff]
    %v456 = vld [vmem:[#allocation5 + $0x9d8] sm:$0xff]
    %v457 = vld [vmem:[#allocation5 + $0x9e0] sm:$0xff]
    %v458 = vld [vmem:[#allocation5 + $0x9e8] sm:$0xff]
    %v459 = vld [vmem:[#allocation5 + $0x9f0] sm:$0xff]
    %v460 = vld [vmem:[#allocation5 + $0x9f8] sm:$0xff]
    %v461 = vld [vmem:[#allocation5 + $0xa00] sm:$0xff]
    %v462 = vld [vmem:[#allocation5 + $0xa08] sm:$0xff]
    %v463 = vld [vmem:[#allocation5 + $0xa10] sm:$0xff]
    %v464 = vld [vmem:[#allocation5 + $0xa18] sm:$0xff]
    %v465 = vld [vmem:[#allocation5 + $0xa20] sm:$0xff]
    %v466 = vld [vmem:[#allocation5 + $0xa28] sm:$0xff]
    %v467 = vld [vmem:[#allocation5 + $0xa30] sm:$0xff]
    %v468 = vld [vmem:[#allocation5 + $0xa38] sm:$0xff]
    %v469 = vld [vmem:[#allocation5 + $0xa40] sm:$0xff]
    %v470 = vld [vmem:[#allocation5 + $0xa48] sm:$0xff]
    %v471 = vld [vmem:[#allocation5 + $0xa50] sm:$0xff]
    %v472 = vld [vmem:[#allocation5 + $0xa58] sm:$0xff]
    %v473 = vld [vmem:[#allocation5 + $0xa60] sm:$0xff]
    %v474 = vld [vmem:[#allocation5 + $0xa68] sm:$0xff]
    %v475 = vld [vmem:[#allocation5 + $0xa70] sm:$0xff]
    %v476 = vld [vmem:[#allocation5 + $0xa78] sm:$0xff]
    %v477 = vld [vmem:[#allocation5 + $0xa80] sm:$0xff]
    %v478 = vld [vmem:[#allocation5 + $0xa88] sm:$0xff]
    %v479 = vld [vmem:[#allocation5 + $0xa90] sm:$0xff]
    %v480 = vld [vmem:[#allocation5 + $0xa98] sm:$0xff]
    %v481 = vld [vmem:[#allocation5 + $0xaa0] sm:$0xff]
    %v482 = vld [vmem:[#allocation5 + $0xaa8] sm:$0xff]
    %v483 = vld [vmem:[#allocation5 + $0xab0] sm:$0xff]
    %v484 = vld [vmem:[#allocation5 + $0xab8] sm:$0xff]
    %v485 = vld [vmem:[#allocation5 + $0xac0] sm:$0xff]
    %v486 = vld [vmem:[#allocation5 + $0xac8] sm:$0xff]
    %v487 = vld [vmem:[#allocation5 + $0xad0] sm:$0xff]
    %v488 = vld [vmem:[#allocation5 + $0xad8] sm:$0xff]
    %v489 = vld [vmem:[#allocation5 + $0xae0] sm:$0xff]
    %v490 = vld [vmem:[#allocation5 + $0xae8] sm:$0xff]
    %v491 = vld [vmem:[#allocation5 + $0xaf0] sm:$0xff]
    %v492 = vld [vmem:[#allocation5 + $0xaf8] sm:$0xff]
    %v493 = vld [vmem:[#allocation5 + $0xb00] sm:$0xff]
    %v494 = vld [vmem:[#allocation5 + $0xb08] sm:$0xff]
    %v495 = vld [vmem:[#allocation5 + $0xb10] sm:$0xff]
    %v496 = vld [vmem:[#allocation5 + $0xb18] sm:$0xff]
    %v497 = vld [vmem:[#allocation5 + $0xb20] sm:$0xff]
    %v498 = vld [vmem:[#allocation5 + $0xb28] sm:$0xff]
    %v499 = vld [vmem:[#allocation5 + $0xb30] sm:$0xff]
    %v500 = vld [vmem:[#allocation5 + $0xb38] sm:$0xff]
    %v501 = vld [vmem:[#allocation5 + $0xb40] sm:$0xff]
    %v502 = vld [vmem:[#allocation5 + $0xb48] sm:$0xff]
    %v503 = vld [vmem:[#allocation5 + $0xb50] sm:$0xff]
    %v504 = vld [vmem:[#allocation5 + $0xb58] sm:$0xff]
    %v505 = vld [vmem:[#allocation5 + $0xb60] sm:$0xff]
    %v506 = vld [vmem:[#allocation5 + $0xb68] sm:$0xff]
    %v507 = vld [vmem:[#allocation5 + $0xb70] sm:$0xff]
    %v508 = vld [vmem:[#allocation5 + $0xb78] sm:$0xff]
    %v509 = vld [vmem:[#allocation5 + $0xb80] sm:$0xff]
    %v510 = vld [vmem:[#allocation5 + $0xb88] sm:$0xff]
    %v511 = vld [vmem:[#allocation5 + $0xb90] sm:$0xff]
    %v512 = vld [vmem:[#allocation5 + $0xb98] sm:$0xff]
    %v513 = vld [vmem:[#allocation5 + $0xba0] sm:$0xff]
    %v514 = vld [vmem:[#allocation5 + $0xba8] sm:$0xff]
    %v515 = vld [vmem:[#allocation5 + $0xbb0] sm:$0xff]
    %v516 = vld [vmem:[#allocation5 + $0xbb8] sm:$0xff]
    %v517 = vld [vmem:[#allocation5 + $0xbc0] sm:$0xff]
    %v518 = vld [vmem:[#allocation5 + $0xbc8] sm:$0xff]
    %v519 = vld [vmem:[#allocation5 + $0xbd0] sm:$0xff]
    %v520 = vld [vmem:[#allocation5 + $0xbd8] sm:$0xff]
    %v521 = vld [vmem:[#allocation5 + $0xbe0] sm:$0xff]
    %v522 = vld [vmem:[#allocation5 + $0xbe8] sm:$0xff]
    %v523 = vld [vmem:[#allocation5 + $0xbf0] sm:$0xff]
    %v524 = vld [vmem:[#allocation5 + $0xbf8] sm:$0xff]
    %v525 = vld [vmem:[#allocation5 + $0xc00] sm:$0xff]
    %v526 = vld [vmem:[#allocation5 + $0xc08] sm:$0xff]
    %v527 = vld [vmem:[#allocation5 + $0xc10] sm:$0xff]
    %v528 = vld [vmem:[#allocation5 + $0xc18] sm:$0xff]
    %v529 = vld [vmem:[#allocation5 + $0xc20] sm:$0xff]
    %v530 = vld [vmem:[#allocation5 + $0xc28] sm:$0xff]
    %v531 = vld [vmem:[#allocation5 + $0xc30] sm:$0xff]
    %v532 = vld [vmem:[#allocation5 + $0xc38] sm:$0xff]
    %v533 = vld [vmem:[#allocation5 + $0xc40] sm:$0xff]
    %v534 = vld [vmem:[#allocation5 + $0xc48] sm:$0xff]
    %v535 = vld [vmem:[#allocation5 + $0xc50] sm:$0xff]
    %v536 = vld [vmem:[#allocation5 + $0xc58] sm:$0xff]
    %v537 = vld [vmem:[#allocation5 + $0xc60] sm:$0xff]
    %v538 = vld [vmem:[#allocation5 + $0xc68] sm:$0xff]
    %v539 = vld [vmem:[#allocation5 + $0xc70] sm:$0xff]
    %v540 = vld [vmem:[#allocation5 + $0xc78] sm:$0xff]
    %v541 = vld [vmem:[#allocation5 + $0xc80] sm:$0xff]
    %v542 = vld [vmem:[#allocation5 + $0xc88] sm:$0xff]
    %v543 = vld [vmem:[#allocation5 + $0xc90] sm:$0xff]
    %v544 = vld [vmem:[#allocation5 + $0xc98] sm:$0xff]
    %v545 = vld [vmem:[#allocation5 + $0xca0] sm:$0xff]
    %v546 = vld [vmem:[#allocation5 + $0xca8] sm:$0xff]
    %v547 = vld [vmem:[#allocation5 + $0xcb0] sm:$0xff]
    %v548 = vld [vmem:[#allocation5 + $0xcb8] sm:$0xff]
    %v549 = vld [vmem:[#allocation5 + $0xcc0] sm:$0xff]
    %v550 = vld [vmem:[#allocation5 + $0xcc8] sm:$0xff]
    %v551 = vld [vmem:[#allocation5 + $0xcd0] sm:$0xff]
    %v552 = vld [vmem:[#allocation5 + $0xcd8] sm:$0xff]
    %v553 = vld [vmem:[#allocation5 + $0xce0] sm:$0xff]
    %v554 = vld [vmem:[#allocation5 + $0xce8] sm:$0xff]
    %v555 = vld [vmem:[#allocation5 + $0xcf0] sm:$0xff]
    %v556 = vld [vmem:[#allocation5 + $0xcf8] sm:$0xff]
    %v557 = vld [vmem:[#allocation5 + $0xd00] sm:$0xff]
    %v558 = vld [vmem:[#allocation5 + $0xd08] sm:$0xff]
    %v559 = vld [vmem:[#allocation5 + $0xd10] sm:$0xff]
    %v560 = vld [vmem:[#allocation5 + $0xd18] sm:$0xff]
    %v561 = vld [vmem:[#allocation5 + $0xd20] sm:$0xff]
    %v562 = vld [vmem:[#allocation5 + $0xd28] sm:$0xff]
    %v563 = vld [vmem:[#allocation5 + $0xd30] sm:$0xff]
    %v564 = vld [vmem:[#allocation5 + $0xd38] sm:$0xff]
    %v565 = vld [vmem:[#allocation5 + $0xd40] sm:$0xff]
    %v566 = vld [vmem:[#allocation5 + $0xd48] sm:$0xff]
    %v567 = vld [vmem:[#allocation5 + $0xd50] sm:$0xff]
    %v568 = vld [vmem:[#allocation5 + $0xd58] sm:$0xff]
    %v569 = vld [vmem:[#allocation5 + $0xd60] sm:$0xff]
    %v570 = vld [vmem:[#allocation5 + $0xd68] sm:$0xff]
    %v571 = vld [vmem:[#allocation5 + $0xd70] sm:$0xff]
    %v572 = vld [vmem:[#allocation5 + $0xd78] sm:$0xff]
    %v573 = vld [vmem:[#allocation5 + $0xd80] sm:$0xff]
    %v574 = vld [vmem:[#allocation5 + $0xd88] sm:$0xff]
    %v575 = vld [vmem:[#allocation5 + $0xd90] sm:$0xff]
    %v576 = vld [vmem:[#allocation5 + $0xd98] sm:$0xff]
    %v577 = vld [vmem:[#allocation5 + $0xda0] sm:$0xff]
    %v578 = vld [vmem:[#allocation5 + $0xda8] sm:$0xff]
    %v579 = vld [vmem:[#allocation5 + $0xdb0] sm:$0xff]
    %v580 = vld [vmem:[#allocation5 + $0xdb8] sm:$0xff]
    %v581 = vld [vmem:[#allocation5 + $0xdc0] sm:$0xff]
    %v582 = vld [vmem:[#allocation5 + $0xdc8] sm:$0xff]
    %v583 = vld [vmem:[#allocation5 + $0xdd0] sm:$0xff]
    %v584 = vld [vmem:[#allocation5 + $0xdd8] sm:$0xff]
    %v585 = vld [vmem:[#allocation5 + $0xde0] sm:$0xff]
    %v586 = vld [vmem:[#allocation5 + $0xde8] sm:$0xff]
    %v587 = vld [vmem:[#allocation5 + $0xdf0] sm:$0xff]
    %v588 = vld [vmem:[#allocation5 + $0xdf8] sm:$0xff]
    %v589 = vld [vmem:[#allocation5 + $0xe00] sm:$0xff]
    %v590 = vld [vmem:[#allocation5 + $0xe08] sm:$0xff]
    %v591 = vld [vmem:[#allocation5 + $0xe10] sm:$0xff]
    %v592 = vld [vmem:[#allocation5 + $0xe18] sm:$0xff]
    %v593 = vld [vmem:[#allocation5 + $0xe20] sm:$0xff]
    %v594 = vld [vmem:[#allocation5 + $0xe28] sm:$0xff]
    %v595 = vld [vmem:[#allocation5 + $0xe30] sm:$0xff]
    %v596 = vld [vmem:[#allocation5 + $0xe38] sm:$0xff]
    %v597 = vld [vmem:[#allocation5 + $0xe40] sm:$0xff]
    %v598 = vld [vmem:[#allocation5 + $0xe48] sm:$0xff]
    %v599 = vld [vmem:[#allocation5 + $0xe50] sm:$0xff]
    %v600 = vld [vmem:[#allocation5 + $0xe58] sm:$0xff]
    %v601 = vld [vmem:[#allocation5 + $0xe60] sm:$0xff]
    %v602 = vld [vmem:[#allocation5 + $0xe68] sm:$0xff]
    %v603 = vld [vmem:[#allocation5 + $0xe70] sm:$0xff]
    %v604 = vld [vmem:[#allocation5 + $0xe78] sm:$0xff]
    %v605 = vld [vmem:[#allocation5 + $0xe80] sm:$0xff]
    %v606 = vld [vmem:[#allocation5 + $0xe88] sm:$0xff]
    %v607 = vld [vmem:[#allocation5 + $0xe90] sm:$0xff]
    %v608 = vld [vmem:[#allocation5 + $0xe98] sm:$0xff]
    %v609 = vld [vmem:[#allocation5 + $0xea0] sm:$0xff]
    %v610 = vld [vmem:[#allocation5 + $0xea8] sm:$0xff]
    %v611 = vld [vmem:[#allocation5 + $0xeb0] sm:$0xff]
    %v612 = vld [vmem:[#allocation5 + $0xeb8] sm:$0xff]
    %v613 = vld [vmem:[#allocation5 + $0xec0] sm:$0xff]
    %v614 = vld [vmem:[#allocation5 + $0xec8] sm:$0xff]
    %v615 = vld [vmem:[#allocation5 + $0xed0] sm:$0xff]
    %v616 = vld [vmem:[#allocation5 + $0xed8] sm:$0xff]
    %v617 = vld [vmem:[#allocation5 + $0xee0] sm:$0xff]
    %v618 = vld [vmem:[#allocation5 + $0xee8] sm:$0xff]
    %v619 = vld [vmem:[#allocation5 + $0xef0] sm:$0xff]
    %v620 = vld [vmem:[#allocation5 + $0xef8] sm:$0xff]
    %v621 = vld [vmem:[#allocation7] sm:$0x3f]
    %v623 = vlaneseq
    %v624 = vshrl.u32 %v623, 7
    %v625 = vsub.s32 0, %v624
    %v626 = vrot.slane %v621, %v625
    %v627 = vlaneseq
    %v628 = vshrl.u32 %v627, 7
    %v629 = vsub.s32 1, %v628
    %v630 = vrot.slane %v621, %v629
    %v631 = vlaneseq
    %v632 = vshrl.u32 %v631, 7
    %v633 = vsub.s32 2, %v632
    %v634 = vrot.slane %v621, %v633
    %v635 = vlaneseq
    %v636 = vshrl.u32 %v635, 7
    %v637 = vsub.s32 3, %v636
    %v638 = vrot.slane %v621, %v637
    %v639 = vlaneseq
    %v640 = vshrl.u32 %v639, 7
    %v641 = vsub.s32 4, %v640
    %v642 = vrot.slane %v621, %v641
    %v643 = vlaneseq
    %v644 = vshrl.u32 %v643, 7
    %v645 = vsub.s32 5, %v644
    %v646 = vrot.slane %v621, %v645
    %v1133 = vunpack.c.l.b16 %v141
    %v1134 = vunpack.c.h.b16 %v141
    %v1135 = vunpack.c.l.b16 %v142
    %v1136 = vunpack.c.h.b16 %v142
    %v1137 = vunpack.c.l.b16 %v143
    %v1138 = vunpack.c.h.b16 %v143
    %v1139 = vunpack.c.l.b16 %v144
    %v1140 = vunpack.c.h.b16 %v144
    %v1141 = vunpack.c.l.b16 %v145
    %v1142 = vunpack.c.h.b16 %v145
    %v1143 = vunpack.c.l.b16 %v146
    %v1144 = vunpack.c.h.b16 %v146
    %v1145 = vunpack.c.l.b16 %v147
    %v1146 = vunpack.c.h.b16 %v147
    %v1147 = vunpack.c.l.b16 %v148
    %v1148 = vunpack.c.h.b16 %v148
    %v1149 = vunpack.c.l.b16 %v149
    %v1150 = vunpack.c.h.b16 %v149
    %v1151 = vunpack.c.l.b16 %v150
    %v1152 = vunpack.c.h.b16 %v150
    %v1153 = vunpack.c.l.b16 %v151
    %v1154 = vunpack.c.h.b16 %v151
    %v1155 = vunpack.c.l.b16 %v152
    %v1156 = vunpack.c.h.b16 %v152
    %v1157 = vunpack.c.l.b16 %v153
    %v1158 = vunpack.c.h.b16 %v153
    %v1159 = vunpack.c.l.b16 %v154
    %v1160 = vunpack.c.h.b16 %v154
    %v1161 = vunpack.c.l.b16 %v155
    %v1162 = vunpack.c.h.b16 %v155
    %v1163 = vunpack.c.l.b16 %v156
    %v1164 = vunpack.c.h.b16 %v156
    %v1165 = vunpack.c.l.b16 %v157
    %v1166 = vunpack.c.h.b16 %v157
    %v1167 = vunpack.c.l.b16 %v158
    %v1168 = vunpack.c.h.b16 %v158
    %v1169 = vunpack.c.l.b16 %v159
    %v1170 = vunpack.c.h.b16 %v159
    %v1171 = vunpack.c.l.b16 %v160
    %v1172 = vunpack.c.h.b16 %v160
    %v1173 = vunpack.c.l.b16 %v161
    %v1174 = vunpack.c.h.b16 %v161
    %v1175 = vunpack.c.l.b16 %v162
    %v1176 = vunpack.c.h.b16 %v162
    %v1177 = vunpack.c.l.b16 %v163
    %v1178 = vunpack.c.h.b16 %v163
    %v1179 = vunpack.c.l.b16 %v164
    %v1180 = vunpack.c.h.b16 %v164
    %v1181 = vunpack.c.l.b16 %v165
    %v1182 = vunpack.c.h.b16 %v165
    %v1183 = vunpack.c.l.b16 %v166
    %v1184 = vunpack.c.h.b16 %v166
    %v1185 = vunpack.c.l.b16 %v167
    %v1186 = vunpack.c.h.b16 %v167
    %v1187 = vunpack.c.l.b16 %v168
    %v1188 = vunpack.c.h.b16 %v168
    %v1189 = vunpack.c.l.b16 %v169
    %v1190 = vunpack.c.h.b16 %v169
    %v1191 = vunpack.c.l.b16 %v170
    %v1192 = vunpack.c.h.b16 %v170
    %v1193 = vunpack.c.l.b16 %v171
    %v1194 = vunpack.c.h.b16 %v171
    %v1195 = vunpack.c.l.b16 %v172
    %v1196 = vunpack.c.h.b16 %v172
    %v1197 = vunpack.c.l.b16 %v173
    %v1198 = vunpack.c.h.b16 %v173
    %v1199 = vunpack.c.l.b16 %v174
    %v1200 = vunpack.c.h.b16 %v174
    %v1201 = vunpack.c.l.b16 %v175
    %v1202 = vunpack.c.h.b16 %v175
    %v1203 = vunpack.c.l.b16 %v176
    %v1204 = vunpack.c.h.b16 %v176
    %v1205 = vunpack.c.l.b16 %v177
    %v1206 = vunpack.c.h.b16 %v177
    %v1207 = vunpack.c.l.b16 %v178
    %v1208 = vunpack.c.h.b16 %v178
    %v1209 = vunpack.c.l.b16 %v179
    %v1210 = vunpack.c.h.b16 %v179
    %v1211 = vunpack.c.l.b16 %v180
    %v1212 = vunpack.c.h.b16 %v180
    %v1213 = vunpack.c.l.b16 %v181
    %v1214 = vunpack.c.h.b16 %v181
    %v1215 = vunpack.c.l.b16 %v182
    %v1216 = vunpack.c.h.b16 %v182
    %v1217 = vunpack.c.l.b16 %v183
    %v1218 = vunpack.c.h.b16 %v183
    %v1219 = vunpack.c.l.b16 %v184
    %v1220 = vunpack.c.h.b16 %v184
    %v1221 = vunpack.c.l.b16 %v185
    %v1222 = vunpack.c.h.b16 %v185
    %v1223 = vunpack.c.l.b16 %v186
    %v1224 = vunpack.c.h.b16 %v186
    %v1225 = vunpack.c.l.b16 %v187
    %v1226 = vunpack.c.h.b16 %v187
    %v1227 = vunpack.c.l.b16 %v188
    %v1228 = vunpack.c.h.b16 %v188
    %v1229 = vunpack.c.l.b16 %v189
    %v1230 = vunpack.c.h.b16 %v189
    %v1231 = vunpack.c.l.b16 %v190
    %v1232 = vunpack.c.h.b16 %v190
    %v1233 = vunpack.c.l.b16 %v191
    %v1234 = vunpack.c.h.b16 %v191
    %v1235 = vunpack.c.l.b16 %v192
    %v1236 = vunpack.c.h.b16 %v192
    %v1237 = vunpack.c.l.b16 %v193
    %v1238 = vunpack.c.h.b16 %v193
    %v1239 = vunpack.c.l.b16 %v194
    %v1240 = vunpack.c.h.b16 %v194
    %v1241 = vunpack.c.l.b16 %v195
    %v1242 = vunpack.c.h.b16 %v195
    %v1243 = vunpack.c.l.b16 %v196
    %v1244 = vunpack.c.h.b16 %v196
    %v1245 = vunpack.c.l.b16 %v197
    %v1246 = vunpack.c.h.b16 %v197
    %v1247 = vunpack.c.l.b16 %v198
    %v1248 = vunpack.c.h.b16 %v198
    %v1249 = vunpack.c.l.b16 %v199
    %v1250 = vunpack.c.h.b16 %v199
    %v1251 = vunpack.c.l.b16 %v200
    %v1252 = vunpack.c.h.b16 %v200
    %v1253 = vunpack.c.l.b16 %v201
    %v1254 = vunpack.c.h.b16 %v201
    %v1255 = vunpack.c.l.b16 %v202
    %v1256 = vunpack.c.h.b16 %v202
    %v1257 = vunpack.c.l.b16 %v203
    %v1258 = vunpack.c.h.b16 %v203
    %v1259 = vunpack.c.l.b16 %v204
    %v1260 = vunpack.c.h.b16 %v204
    %v1261 = vunpack.c.l.b16 %v205
    %v1262 = vunpack.c.h.b16 %v205
    %v1263 = vunpack.c.l.b16 %v206
    %v1264 = vunpack.c.h.b16 %v206
    %v1265 = vunpack.c.l.b16 %v207
    %v1266 = vunpack.c.h.b16 %v207
    %v1267 = vunpack.c.l.b16 %v208
    %v1268 = vunpack.c.h.b16 %v208
    %v1269 = vunpack.c.l.b16 %v209
    %v1270 = vunpack.c.h.b16 %v209
    %v1271 = vunpack.c.l.b16 %v210
    %v1272 = vunpack.c.h.b16 %v210
    %v1273 = vunpack.c.l.b16 %v211
    %v1274 = vunpack.c.h.b16 %v211
    %v1275 = vunpack.c.l.b16 %v212
    %v1276 = vunpack.c.h.b16 %v212
    %v1277 = vunpack.c.l.b16 %v213
    %v1278 = vunpack.c.h.b16 %v213
    %v1279 = vunpack.c.l.b16 %v214
    %v1280 = vunpack.c.h.b16 %v214
    %v1281 = vunpack.c.l.b16 %v215
    %v1282 = vunpack.c.h.b16 %v215
    %v1283 = vunpack.c.l.b16 %v216
    %v1284 = vunpack.c.h.b16 %v216
    %v1285 = vunpack.c.l.b16 %v217
    %v1286 = vunpack.c.h.b16 %v217
    %v1287 = vunpack.c.l.b16 %v218
    %v1288 = vunpack.c.h.b16 %v218
    %v1289 = vunpack.c.l.b16 %v219
    %v1290 = vunpack.c.h.b16 %v219
    %v1291 = vunpack.c.l.b16 %v220
    %v1292 = vunpack.c.h.b16 %v220
    %v1293 = vunpack.c.l.b16 %v221
    %v1294 = vunpack.c.h.b16 %v221
    %v1295 = vunpack.c.l.b16 %v222
    %v1296 = vunpack.c.h.b16 %v222
    %v1297 = vunpack.c.l.b16 %v223
    %v1298 = vunpack.c.h.b16 %v223
    %v1299 = vunpack.c.l.b16 %v224
    %v1300 = vunpack.c.h.b16 %v224
    %v1301 = vunpack.c.l.b16 %v225
    %v1302 = vunpack.c.h.b16 %v225
    %v1303 = vunpack.c.l.b16 %v226
    %v1304 = vunpack.c.h.b16 %v226
    %v1305 = vunpack.c.l.b16 %v227
    %v1306 = vunpack.c.h.b16 %v227
    %v1307 = vunpack.c.l.b16 %v228
    %v1308 = vunpack.c.h.b16 %v228
    %v1309 = vunpack.c.l.b16 %v229
    %v1310 = vunpack.c.h.b16 %v229
    %v1311 = vunpack.c.l.b16 %v230
    %v1312 = vunpack.c.h.b16 %v230
    %v1313 = vunpack.c.l.b16 %v231
    %v1314 = vunpack.c.h.b16 %v231
    %v1315 = vunpack.c.l.b16 %v232
    %v1316 = vunpack.c.h.b16 %v232
    %v1317 = vunpack.c.l.b16 %v233
    %v1318 = vunpack.c.h.b16 %v233
    %v1319 = vunpack.c.l.b16 %v234
    %v1320 = vunpack.c.h.b16 %v234
    %v1321 = vunpack.c.l.b16 %v235
    %v1322 = vunpack.c.h.b16 %v235
    %v1323 = vunpack.c.l.b16 %v236
    %v1324 = vunpack.c.h.b16 %v236
    %v1325 = vunpack.c.l.b16 %v237
    %v1326 = vunpack.c.h.b16 %v237
    %v1327 = vunpack.c.l.b16 %v238
    %v1328 = vunpack.c.h.b16 %v238
    %v1329 = vunpack.c.l.b16 %v239
    %v1330 = vunpack.c.h.b16 %v239
    %v1331 = vunpack.c.l.b16 %v240
    %v1332 = vunpack.c.h.b16 %v240
    %v1333 = vunpack.c.l.b16 %v241
    %v1334 = vunpack.c.h.b16 %v241
    %v1335 = vunpack.c.l.b16 %v242
    %v1336 = vunpack.c.h.b16 %v242
    %v1337 = vunpack.c.l.b16 %v243
    %v1338 = vunpack.c.h.b16 %v243
    %v1339 = vunpack.c.l.b16 %v244
    %v1340 = vunpack.c.h.b16 %v244
    %v1341 = vunpack.c.l.b16 %v245
    %v1342 = vunpack.c.h.b16 %v245
    %v1343 = vunpack.c.l.b16 %v246
    %v1344 = vunpack.c.h.b16 %v246
    %v1345 = vunpack.c.l.b16 %v247
    %v1346 = vunpack.c.h.b16 %v247
    %v1347 = vunpack.c.l.b16 %v248
    %v1348 = vunpack.c.h.b16 %v248
    %v1349 = vunpack.c.l.b16 %v249
    %v1350 = vunpack.c.h.b16 %v249
    %v1351 = vunpack.c.l.b16 %v250
    %v1352 = vunpack.c.h.b16 %v250
    %v1353 = vunpack.c.l.b16 %v251
    %v1354 = vunpack.c.h.b16 %v251
    %v1355 = vunpack.c.l.b16 %v252
    %v1356 = vunpack.c.h.b16 %v252
    %v1357 = vunpack.c.l.b16 %v253
    %v1358 = vunpack.c.h.b16 %v253
    %v1359 = vunpack.c.l.b16 %v254
    %v1360 = vunpack.c.h.b16 %v254
    %v1361 = vunpack.c.l.b16 %v255
    %v1362 = vunpack.c.h.b16 %v255
    %v1363 = vunpack.c.l.b16 %v256
    %v1364 = vunpack.c.h.b16 %v256
    %v1365 = vunpack.c.l.b16 %v257
    %v1366 = vunpack.c.h.b16 %v257
    %v1367 = vunpack.c.l.b16 %v258
    %v1368 = vunpack.c.h.b16 %v258
    %v1369 = vunpack.c.l.b16 %v259
    %v1370 = vunpack.c.h.b16 %v259
    %v1371 = vunpack.c.l.b16 %v260
    %v1372 = vunpack.c.h.b16 %v260
    %v1373 = vunpack.c.l.b16 %v261
    %v1374 = vunpack.c.h.b16 %v261
    %v1375 = vunpack.c.l.b16 %v262
    %v1376 = vunpack.c.h.b16 %v262
    %v1377 = vunpack.c.l.b16 %v263
    %v1378 = vunpack.c.h.b16 %v263
    %v1379 = vunpack.c.l.b16 %v264
    %v1380 = vunpack.c.h.b16 %v264
    %v1381 = vunpack.c.l.b16 %v265
    %v1382 = vunpack.c.h.b16 %v265
    %v1383 = vunpack.c.l.b16 %v266
    %v1384 = vunpack.c.h.b16 %v266
    %v1385 = vunpack.c.l.b16 %v267
    %v1386 = vunpack.c.h.b16 %v267
    %v1387 = vunpack.c.l.b16 %v268
    %v1388 = vunpack.c.h.b16 %v268
    %v1389 = vunpack.c.l.b16 %v269
    %v1390 = vunpack.c.h.b16 %v269
    %v1391 = vunpack.c.l.b16 %v270
    %v1392 = vunpack.c.h.b16 %v270
    %v1393 = vunpack.c.l.b16 %v271
    %v1394 = vunpack.c.h.b16 %v271
    %v1395 = vunpack.c.l.b16 %v272
    %v1396 = vunpack.c.h.b16 %v272
    %v1397 = vunpack.c.l.b16 %v273
    %v1398 = vunpack.c.h.b16 %v273
    %v1399 = vunpack.c.l.b16 %v274
    %v1400 = vunpack.c.h.b16 %v274
    %v1401 = vunpack.c.l.b16 %v275
    %v1402 = vunpack.c.h.b16 %v275
    %v1403 = vunpack.c.l.b16 %v276
    %v1404 = vunpack.c.h.b16 %v276
    %v1405 = vunpack.c.l.b16 %v277
    %v1406 = vunpack.c.h.b16 %v277
    %v1407 = vunpack.c.l.b16 %v278
    %v1408 = vunpack.c.h.b16 %v278
    %v1409 = vunpack.c.l.b16 %v279
    %v1410 = vunpack.c.h.b16 %v279
    %v1411 = vunpack.c.l.b16 %v280
    %v1412 = vunpack.c.h.b16 %v280
    %v1413 = vunpack.c.l.b16 %v281
    %v1414 = vunpack.c.h.b16 %v281
    %v1415 = vunpack.c.l.b16 %v282
    %v1416 = vunpack.c.h.b16 %v282
    %v1417 = vunpack.c.l.b16 %v283
    %v1418 = vunpack.c.h.b16 %v283
    %v1419 = vunpack.c.l.b16 %v284
    %v1420 = vunpack.c.h.b16 %v284
    %v1421 = vunpack.c.l.b16 %v285
    %v1422 = vunpack.c.h.b16 %v285
    %v1423 = vunpack.c.l.b16 %v286
    %v1424 = vunpack.c.h.b16 %v286
    %v1425 = vunpack.c.l.b16 %v287
    %v1426 = vunpack.c.h.b16 %v287
    %v1427 = vunpack.c.l.b16 %v288
    %v1428 = vunpack.c.h.b16 %v288
    %v1429 = vunpack.c.l.b16 %v289
    %v1430 = vunpack.c.h.b16 %v289
    %v1431 = vunpack.c.l.b16 %v290
    %v1432 = vunpack.c.h.b16 %v290
    %v1433 = vunpack.c.l.b16 %v291
    %v1434 = vunpack.c.h.b16 %v291
    %v1435 = vunpack.c.l.b16 %v292
    %v1436 = vunpack.c.h.b16 %v292
    %v1437 = vunpack.c.l.b16 %v293
    %v1438 = vunpack.c.h.b16 %v293
    %v1439 = vunpack.c.l.b16 %v294
    %v1440 = vunpack.c.h.b16 %v294
    %v1441 = vunpack.c.l.b16 %v295
    %v1442 = vunpack.c.h.b16 %v295
    %v1443 = vunpack.c.l.b16 %v296
    %v1444 = vunpack.c.h.b16 %v296
    %v1445 = vunpack.c.l.b16 %v297
    %v1446 = vunpack.c.h.b16 %v297
    %v1447 = vunpack.c.l.b16 %v298
    %v1448 = vunpack.c.h.b16 %v298
    %v1449 = vunpack.c.l.b16 %v299
    %v1450 = vunpack.c.h.b16 %v299
    %v1451 = vunpack.c.l.b16 %v300
    %v1452 = vunpack.c.h.b16 %v300
    %v1453 = vunpack.c.l.b16 %v301
    %v1454 = vunpack.c.h.b16 %v301
    %v1455 = vunpack.c.l.b16 %v302
    %v1456 = vunpack.c.h.b16 %v302
    %v1457 = vunpack.c.l.b16 %v303
    %v1458 = vunpack.c.h.b16 %v303
    %v1459 = vunpack.c.l.b16 %v304
    %v1460 = vunpack.c.h.b16 %v304
    %v1461 = vunpack.c.l.b16 %v305
    %v1462 = vunpack.c.h.b16 %v305
    %v1463 = vunpack.c.l.b16 %v306
    %v1464 = vunpack.c.h.b16 %v306
    %v1465 = vunpack.c.l.b16 %v307
    %v1466 = vunpack.c.h.b16 %v307
    %v1467 = vunpack.c.l.b16 %v308
    %v1468 = vunpack.c.h.b16 %v308
    %v1469 = vunpack.c.l.b16 %v309
    %v1470 = vunpack.c.h.b16 %v309
    %v1471 = vunpack.c.l.b16 %v310
    %v1472 = vunpack.c.h.b16 %v310
    %v1473 = vunpack.c.l.b16 %v311
    %v1474 = vunpack.c.h.b16 %v311
    %v1475 = vunpack.c.l.b16 %v312
    %v1476 = vunpack.c.h.b16 %v312
    %v1477 = vunpack.c.l.b16 %v313
    %v1478 = vunpack.c.h.b16 %v313
    %v1479 = vunpack.c.l.b16 %v314
    %v1480 = vunpack.c.h.b16 %v314
    %v1481 = vunpack.c.l.b16 %v315
    %v1482 = vunpack.c.h.b16 %v315
    %v1483 = vunpack.c.l.b16 %v316
    %v1484 = vunpack.c.h.b16 %v316
    %v1485 = vunpack.c.l.b16 %v317
    %v1486 = vunpack.c.h.b16 %v317
    %v1487 = vunpack.c.l.b16 %v318
    %v1488 = vunpack.c.h.b16 %v318
    %v1489 = vunpack.c.l.b16 %v319
    %v1490 = vunpack.c.h.b16 %v319
    %v1491 = vunpack.c.l.b16 %v320
    %v1492 = vunpack.c.h.b16 %v320
    %v1493 = vunpack.c.l.b16 %v321
    %v1494 = vunpack.c.h.b16 %v321
    %v1495 = vunpack.c.l.b16 %v322
    %v1496 = vunpack.c.h.b16 %v322
    %v1497 = vunpack.c.l.b16 %v323
    %v1498 = vunpack.c.h.b16 %v323
    %v1499 = vunpack.c.l.b16 %v324
    %v1500 = vunpack.c.h.b16 %v324
    %v1501 = vunpack.c.l.b16 %v325
    %v1502 = vunpack.c.h.b16 %v325
    %v1503 = vunpack.c.l.b16 %v326
    %v1504 = vunpack.c.h.b16 %v326
    %v1505 = vunpack.c.l.b16 %v327
    %v1506 = vunpack.c.h.b16 %v327
    %v1507 = vunpack.c.l.b16 %v328
    %v1508 = vunpack.c.h.b16 %v328
    %v1509 = vunpack.c.l.b16 %v329
    %v1510 = vunpack.c.h.b16 %v329
    %v1511 = vunpack.c.l.b16 %v330
    %v1512 = vunpack.c.h.b16 %v330
    %v1513 = vunpack.c.l.b16 %v331
    %v1514 = vunpack.c.h.b16 %v331
    %v1515 = vunpack.c.l.b16 %v332
    %v1516 = vunpack.c.h.b16 %v332
    %v1517 = vunpack.c.l.b16 %v333
    %v1518 = vunpack.c.h.b16 %v333
    %v1519 = vunpack.c.l.b16 %v334
    %v1520 = vunpack.c.h.b16 %v334
    %v1521 = vunpack.c.l.b16 %v335
    %v1522 = vunpack.c.h.b16 %v335
    %v1523 = vunpack.c.l.b16 %v336
    %v1524 = vunpack.c.h.b16 %v336
    %v1525 = vunpack.c.l.b16 %v337
    %v1526 = vunpack.c.h.b16 %v337
    %v1527 = vunpack.c.l.b16 %v338
    %v1528 = vunpack.c.h.b16 %v338
    %v1529 = vunpack.c.l.b16 %v339
    %v1530 = vunpack.c.h.b16 %v339
    %v1531 = vunpack.c.l.b16 %v340
    %v1532 = vunpack.c.h.b16 %v340
    %v1533 = vunpack.c.l.b16 %v341
    %v1534 = vunpack.c.h.b16 %v341
    %v1535 = vunpack.c.l.b16 %v342
    %v1536 = vunpack.c.h.b16 %v342
    %v1537 = vunpack.c.l.b16 %v343
    %v1538 = vunpack.c.h.b16 %v343
    %v1539 = vunpack.c.l.b16 %v344
    %v1540 = vunpack.c.h.b16 %v344
    %v1541 = vunpack.c.l.b16 %v345
    %v1542 = vunpack.c.h.b16 %v345
    %v1543 = vunpack.c.l.b16 %v346
    %v1544 = vunpack.c.h.b16 %v346
    %v1545 = vunpack.c.l.b16 %v347
    %v1546 = vunpack.c.h.b16 %v347
    %v1547 = vunpack.c.l.b16 %v348
    %v1548 = vunpack.c.h.b16 %v348
    %v1549 = vunpack.c.l.b16 %v349
    %v1550 = vunpack.c.h.b16 %v349
    %v1551 = vunpack.c.l.b16 %v350
    %v1552 = vunpack.c.h.b16 %v350
    %v1553 = vunpack.c.l.b16 %v351
    %v1554 = vunpack.c.h.b16 %v351
    %v1555 = vunpack.c.l.b16 %v352
    %v1556 = vunpack.c.h.b16 %v352
    %v1557 = vunpack.c.l.b16 %v353
    %v1558 = vunpack.c.h.b16 %v353
    %v1559 = vunpack.c.l.b16 %v354
    %v1560 = vunpack.c.h.b16 %v354
    %v1561 = vunpack.c.l.b16 %v355
    %v1562 = vunpack.c.h.b16 %v355
    %v1563 = vunpack.c.l.b16 %v356
    %v1564 = vunpack.c.h.b16 %v356
    %v1565 = vunpack.c.l.b16 %v357
    %v1566 = vunpack.c.h.b16 %v357
    %v1567 = vunpack.c.l.b16 %v358
    %v1568 = vunpack.c.h.b16 %v358
    %v1569 = vunpack.c.l.b16 %v359
    %v1570 = vunpack.c.h.b16 %v359
    %v1571 = vunpack.c.l.b16 %v360
    %v1572 = vunpack.c.h.b16 %v360
    %v1573 = vunpack.c.l.b16 %v361
    %v1574 = vunpack.c.h.b16 %v361
    %v1575 = vunpack.c.l.b16 %v362
    %v1576 = vunpack.c.h.b16 %v362
    %v1577 = vunpack.c.l.b16 %v363
    %v1578 = vunpack.c.h.b16 %v363
    %v1579 = vunpack.c.l.b16 %v364
    %v1580 = vunpack.c.h.b16 %v364
    %v1581 = vunpack.c.l.b16 %v365
    %v1582 = vunpack.c.h.b16 %v365
    %v1583 = vunpack.c.l.b16 %v366
    %v1584 = vunpack.c.h.b16 %v366
    %v1585 = vunpack.c.l.b16 %v367
    %v1586 = vunpack.c.h.b16 %v367
    %v1587 = vunpack.c.l.b16 %v368
    %v1588 = vunpack.c.h.b16 %v368
    %v1589 = vunpack.c.l.b16 %v369
    %v1590 = vunpack.c.h.b16 %v369
    %v1591 = vunpack.c.l.b16 %v370
    %v1592 = vunpack.c.h.b16 %v370
    %v1593 = vunpack.c.l.b16 %v371
    %v1594 = vunpack.c.h.b16 %v371
    %v1595 = vunpack.c.l.b16 %v372
    %v1596 = vunpack.c.h.b16 %v372
    %v1597 = vunpack.c.l.b16 %v373
    %v1598 = vunpack.c.h.b16 %v373
    %v1599 = vunpack.c.l.b16 %v374
    %v1600 = vunpack.c.h.b16 %v374
    %v1601 = vunpack.c.l.b16 %v375
    %v1602 = vunpack.c.h.b16 %v375
    %v1603 = vunpack.c.l.b16 %v376
    %v1604 = vunpack.c.h.b16 %v376
    %v1605 = vunpack.c.l.b16 %v377
    %v1606 = vunpack.c.h.b16 %v377
    %v1607 = vunpack.c.l.b16 %v378
    %v1608 = vunpack.c.h.b16 %v378
    %v1609 = vunpack.c.l.b16 %v379
    %v1610 = vunpack.c.h.b16 %v379
    %v1611 = vunpack.c.l.b16 %v380
    %v1612 = vunpack.c.h.b16 %v380
    %v1613 = vunpack.c.l.b16 %v381
    %v1614 = vunpack.c.h.b16 %v381
    %v1615 = vunpack.c.l.b16 %v382
    %v1616 = vunpack.c.h.b16 %v382
    %v1617 = vunpack.c.l.b16 %v383
    %v1618 = vunpack.c.h.b16 %v383
    %v1619 = vunpack.c.l.b16 %v384
    %v1620 = vunpack.c.h.b16 %v384
    %v1621 = vunpack.c.l.b16 %v385
    %v1622 = vunpack.c.h.b16 %v385
    %v1623 = vunpack.c.l.b16 %v386
    %v1624 = vunpack.c.h.b16 %v386
    %v1625 = vunpack.c.l.b16 %v387
    %v1626 = vunpack.c.h.b16 %v387
    %v1627 = vunpack.c.l.b16 %v388
    %v1628 = vunpack.c.h.b16 %v388
    %v1629 = vunpack.c.l.b16 %v389
    %v1630 = vunpack.c.h.b16 %v389
    %v1631 = vunpack.c.l.b16 %v390
    %v1632 = vunpack.c.h.b16 %v390
    %v1633 = vunpack.c.l.b16 %v391
    %v1634 = vunpack.c.h.b16 %v391
    %v1635 = vunpack.c.l.b16 %v392
    %v1636 = vunpack.c.h.b16 %v392
    %v1637 = vunpack.c.l.b16 %v393
    %v1638 = vunpack.c.h.b16 %v393
    %v1639 = vunpack.c.l.b16 %v394
    %v1640 = vunpack.c.h.b16 %v394
    %v1641 = vunpack.c.l.b16 %v395
    %v1642 = vunpack.c.h.b16 %v395
    %v1643 = vunpack.c.l.b16 %v396
    %v1644 = vunpack.c.h.b16 %v396
    %v1645 = vunpack.c.l.b16 %v397
    %v1646 = vunpack.c.h.b16 %v397
    %v1647 = vunpack.c.l.b16 %v398
    %v1648 = vunpack.c.h.b16 %v398
    %v1649 = vunpack.c.l.b16 %v399
    %v1650 = vunpack.c.h.b16 %v399
    %v1651 = vunpack.c.l.b16 %v400
    %v1652 = vunpack.c.h.b16 %v400
    %v1653 = vunpack.c.l.b16 %v401
    %v1654 = vunpack.c.h.b16 %v401
    %v1655 = vunpack.c.l.b16 %v402
    %v1656 = vunpack.c.h.b16 %v402
    %v1657 = vunpack.c.l.b16 %v403
    %v1658 = vunpack.c.h.b16 %v403
    %v1659 = vunpack.c.l.b16 %v404
    %v1660 = vunpack.c.h.b16 %v404
    %v1661 = vunpack.c.l.b16 %v405
    %v1662 = vunpack.c.h.b16 %v405
    %v1663 = vunpack.c.l.b16 %v406
    %v1664 = vunpack.c.h.b16 %v406
    %v1665 = vunpack.c.l.b16 %v407
    %v1666 = vunpack.c.h.b16 %v407
    %v1667 = vunpack.c.l.b16 %v408
    %v1668 = vunpack.c.h.b16 %v408
    %v1669 = vunpack.c.l.b16 %v409
    %v1670 = vunpack.c.h.b16 %v409
    %v1671 = vunpack.c.l.b16 %v410
    %v1672 = vunpack.c.h.b16 %v410
    %v1673 = vunpack.c.l.b16 %v411
    %v1674 = vunpack.c.h.b16 %v411
    %v1675 = vunpack.c.l.b16 %v412
    %v1676 = vunpack.c.h.b16 %v412
    %v1677 = vunpack.c.l.b16 %v413
    %v1678 = vunpack.c.h.b16 %v413
    %v1679 = vunpack.c.l.b16 %v414
    %v1680 = vunpack.c.h.b16 %v414
    %v1681 = vunpack.c.l.b16 %v415
    %v1682 = vunpack.c.h.b16 %v415
    %v1683 = vunpack.c.l.b16 %v416
    %v1684 = vunpack.c.h.b16 %v416
    %v1685 = vunpack.c.l.b16 %v417
    %v1686 = vunpack.c.h.b16 %v417
    %v1687 = vunpack.c.l.b16 %v418
    %v1688 = vunpack.c.h.b16 %v418
    %v1689 = vunpack.c.l.b16 %v419
    %v1690 = vunpack.c.h.b16 %v419
    %v1691 = vunpack.c.l.b16 %v420
    %v1692 = vunpack.c.h.b16 %v420
    %v1693 = vunpack.c.l.b16 %v421
    %v1694 = vunpack.c.h.b16 %v421
    %v1695 = vunpack.c.l.b16 %v422
    %v1696 = vunpack.c.h.b16 %v422
    %v1697 = vunpack.c.l.b16 %v423
    %v1698 = vunpack.c.h.b16 %v423
    %v1699 = vunpack.c.l.b16 %v424
    %v1700 = vunpack.c.h.b16 %v424
    %v1701 = vunpack.c.l.b16 %v425
    %v1702 = vunpack.c.h.b16 %v425
    %v1703 = vunpack.c.l.b16 %v426
    %v1704 = vunpack.c.h.b16 %v426
    %v1705 = vunpack.c.l.b16 %v427
    %v1706 = vunpack.c.h.b16 %v427
    %v1707 = vunpack.c.l.b16 %v428
    %v1708 = vunpack.c.h.b16 %v428
    %v1709 = vunpack.c.l.b16 %v429
    %v1710 = vunpack.c.h.b16 %v429
    %v1711 = vunpack.c.l.b16 %v430
    %v1712 = vunpack.c.h.b16 %v430
    %v1713 = vunpack.c.l.b16 %v431
    %v1714 = vunpack.c.h.b16 %v431
    %v1715 = vunpack.c.l.b16 %v432
    %v1716 = vunpack.c.h.b16 %v432
    %v1717 = vunpack.c.l.b16 %v433
    %v1718 = vunpack.c.h.b16 %v433
    %v1719 = vunpack.c.l.b16 %v434
    %v1720 = vunpack.c.h.b16 %v434
    %v1721 = vunpack.c.l.b16 %v435
    %v1722 = vunpack.c.h.b16 %v435
    %v1723 = vunpack.c.l.b16 %v436
    %v1724 = vunpack.c.h.b16 %v436
    %v1725 = vunpack.c.l.b16 %v437
    %v1726 = vunpack.c.h.b16 %v437
    %v1727 = vunpack.c.l.b16 %v438
    %v1728 = vunpack.c.h.b16 %v438
    %v1729 = vunpack.c.l.b16 %v439
    %v1730 = vunpack.c.h.b16 %v439
    %v1731 = vunpack.c.l.b16 %v440
    %v1732 = vunpack.c.h.b16 %v440
    %v1733 = vunpack.c.l.b16 %v441
    %v1734 = vunpack.c.h.b16 %v441
    %v1735 = vunpack.c.l.b16 %v442
    %v1736 = vunpack.c.h.b16 %v442
    %v1737 = vunpack.c.l.b16 %v443
    %v1738 = vunpack.c.h.b16 %v443
    %v1739 = vunpack.c.l.b16 %v444
    %v1740 = vunpack.c.h.b16 %v444
    %v1741 = vunpack.c.l.b16 %v445
    %v1742 = vunpack.c.h.b16 %v445
    %v1743 = vunpack.c.l.b16 %v446
    %v1744 = vunpack.c.h.b16 %v446
    %v1745 = vunpack.c.l.b16 %v447
    %v1746 = vunpack.c.h.b16 %v447
    %v1747 = vunpack.c.l.b16 %v448
    %v1748 = vunpack.c.h.b16 %v448
    %v1749 = vunpack.c.l.b16 %v449
    %v1750 = vunpack.c.h.b16 %v449
    %v1751 = vunpack.c.l.b16 %v450
    %v1752 = vunpack.c.h.b16 %v450
    %v1753 = vunpack.c.l.b16 %v451
    %v1754 = vunpack.c.h.b16 %v451
    %v1755 = vunpack.c.l.b16 %v452
    %v1756 = vunpack.c.h.b16 %v452
    %v1757 = vunpack.c.l.b16 %v453
    %v1758 = vunpack.c.h.b16 %v453
    %v1759 = vunpack.c.l.b16 %v454
    %v1760 = vunpack.c.h.b16 %v454
    %v1761 = vunpack.c.l.b16 %v455
    %v1762 = vunpack.c.h.b16 %v455
    %v1763 = vunpack.c.l.b16 %v456
    %v1764 = vunpack.c.h.b16 %v456
    %v1765 = vunpack.c.l.b16 %v457
    %v1766 = vunpack.c.h.b16 %v457
    %v1767 = vunpack.c.l.b16 %v458
    %v1768 = vunpack.c.h.b16 %v458
    %v1769 = vunpack.c.l.b16 %v459
    %v1770 = vunpack.c.h.b16 %v459
    %v1771 = vunpack.c.l.b16 %v460
    %v1772 = vunpack.c.h.b16 %v460
    %v1773 = vunpack.c.l.b16 %v461
    %v1774 = vunpack.c.h.b16 %v461
    %v1775 = vunpack.c.l.b16 %v462
    %v1776 = vunpack.c.h.b16 %v462
    %v1777 = vunpack.c.l.b16 %v463
    %v1778 = vunpack.c.h.b16 %v463
    %v1779 = vunpack.c.l.b16 %v464
    %v1780 = vunpack.c.h.b16 %v464
    %v1781 = vunpack.c.l.b16 %v465
    %v1782 = vunpack.c.h.b16 %v465
    %v1783 = vunpack.c.l.b16 %v466
    %v1784 = vunpack.c.h.b16 %v466
    %v1785 = vunpack.c.l.b16 %v467
    %v1786 = vunpack.c.h.b16 %v467
    %v1787 = vunpack.c.l.b16 %v468
    %v1788 = vunpack.c.h.b16 %v468
    %v1789 = vunpack.c.l.b16 %v469
    %v1790 = vunpack.c.h.b16 %v469
    %v1791 = vunpack.c.l.b16 %v470
    %v1792 = vunpack.c.h.b16 %v470
    %v1793 = vunpack.c.l.b16 %v471
    %v1794 = vunpack.c.h.b16 %v471
    %v1795 = vunpack.c.l.b16 %v472
    %v1796 = vunpack.c.h.b16 %v472
    %v1797 = vunpack.c.l.b16 %v473
    %v1798 = vunpack.c.h.b16 %v473
    %v1799 = vunpack.c.l.b16 %v474
    %v1800 = vunpack.c.h.b16 %v474
    %v1801 = vunpack.c.l.b16 %v475
    %v1802 = vunpack.c.h.b16 %v475
    %v1803 = vunpack.c.l.b16 %v476
    %v1804 = vunpack.c.h.b16 %v476
    %v1805 = vunpack.c.l.b16 %v477
    %v1806 = vunpack.c.h.b16 %v477
    %v1807 = vunpack.c.l.b16 %v478
    %v1808 = vunpack.c.h.b16 %v478
    %v1809 = vunpack.c.l.b16 %v479
    %v1810 = vunpack.c.h.b16 %v479
    %v1811 = vunpack.c.l.b16 %v480
    %v1812 = vunpack.c.h.b16 %v480
    %v1813 = vunpack.c.l.b16 %v481
    %v1814 = vunpack.c.h.b16 %v481
    %v1815 = vunpack.c.l.b16 %v482
    %v1816 = vunpack.c.h.b16 %v482
    %v1817 = vunpack.c.l.b16 %v483
    %v1818 = vunpack.c.h.b16 %v483
    %v1819 = vunpack.c.l.b16 %v484
    %v1820 = vunpack.c.h.b16 %v484
    %v1821 = vunpack.c.l.b16 %v485
    %v1822 = vunpack.c.h.b16 %v485
    %v1823 = vunpack.c.l.b16 %v486
    %v1824 = vunpack.c.h.b16 %v486
    %v1825 = vunpack.c.l.b16 %v487
    %v1826 = vunpack.c.h.b16 %v487
    %v1827 = vunpack.c.l.b16 %v488
    %v1828 = vunpack.c.h.b16 %v488
    %v1829 = vunpack.c.l.b16 %v489
    %v1830 = vunpack.c.h.b16 %v489
    %v1831 = vunpack.c.l.b16 %v490
    %v1832 = vunpack.c.h.b16 %v490
    %v1833 = vunpack.c.l.b16 %v491
    %v1834 = vunpack.c.h.b16 %v491
    %v1835 = vunpack.c.l.b16 %v492
    %v1836 = vunpack.c.h.b16 %v492
    %v1837 = vunpack.c.l.b16 %v493
    %v1838 = vunpack.c.h.b16 %v493
    %v1839 = vunpack.c.l.b16 %v494
    %v1840 = vunpack.c.h.b16 %v494
    %v1841 = vunpack.c.l.b16 %v495
    %v1842 = vunpack.c.h.b16 %v495
    %v1843 = vunpack.c.l.b16 %v496
    %v1844 = vunpack.c.h.b16 %v496
    %v1845 = vunpack.c.l.b16 %v497
    %v1846 = vunpack.c.h.b16 %v497
    %v1847 = vunpack.c.l.b16 %v498
    %v1848 = vunpack.c.h.b16 %v498
    %v1849 = vunpack.c.l.b16 %v499
    %v1850 = vunpack.c.h.b16 %v499
    %v1851 = vunpack.c.l.b16 %v500
    %v1852 = vunpack.c.h.b16 %v500
    %v1853 = vunpack.c.l.b16 %v501
    %v1854 = vunpack.c.h.b16 %v501
    %v1855 = vunpack.c.l.b16 %v502
    %v1856 = vunpack.c.h.b16 %v502
    %v1857 = vunpack.c.l.b16 %v503
    %v1858 = vunpack.c.h.b16 %v503
    %v1859 = vunpack.c.l.b16 %v504
    %v1860 = vunpack.c.h.b16 %v504
    %v1861 = vunpack.c.l.b16 %v505
    %v1862 = vunpack.c.h.b16 %v505
    %v1863 = vunpack.c.l.b16 %v506
    %v1864 = vunpack.c.h.b16 %v506
    %v1865 = vunpack.c.l.b16 %v507
    %v1866 = vunpack.c.h.b16 %v507
    %v1867 = vunpack.c.l.b16 %v508
    %v1868 = vunpack.c.h.b16 %v508
    %v1869 = vunpack.c.l.b16 %v509
    %v1870 = vunpack.c.h.b16 %v509
    %v1871 = vunpack.c.l.b16 %v510
    %v1872 = vunpack.c.h.b16 %v510
    %v1873 = vunpack.c.l.b16 %v511
    %v1874 = vunpack.c.h.b16 %v511
    %v1875 = vunpack.c.l.b16 %v512
    %v1876 = vunpack.c.h.b16 %v512
    %v1877 = vunpack.c.l.b16 %v513
    %v1878 = vunpack.c.h.b16 %v513
    %v1879 = vunpack.c.l.b16 %v514
    %v1880 = vunpack.c.h.b16 %v514
    %v1881 = vunpack.c.l.b16 %v515
    %v1882 = vunpack.c.h.b16 %v515
    %v1883 = vunpack.c.l.b16 %v516
    %v1884 = vunpack.c.h.b16 %v516
    %v1885 = vunpack.c.l.b16 %v517
    %v1886 = vunpack.c.h.b16 %v517
    %v1887 = vunpack.c.l.b16 %v518
    %v1888 = vunpack.c.h.b16 %v518
    %v1889 = vunpack.c.l.b16 %v519
    %v1890 = vunpack.c.h.b16 %v519
    %v1891 = vunpack.c.l.b16 %v520
    %v1892 = vunpack.c.h.b16 %v520
    %v1893 = vunpack.c.l.b16 %v521
    %v1894 = vunpack.c.h.b16 %v521
    %v1895 = vunpack.c.l.b16 %v522
    %v1896 = vunpack.c.h.b16 %v522
    %v1897 = vunpack.c.l.b16 %v523
    %v1898 = vunpack.c.h.b16 %v523
    %v1899 = vunpack.c.l.b16 %v524
    %v1900 = vunpack.c.h.b16 %v524
    %v1901 = vunpack.c.l.b16 %v525
    %v1902 = vunpack.c.h.b16 %v525
    %v1903 = vunpack.c.l.b16 %v526
    %v1904 = vunpack.c.h.b16 %v526
    %v1905 = vunpack.c.l.b16 %v527
    %v1906 = vunpack.c.h.b16 %v527
    %v1907 = vunpack.c.l.b16 %v528
    %v1908 = vunpack.c.h.b16 %v528
    %v1909 = vunpack.c.l.b16 %v529
    %v1910 = vunpack.c.h.b16 %v529
    %v1911 = vunpack.c.l.b16 %v530
    %v1912 = vunpack.c.h.b16 %v530
    %v1913 = vunpack.c.l.b16 %v531
    %v1914 = vunpack.c.h.b16 %v531
    %v1915 = vunpack.c.l.b16 %v532
    %v1916 = vunpack.c.h.b16 %v532
    %v1917 = vunpack.c.l.b16 %v533
    %v1918 = vunpack.c.h.b16 %v533
    %v1919 = vunpack.c.l.b16 %v534
    %v1920 = vunpack.c.h.b16 %v534
    %v1921 = vunpack.c.l.b16 %v535
    %v1922 = vunpack.c.h.b16 %v535
    %v1923 = vunpack.c.l.b16 %v536
    %v1924 = vunpack.c.h.b16 %v536
    %v1925 = vunpack.c.l.b16 %v537
    %v1926 = vunpack.c.h.b16 %v537
    %v1927 = vunpack.c.l.b16 %v538
    %v1928 = vunpack.c.h.b16 %v538
    %v1929 = vunpack.c.l.b16 %v539
    %v1930 = vunpack.c.h.b16 %v539
    %v1931 = vunpack.c.l.b16 %v540
    %v1932 = vunpack.c.h.b16 %v540
    %v1933 = vunpack.c.l.b16 %v541
    %v1934 = vunpack.c.h.b16 %v541
    %v1935 = vunpack.c.l.b16 %v542
    %v1936 = vunpack.c.h.b16 %v542
    %v1937 = vunpack.c.l.b16 %v543
    %v1938 = vunpack.c.h.b16 %v543
    %v1939 = vunpack.c.l.b16 %v544
    %v1940 = vunpack.c.h.b16 %v544
    %v1941 = vunpack.c.l.b16 %v545
    %v1942 = vunpack.c.h.b16 %v545
    %v1943 = vunpack.c.l.b16 %v546
    %v1944 = vunpack.c.h.b16 %v546
    %v1945 = vunpack.c.l.b16 %v547
    %v1946 = vunpack.c.h.b16 %v547
    %v1947 = vunpack.c.l.b16 %v548
    %v1948 = vunpack.c.h.b16 %v548
    %v1949 = vunpack.c.l.b16 %v549
    %v1950 = vunpack.c.h.b16 %v549
    %v1951 = vunpack.c.l.b16 %v550
    %v1952 = vunpack.c.h.b16 %v550
    %v1953 = vunpack.c.l.b16 %v551
    %v1954 = vunpack.c.h.b16 %v551
    %v1955 = vunpack.c.l.b16 %v552
    %v1956 = vunpack.c.h.b16 %v552
    %v1957 = vunpack.c.l.b16 %v553
    %v1958 = vunpack.c.h.b16 %v553
    %v1959 = vunpack.c.l.b16 %v554
    %v1960 = vunpack.c.h.b16 %v554
    %v1961 = vunpack.c.l.b16 %v555
    %v1962 = vunpack.c.h.b16 %v555
    %v1963 = vunpack.c.l.b16 %v556
    %v1964 = vunpack.c.h.b16 %v556
    %v1965 = vunpack.c.l.b16 %v557
    %v1966 = vunpack.c.h.b16 %v557
    %v1967 = vunpack.c.l.b16 %v558
    %v1968 = vunpack.c.h.b16 %v558
    %v1969 = vunpack.c.l.b16 %v559
    %v1970 = vunpack.c.h.b16 %v559
    %v1971 = vunpack.c.l.b16 %v560
    %v1972 = vunpack.c.h.b16 %v560
    %v1973 = vunpack.c.l.b16 %v561
    %v1974 = vunpack.c.h.b16 %v561
    %v1975 = vunpack.c.l.b16 %v562
    %v1976 = vunpack.c.h.b16 %v562
    %v1977 = vunpack.c.l.b16 %v563
    %v1978 = vunpack.c.h.b16 %v563
    %v1979 = vunpack.c.l.b16 %v564
    %v1980 = vunpack.c.h.b16 %v564
    %v1981 = vunpack.c.l.b16 %v565
    %v1982 = vunpack.c.h.b16 %v565
    %v1983 = vunpack.c.l.b16 %v566
    %v1984 = vunpack.c.h.b16 %v566
    %v1985 = vunpack.c.l.b16 %v567
    %v1986 = vunpack.c.h.b16 %v567
    %v1987 = vunpack.c.l.b16 %v568
    %v1988 = vunpack.c.h.b16 %v568
    %v1989 = vunpack.c.l.b16 %v569
    %v1990 = vunpack.c.h.b16 %v569
    %v1991 = vunpack.c.l.b16 %v570
    %v1992 = vunpack.c.h.b16 %v570
    %v1993 = vunpack.c.l.b16 %v571
    %v1994 = vunpack.c.h.b16 %v571
    %v1995 = vunpack.c.l.b16 %v572
    %v1996 = vunpack.c.h.b16 %v572
    %v1997 = vunpack.c.l.b16 %v573
    %v1998 = vunpack.c.h.b16 %v573
    %v1999 = vunpack.c.l.b16 %v574
    %v2000 = vunpack.c.h.b16 %v574
    %v2001 = vunpack.c.l.b16 %v575
    %v2002 = vunpack.c.h.b16 %v575
    %v2003 = vunpack.c.l.b16 %v576
    %v2004 = vunpack.c.h.b16 %v576
    %v2005 = vunpack.c.l.b16 %v577
    %v2006 = vunpack.c.h.b16 %v577
    %v2007 = vunpack.c.l.b16 %v578
    %v2008 = vunpack.c.h.b16 %v578
    %v2009 = vunpack.c.l.b16 %v579
    %v2010 = vunpack.c.h.b16 %v579
    %v2011 = vunpack.c.l.b16 %v580
    %v2012 = vunpack.c.h.b16 %v580
    %v2013 = vunpack.c.l.b16 %v581
    %v2014 = vunpack.c.h.b16 %v581
    %v2015 = vunpack.c.l.b16 %v582
    %v2016 = vunpack.c.h.b16 %v582
    %v2017 = vunpack.c.l.b16 %v583
    %v2018 = vunpack.c.h.b16 %v583
    %v2019 = vunpack.c.l.b16 %v584
    %v2020 = vunpack.c.h.b16 %v584
    %v2021 = vunpack.c.l.b16 %v585
    %v2022 = vunpack.c.h.b16 %v585
    %v2023 = vunpack.c.l.b16 %v586
    %v2024 = vunpack.c.h.b16 %v586
    %v2025 = vunpack.c.l.b16 %v587
    %v2026 = vunpack.c.h.b16 %v587
    %v2027 = vunpack.c.l.b16 %v588
    %v2028 = vunpack.c.h.b16 %v588
    %v2029 = vunpack.c.l.b16 %v589
    %v2030 = vunpack.c.h.b16 %v589
    %v2031 = vunpack.c.l.b16 %v590
    %v2032 = vunpack.c.h.b16 %v590
    %v2033 = vunpack.c.l.b16 %v591
    %v2034 = vunpack.c.h.b16 %v591
    %v2035 = vunpack.c.l.b16 %v592
    %v2036 = vunpack.c.h.b16 %v592
    %v2037 = vunpack.c.l.b16 %v593
    %v2038 = vunpack.c.h.b16 %v593
    %v2039 = vunpack.c.l.b16 %v594
    %v2040 = vunpack.c.h.b16 %v594
    %v2041 = vunpack.c.l.b16 %v595
    %v2042 = vunpack.c.h.b16 %v595
    %v2043 = vunpack.c.l.b16 %v596
    %v2044 = vunpack.c.h.b16 %v596
    %v2045 = vunpack.c.l.b16 %v597
    %v2046 = vunpack.c.h.b16 %v597
    %v2047 = vunpack.c.l.b16 %v598
    %v2048 = vunpack.c.h.b16 %v598
    %v2049 = vunpack.c.l.b16 %v599
    %v2050 = vunpack.c.h.b16 %v599
    %v2051 = vunpack.c.l.b16 %v600
    %v2052 = vunpack.c.h.b16 %v600
    %v2053 = vunpack.c.l.b16 %v601
    %v2054 = vunpack.c.h.b16 %v601
    %v2055 = vunpack.c.l.b16 %v602
    %v2056 = vunpack.c.h.b16 %v602
    %v2057 = vunpack.c.l.b16 %v603
    %v2058 = vunpack.c.h.b16 %v603
    %v2059 = vunpack.c.l.b16 %v604
    %v2060 = vunpack.c.h.b16 %v604
    %v2061 = vunpack.c.l.b16 %v605
    %v2062 = vunpack.c.h.b16 %v605
    %v2063 = vunpack.c.l.b16 %v606
    %v2064 = vunpack.c.h.b16 %v606
    %v2065 = vunpack.c.l.b16 %v607
    %v2066 = vunpack.c.h.b16 %v607
    %v2067 = vunpack.c.l.b16 %v608
    %v2068 = vunpack.c.h.b16 %v608
    %v2069 = vunpack.c.l.b16 %v609
    %v2070 = vunpack.c.h.b16 %v609
    %v2071 = vunpack.c.l.b16 %v610
    %v2072 = vunpack.c.h.b16 %v610
    %v2073 = vunpack.c.l.b16 %v611
    %v2074 = vunpack.c.h.b16 %v611
    %v2075 = vunpack.c.l.b16 %v612
    %v2076 = vunpack.c.h.b16 %v612
    %v2077 = vunpack.c.l.b16 %v613
    %v2078 = vunpack.c.h.b16 %v613
    %v2079 = vunpack.c.l.b16 %v614
    %v2080 = vunpack.c.h.b16 %v614
    %v2081 = vunpack.c.l.b16 %v615
    %v2082 = vunpack.c.h.b16 %v615
    %v2083 = vunpack.c.l.b16 %v616
    %v2084 = vunpack.c.h.b16 %v616
    %v2085 = vunpack.c.l.b16 %v617
    %v2086 = vunpack.c.h.b16 %v617
    %v2087 = vunpack.c.l.b16 %v618
    %v2088 = vunpack.c.h.b16 %v618
    %v2089 = vunpack.c.l.b16 %v619
    %v2090 = vunpack.c.h.b16 %v619
    %v2091 = vunpack.c.l.b16 %v620
    %v2092 = vunpack.c.h.b16 %v620
    %v2093 = vpack.c.b16 %v1139, %v1133
    %v2094 = vpack.c.b16 %v1140, %v1134
    %v2095 = vpack.c.b16 %v1141, %v1135
    %v2096 = vpack.c.b16 %v1142, %v1136
    %v2097 = vpack.c.b16 %v1143, %v1137
    %v2098 = vpack.c.b16 %v1144, %v1138
    %v2099 = vpack.c.b16 %v1151, %v1145
    %v2100 = vpack.c.b16 %v1152, %v1146
    %v2101 = vpack.c.b16 %v1153, %v1147
    %v2102 = vpack.c.b16 %v1154, %v1148
    %v2103 = vpack.c.b16 %v1155, %v1149
    %v2104 = vpack.c.b16 %v1156, %v1150
    %v2105 = vpack.c.b16 %v1163, %v1157
    %v2106 = vpack.c.b16 %v1164, %v1158
    %v2107 = vpack.c.b16 %v1165, %v1159
    %v2108 = vpack.c.b16 %v1166, %v1160
    %v2109 = vpack.c.b16 %v1167, %v1161
    %v2110 = vpack.c.b16 %v1168, %v1162
    %v2111 = vpack.c.b16 %v1175, %v1169
    %v2112 = vpack.c.b16 %v1176, %v1170
    %v2113 = vpack.c.b16 %v1177, %v1171
    %v2114 = vpack.c.b16 %v1178, %v1172
    %v2115 = vpack.c.b16 %v1179, %v1173
    %v2116 = vpack.c.b16 %v1180, %v1174
    %v2117 = vpack.c.b16 %v1187, %v1181
    %v2118 = vpack.c.b16 %v1188, %v1182
    %v2119 = vpack.c.b16 %v1189, %v1183
    %v2120 = vpack.c.b16 %v1190, %v1184
    %v2121 = vpack.c.b16 %v1191, %v1185
    %v2122 = vpack.c.b16 %v1192, %v1186
    %v2123 = vpack.c.b16 %v1199, %v1193
    %v2124 = vpack.c.b16 %v1200, %v1194
    %v2125 = vpack.c.b16 %v1201, %v1195
    %v2126 = vpack.c.b16 %v1202, %v1196
    %v2127 = vpack.c.b16 %v1203, %v1197
    %v2128 = vpack.c.b16 %v1204, %v1198
    %v2129 = vpack.c.b16 %v1211, %v1205
    %v2130 = vpack.c.b16 %v1212, %v1206
    %v2131 = vpack.c.b16 %v1213, %v1207
    %v2132 = vpack.c.b16 %v1214, %v1208
    %v2133 = vpack.c.b16 %v1215, %v1209
    %v2134 = vpack.c.b16 %v1216, %v1210
    %v2135 = vpack.c.b16 %v1223, %v1217
    %v2136 = vpack.c.b16 %v1224, %v1218
    %v2137 = vpack.c.b16 %v1225, %v1219
    %v2138 = vpack.c.b16 %v1226, %v1220
    %v2139 = vpack.c.b16 %v1227, %v1221
    %v2140 = vpack.c.b16 %v1228, %v1222
    %v2141 = vpack.c.b16 %v1235, %v1229
    %v2142 = vpack.c.b16 %v1236, %v1230
    %v2143 = vpack.c.b16 %v1237, %v1231
    %v2144 = vpack.c.b16 %v1238, %v1232
    %v2145 = vpack.c.b16 %v1239, %v1233
    %v2146 = vpack.c.b16 %v1240, %v1234
    %v2147 = vpack.c.b16 %v1247, %v1241
    %v2148 = vpack.c.b16 %v1248, %v1242
    %v2149 = vpack.c.b16 %v1249, %v1243
    %v2150 = vpack.c.b16 %v1250, %v1244
    %v2151 = vpack.c.b16 %v1251, %v1245
    %v2152 = vpack.c.b16 %v1252, %v1246
    %v2153 = vpack.c.b16 %v1259, %v1253
    %v2154 = vpack.c.b16 %v1260, %v1254
    %v2155 = vpack.c.b16 %v1261, %v1255
    %v2156 = vpack.c.b16 %v1262, %v1256
    %v2157 = vpack.c.b16 %v1263, %v1257
    %v2158 = vpack.c.b16 %v1264, %v1258
    %v2159 = vpack.c.b16 %v1271, %v1265
    %v2160 = vpack.c.b16 %v1272, %v1266
    %v2161 = vpack.c.b16 %v1273, %v1267
    %v2162 = vpack.c.b16 %v1274, %v1268
    %v2163 = vpack.c.b16 %v1275, %v1269
    %v2164 = vpack.c.b16 %v1276, %v1270
    %v2165 = vpack.c.b16 %v1283, %v1277
    %v2166 = vpack.c.b16 %v1284, %v1278
    %v2167 = vpack.c.b16 %v1285, %v1279
    %v2168 = vpack.c.b16 %v1286, %v1280
    %v2169 = vpack.c.b16 %v1287, %v1281
    %v2170 = vpack.c.b16 %v1288, %v1282
    %v2171 = vpack.c.b16 %v1295, %v1289
    %v2172 = vpack.c.b16 %v1296, %v1290
    %v2173 = vpack.c.b16 %v1297, %v1291
    %v2174 = vpack.c.b16 %v1298, %v1292
    %v2175 = vpack.c.b16 %v1299, %v1293
    %v2176 = vpack.c.b16 %v1300, %v1294
    %v2177 = vpack.c.b16 %v1307, %v1301
    %v2178 = vpack.c.b16 %v1308, %v1302
    %v2179 = vpack.c.b16 %v1309, %v1303
    %v2180 = vpack.c.b16 %v1310, %v1304
    %v2181 = vpack.c.b16 %v1311, %v1305
    %v2182 = vpack.c.b16 %v1312, %v1306
    %v2183 = vpack.c.b16 %v1319, %v1313
    %v2184 = vpack.c.b16 %v1320, %v1314
    %v2185 = vpack.c.b16 %v1321, %v1315
    %v2186 = vpack.c.b16 %v1322, %v1316
    %v2187 = vpack.c.b16 %v1323, %v1317
    %v2188 = vpack.c.b16 %v1324, %v1318
    %v2189 = vpack.c.b16 %v1331, %v1325
    %v2190 = vpack.c.b16 %v1332, %v1326
    %v2191 = vpack.c.b16 %v1333, %v1327
    %v2192 = vpack.c.b16 %v1334, %v1328
    %v2193 = vpack.c.b16 %v1335, %v1329
    %v2194 = vpack.c.b16 %v1336, %v1330
    %v2195 = vpack.c.b16 %v1343, %v1337
    %v2196 = vpack.c.b16 %v1344, %v1338
    %v2197 = vpack.c.b16 %v1345, %v1339
    %v2198 = vpack.c.b16 %v1346, %v1340
    %v2199 = vpack.c.b16 %v1347, %v1341
    %v2200 = vpack.c.b16 %v1348, %v1342
    %v2201 = vpack.c.b16 %v1355, %v1349
    %v2202 = vpack.c.b16 %v1356, %v1350
    %v2203 = vpack.c.b16 %v1357, %v1351
    %v2204 = vpack.c.b16 %v1358, %v1352
    %v2205 = vpack.c.b16 %v1359, %v1353
    %v2206 = vpack.c.b16 %v1360, %v1354
    %v2207 = vpack.c.b16 %v1367, %v1361
    %v2208 = vpack.c.b16 %v1368, %v1362
    %v2209 = vpack.c.b16 %v1369, %v1363
    %v2210 = vpack.c.b16 %v1370, %v1364
    %v2211 = vpack.c.b16 %v1371, %v1365
    %v2212 = vpack.c.b16 %v1372, %v1366
    %v2213 = vpack.c.b16 %v1379, %v1373
    %v2214 = vpack.c.b16 %v1380, %v1374
    %v2215 = vpack.c.b16 %v1381, %v1375
    %v2216 = vpack.c.b16 %v1382, %v1376
    %v2217 = vpack.c.b16 %v1383, %v1377
    %v2218 = vpack.c.b16 %v1384, %v1378
    %v2219 = vpack.c.b16 %v1391, %v1385
    %v2220 = vpack.c.b16 %v1392, %v1386
    %v2221 = vpack.c.b16 %v1393, %v1387
    %v2222 = vpack.c.b16 %v1394, %v1388
    %v2223 = vpack.c.b16 %v1395, %v1389
    %v2224 = vpack.c.b16 %v1396, %v1390
    %v2225 = vpack.c.b16 %v1403, %v1397
    %v2226 = vpack.c.b16 %v1404, %v1398
    %v2227 = vpack.c.b16 %v1405, %v1399
    %v2228 = vpack.c.b16 %v1406, %v1400
    %v2229 = vpack.c.b16 %v1407, %v1401
    %v2230 = vpack.c.b16 %v1408, %v1402
    %v2231 = vpack.c.b16 %v1415, %v1409
    %v2232 = vpack.c.b16 %v1416, %v1410
    %v2233 = vpack.c.b16 %v1417, %v1411
    %v2234 = vpack.c.b16 %v1418, %v1412
    %v2235 = vpack.c.b16 %v1419, %v1413
    %v2236 = vpack.c.b16 %v1420, %v1414
    %v2237 = vpack.c.b16 %v1427, %v1421
    %v2238 = vpack.c.b16 %v1428, %v1422
    %v2239 = vpack.c.b16 %v1429, %v1423
    %v2240 = vpack.c.b16 %v1430, %v1424
    %v2241 = vpack.c.b16 %v1431, %v1425
    %v2242 = vpack.c.b16 %v1432, %v1426
    %v2243 = vpack.c.b16 %v1439, %v1433
    %v2244 = vpack.c.b16 %v1440, %v1434
    %v2245 = vpack.c.b16 %v1441, %v1435
    %v2246 = vpack.c.b16 %v1442, %v1436
    %v2247 = vpack.c.b16 %v1443, %v1437
    %v2248 = vpack.c.b16 %v1444, %v1438
    %v2249 = vpack.c.b16 %v1451, %v1445
    %v2250 = vpack.c.b16 %v1452, %v1446
    %v2251 = vpack.c.b16 %v1453, %v1447
    %v2252 = vpack.c.b16 %v1454, %v1448
    %v2253 = vpack.c.b16 %v1455, %v1449
    %v2254 = vpack.c.b16 %v1456, %v1450
    %v2255 = vpack.c.b16 %v1463, %v1457
    %v2256 = vpack.c.b16 %v1464, %v1458
    %v2257 = vpack.c.b16 %v1465, %v1459
    %v2258 = vpack.c.b16 %v1466, %v1460
    %v2259 = vpack.c.b16 %v1467, %v1461
    %v2260 = vpack.c.b16 %v1468, %v1462
    %v2261 = vpack.c.b16 %v1475, %v1469
    %v2262 = vpack.c.b16 %v1476, %v1470
    %v2263 = vpack.c.b16 %v1477, %v1471
    %v2264 = vpack.c.b16 %v1478, %v1472
    %v2265 = vpack.c.b16 %v1479, %v1473
    %v2266 = vpack.c.b16 %v1480, %v1474
    %v2267 = vpack.c.b16 %v1487, %v1481
    %v2268 = vpack.c.b16 %v1488, %v1482
    %v2269 = vpack.c.b16 %v1489, %v1483
    %v2270 = vpack.c.b16 %v1490, %v1484
    %v2271 = vpack.c.b16 %v1491, %v1485
    %v2272 = vpack.c.b16 %v1492, %v1486
    %v2273 = vpack.c.b16 %v1499, %v1493
    %v2274 = vpack.c.b16 %v1500, %v1494
    %v2275 = vpack.c.b16 %v1501, %v1495
    %v2276 = vpack.c.b16 %v1502, %v1496
    %v2277 = vpack.c.b16 %v1503, %v1497
    %v2278 = vpack.c.b16 %v1504, %v1498
    %v2279 = vpack.c.b16 %v1511, %v1505
    %v2280 = vpack.c.b16 %v1512, %v1506
    %v2281 = vpack.c.b16 %v1513, %v1507
    %v2282 = vpack.c.b16 %v1514, %v1508
    %v2283 = vpack.c.b16 %v1515, %v1509
    %v2284 = vpack.c.b16 %v1516, %v1510
    %v2285 = vpack.c.b16 %v1523, %v1517
    %v2286 = vpack.c.b16 %v1524, %v1518
    %v2287 = vpack.c.b16 %v1525, %v1519
    %v2288 = vpack.c.b16 %v1526, %v1520
    %v2289 = vpack.c.b16 %v1527, %v1521
    %v2290 = vpack.c.b16 %v1528, %v1522
    %v2291 = vpack.c.b16 %v1535, %v1529
    %v2292 = vpack.c.b16 %v1536, %v1530
    %v2293 = vpack.c.b16 %v1537, %v1531
    %v2294 = vpack.c.b16 %v1538, %v1532
    %v2295 = vpack.c.b16 %v1539, %v1533
    %v2296 = vpack.c.b16 %v1540, %v1534
    %v2297 = vpack.c.b16 %v1547, %v1541
    %v2298 = vpack.c.b16 %v1548, %v1542
    %v2299 = vpack.c.b16 %v1549, %v1543
    %v2300 = vpack.c.b16 %v1550, %v1544
    %v2301 = vpack.c.b16 %v1551, %v1545
    %v2302 = vpack.c.b16 %v1552, %v1546
    %v2303 = vpack.c.b16 %v1559, %v1553
    %v2304 = vpack.c.b16 %v1560, %v1554
    %v2305 = vpack.c.b16 %v1561, %v1555
    %v2306 = vpack.c.b16 %v1562, %v1556
    %v2307 = vpack.c.b16 %v1563, %v1557
    %v2308 = vpack.c.b16 %v1564, %v1558
    %v2309 = vpack.c.b16 %v1571, %v1565
    %v2310 = vpack.c.b16 %v1572, %v1566
    %v2311 = vpack.c.b16 %v1573, %v1567
    %v2312 = vpack.c.b16 %v1574, %v1568
    %v2313 = vpack.c.b16 %v1575, %v1569
    %v2314 = vpack.c.b16 %v1576, %v1570
    %v2315 = vpack.c.b16 %v1583, %v1577
    %v2316 = vpack.c.b16 %v1584, %v1578
    %v2317 = vpack.c.b16 %v1585, %v1579
    %v2318 = vpack.c.b16 %v1586, %v1580
    %v2319 = vpack.c.b16 %v1587, %v1581
    %v2320 = vpack.c.b16 %v1588, %v1582
    %v2321 = vpack.c.b16 %v1595, %v1589
    %v2322 = vpack.c.b16 %v1596, %v1590
    %v2323 = vpack.c.b16 %v1597, %v1591
    %v2324 = vpack.c.b16 %v1598, %v1592
    %v2325 = vpack.c.b16 %v1599, %v1593
    %v2326 = vpack.c.b16 %v1600, %v1594
    %v2327 = vpack.c.b16 %v1607, %v1601
    %v2328 = vpack.c.b16 %v1608, %v1602
    %v2329 = vpack.c.b16 %v1609, %v1603
    %v2330 = vpack.c.b16 %v1610, %v1604
    %v2331 = vpack.c.b16 %v1611, %v1605
    %v2332 = vpack.c.b16 %v1612, %v1606
    %v2333 = vpack.c.b16 %v1619, %v1613
    %v2334 = vpack.c.b16 %v1620, %v1614
    %v2335 = vpack.c.b16 %v1621, %v1615
    %v2336 = vpack.c.b16 %v1622, %v1616
    %v2337 = vpack.c.b16 %v1623, %v1617
    %v2338 = vpack.c.b16 %v1624, %v1618
    %v2339 = vpack.c.b16 %v1631, %v1625
    %v2340 = vpack.c.b16 %v1632, %v1626
    %v2341 = vpack.c.b16 %v1633, %v1627
    %v2342 = vpack.c.b16 %v1634, %v1628
    %v2343 = vpack.c.b16 %v1635, %v1629
    %v2344 = vpack.c.b16 %v1636, %v1630
    %v2345 = vpack.c.b16 %v1643, %v1637
    %v2346 = vpack.c.b16 %v1644, %v1638
    %v2347 = vpack.c.b16 %v1645, %v1639
    %v2348 = vpack.c.b16 %v1646, %v1640
    %v2349 = vpack.c.b16 %v1647, %v1641
    %v2350 = vpack.c.b16 %v1648, %v1642
    %v2351 = vpack.c.b16 %v1655, %v1649
    %v2352 = vpack.c.b16 %v1656, %v1650
    %v2353 = vpack.c.b16 %v1657, %v1651
    %v2354 = vpack.c.b16 %v1658, %v1652
    %v2355 = vpack.c.b16 %v1659, %v1653
    %v2356 = vpack.c.b16 %v1660, %v1654
    %v2357 = vpack.c.b16 %v1667, %v1661
    %v2358 = vpack.c.b16 %v1668, %v1662
    %v2359 = vpack.c.b16 %v1669, %v1663
    %v2360 = vpack.c.b16 %v1670, %v1664
    %v2361 = vpack.c.b16 %v1671, %v1665
    %v2362 = vpack.c.b16 %v1672, %v1666
    %v2363 = vpack.c.b16 %v1679, %v1673
    %v2364 = vpack.c.b16 %v1680, %v1674
    %v2365 = vpack.c.b16 %v1681, %v1675
    %v2366 = vpack.c.b16 %v1682, %v1676
    %v2367 = vpack.c.b16 %v1683, %v1677
    %v2368 = vpack.c.b16 %v1684, %v1678
    %v2369 = vpack.c.b16 %v1691, %v1685
    %v2370 = vpack.c.b16 %v1692, %v1686
    %v2371 = vpack.c.b16 %v1693, %v1687
    %v2372 = vpack.c.b16 %v1694, %v1688
    %v2373 = vpack.c.b16 %v1695, %v1689
    %v2374 = vpack.c.b16 %v1696, %v1690
    %v2375 = vpack.c.b16 %v1703, %v1697
    %v2376 = vpack.c.b16 %v1704, %v1698
    %v2377 = vpack.c.b16 %v1705, %v1699
    %v2378 = vpack.c.b16 %v1706, %v1700
    %v2379 = vpack.c.b16 %v1707, %v1701
    %v2380 = vpack.c.b16 %v1708, %v1702
    %v2381 = vpack.c.b16 %v1715, %v1709
    %v2382 = vpack.c.b16 %v1716, %v1710
    %v2383 = vpack.c.b16 %v1717, %v1711
    %v2384 = vpack.c.b16 %v1718, %v1712
    %v2385 = vpack.c.b16 %v1719, %v1713
    %v2386 = vpack.c.b16 %v1720, %v1714
    %v2387 = vpack.c.b16 %v1727, %v1721
    %v2388 = vpack.c.b16 %v1728, %v1722
    %v2389 = vpack.c.b16 %v1729, %v1723
    %v2390 = vpack.c.b16 %v1730, %v1724
    %v2391 = vpack.c.b16 %v1731, %v1725
    %v2392 = vpack.c.b16 %v1732, %v1726
    %v2393 = vpack.c.b16 %v1739, %v1733
    %v2394 = vpack.c.b16 %v1740, %v1734
    %v2395 = vpack.c.b16 %v1741, %v1735
    %v2396 = vpack.c.b16 %v1742, %v1736
    %v2397 = vpack.c.b16 %v1743, %v1737
    %v2398 = vpack.c.b16 %v1744, %v1738
    %v2399 = vpack.c.b16 %v1751, %v1745
    %v2400 = vpack.c.b16 %v1752, %v1746
    %v2401 = vpack.c.b16 %v1753, %v1747
    %v2402 = vpack.c.b16 %v1754, %v1748
    %v2403 = vpack.c.b16 %v1755, %v1749
    %v2404 = vpack.c.b16 %v1756, %v1750
    %v2405 = vpack.c.b16 %v1763, %v1757
    %v2406 = vpack.c.b16 %v1764, %v1758
    %v2407 = vpack.c.b16 %v1765, %v1759
    %v2408 = vpack.c.b16 %v1766, %v1760
    %v2409 = vpack.c.b16 %v1767, %v1761
    %v2410 = vpack.c.b16 %v1768, %v1762
    %v2411 = vpack.c.b16 %v1775, %v1769
    %v2412 = vpack.c.b16 %v1776, %v1770
    %v2413 = vpack.c.b16 %v1777, %v1771
    %v2414 = vpack.c.b16 %v1778, %v1772
    %v2415 = vpack.c.b16 %v1779, %v1773
    %v2416 = vpack.c.b16 %v1780, %v1774
    %v2417 = vpack.c.b16 %v1787, %v1781
    %v2418 = vpack.c.b16 %v1788, %v1782
    %v2419 = vpack.c.b16 %v1789, %v1783
    %v2420 = vpack.c.b16 %v1790, %v1784
    %v2421 = vpack.c.b16 %v1791, %v1785
    %v2422 = vpack.c.b16 %v1792, %v1786
    %v2423 = vpack.c.b16 %v1799, %v1793
    %v2424 = vpack.c.b16 %v1800, %v1794
    %v2425 = vpack.c.b16 %v1801, %v1795
    %v2426 = vpack.c.b16 %v1802, %v1796
    %v2427 = vpack.c.b16 %v1803, %v1797
    %v2428 = vpack.c.b16 %v1804, %v1798
    %v2429 = vpack.c.b16 %v1811, %v1805
    %v2430 = vpack.c.b16 %v1812, %v1806
    %v2431 = vpack.c.b16 %v1813, %v1807
    %v2432 = vpack.c.b16 %v1814, %v1808
    %v2433 = vpack.c.b16 %v1815, %v1809
    %v2434 = vpack.c.b16 %v1816, %v1810
    %v2435 = vpack.c.b16 %v1823, %v1817
    %v2436 = vpack.c.b16 %v1824, %v1818
    %v2437 = vpack.c.b16 %v1825, %v1819
    %v2438 = vpack.c.b16 %v1826, %v1820
    %v2439 = vpack.c.b16 %v1827, %v1821
    %v2440 = vpack.c.b16 %v1828, %v1822
    %v2441 = vpack.c.b16 %v1835, %v1829
    %v2442 = vpack.c.b16 %v1836, %v1830
    %v2443 = vpack.c.b16 %v1837, %v1831
    %v2444 = vpack.c.b16 %v1838, %v1832
    %v2445 = vpack.c.b16 %v1839, %v1833
    %v2446 = vpack.c.b16 %v1840, %v1834
    %v2447 = vpack.c.b16 %v1847, %v1841
    %v2448 = vpack.c.b16 %v1848, %v1842
    %v2449 = vpack.c.b16 %v1849, %v1843
    %v2450 = vpack.c.b16 %v1850, %v1844
    %v2451 = vpack.c.b16 %v1851, %v1845
    %v2452 = vpack.c.b16 %v1852, %v1846
    %v2453 = vpack.c.b16 %v1859, %v1853
    %v2454 = vpack.c.b16 %v1860, %v1854
    %v2455 = vpack.c.b16 %v1861, %v1855
    %v2456 = vpack.c.b16 %v1862, %v1856
    %v2457 = vpack.c.b16 %v1863, %v1857
    %v2458 = vpack.c.b16 %v1864, %v1858
    %v2459 = vpack.c.b16 %v1871, %v1865
    %v2460 = vpack.c.b16 %v1872, %v1866
    %v2461 = vpack.c.b16 %v1873, %v1867
    %v2462 = vpack.c.b16 %v1874, %v1868
    %v2463 = vpack.c.b16 %v1875, %v1869
    %v2464 = vpack.c.b16 %v1876, %v1870
    %v2465 = vpack.c.b16 %v1883, %v1877
    %v2466 = vpack.c.b16 %v1884, %v1878
    %v2467 = vpack.c.b16 %v1885, %v1879
    %v2468 = vpack.c.b16 %v1886, %v1880
    %v2469 = vpack.c.b16 %v1887, %v1881
    %v2470 = vpack.c.b16 %v1888, %v1882
    %v2471 = vpack.c.b16 %v1895, %v1889
    %v2472 = vpack.c.b16 %v1896, %v1890
    %v2473 = vpack.c.b16 %v1897, %v1891
    %v2474 = vpack.c.b16 %v1898, %v1892
    %v2475 = vpack.c.b16 %v1899, %v1893
    %v2476 = vpack.c.b16 %v1900, %v1894
    %v2477 = vpack.c.b16 %v1907, %v1901
    %v2478 = vpack.c.b16 %v1908, %v1902
    %v2479 = vpack.c.b16 %v1909, %v1903
    %v2480 = vpack.c.b16 %v1910, %v1904
    %v2481 = vpack.c.b16 %v1911, %v1905
    %v2482 = vpack.c.b16 %v1912, %v1906
    %v2483 = vpack.c.b16 %v1919, %v1913
    %v2484 = vpack.c.b16 %v1920, %v1914
    %v2485 = vpack.c.b16 %v1921, %v1915
    %v2486 = vpack.c.b16 %v1922, %v1916
    %v2487 = vpack.c.b16 %v1923, %v1917
    %v2488 = vpack.c.b16 %v1924, %v1918
    %v2489 = vpack.c.b16 %v1931, %v1925
    %v2490 = vpack.c.b16 %v1932, %v1926
    %v2491 = vpack.c.b16 %v1933, %v1927
    %v2492 = vpack.c.b16 %v1934, %v1928
    %v2493 = vpack.c.b16 %v1935, %v1929
    %v2494 = vpack.c.b16 %v1936, %v1930
    %v2495 = vpack.c.b16 %v1943, %v1937
    %v2496 = vpack.c.b16 %v1944, %v1938
    %v2497 = vpack.c.b16 %v1945, %v1939
    %v2498 = vpack.c.b16 %v1946, %v1940
    %v2499 = vpack.c.b16 %v1947, %v1941
    %v2500 = vpack.c.b16 %v1948, %v1942
    %v2501 = vpack.c.b16 %v1955, %v1949
    %v2502 = vpack.c.b16 %v1956, %v1950
    %v2503 = vpack.c.b16 %v1957, %v1951
    %v2504 = vpack.c.b16 %v1958, %v1952
    %v2505 = vpack.c.b16 %v1959, %v1953
    %v2506 = vpack.c.b16 %v1960, %v1954
    %v2507 = vpack.c.b16 %v1967, %v1961
    %v2508 = vpack.c.b16 %v1968, %v1962
    %v2509 = vpack.c.b16 %v1969, %v1963
    %v2510 = vpack.c.b16 %v1970, %v1964
    %v2511 = vpack.c.b16 %v1971, %v1965
    %v2512 = vpack.c.b16 %v1972, %v1966
    %v2513 = vpack.c.b16 %v1979, %v1973
    %v2514 = vpack.c.b16 %v1980, %v1974
    %v2515 = vpack.c.b16 %v1981, %v1975
    %v2516 = vpack.c.b16 %v1982, %v1976
    %v2517 = vpack.c.b16 %v1983, %v1977
    %v2518 = vpack.c.b16 %v1984, %v1978
    %v2519 = vpack.c.b16 %v1991, %v1985
    %v2520 = vpack.c.b16 %v1992, %v1986
    %v2521 = vpack.c.b16 %v1993, %v1987
    %v2522 = vpack.c.b16 %v1994, %v1988
    %v2523 = vpack.c.b16 %v1995, %v1989
    %v2524 = vpack.c.b16 %v1996, %v1990
    %v2525 = vpack.c.b16 %v2003, %v1997
    %v2526 = vpack.c.b16 %v2004, %v1998
    %v2527 = vpack.c.b16 %v2005, %v1999
    %v2528 = vpack.c.b16 %v2006, %v2000
    %v2529 = vpack.c.b16 %v2007, %v2001
    %v2530 = vpack.c.b16 %v2008, %v2002
    %v2531 = vpack.c.b16 %v2015, %v2009
    %v2532 = vpack.c.b16 %v2016, %v2010
    %v2533 = vpack.c.b16 %v2017, %v2011
    %v2534 = vpack.c.b16 %v2018, %v2012
    %v2535 = vpack.c.b16 %v2019, %v2013
    %v2536 = vpack.c.b16 %v2020, %v2014
    %v2537 = vpack.c.b16 %v2027, %v2021
    %v2538 = vpack.c.b16 %v2028, %v2022
    %v2539 = vpack.c.b16 %v2029, %v2023
    %v2540 = vpack.c.b16 %v2030, %v2024
    %v2541 = vpack.c.b16 %v2031, %v2025
    %v2542 = vpack.c.b16 %v2032, %v2026
    %v2543 = vpack.c.b16 %v2039, %v2033
    %v2544 = vpack.c.b16 %v2040, %v2034
    %v2545 = vpack.c.b16 %v2041, %v2035
    %v2546 = vpack.c.b16 %v2042, %v2036
    %v2547 = vpack.c.b16 %v2043, %v2037
    %v2548 = vpack.c.b16 %v2044, %v2038
    %v2549 = vpack.c.b16 %v2051, %v2045
    %v2550 = vpack.c.b16 %v2052, %v2046
    %v2551 = vpack.c.b16 %v2053, %v2047
    %v2552 = vpack.c.b16 %v2054, %v2048
    %v2553 = vpack.c.b16 %v2055, %v2049
    %v2554 = vpack.c.b16 %v2056, %v2050
    %v2555 = vpack.c.b16 %v2063, %v2057
    %v2556 = vpack.c.b16 %v2064, %v2058
    %v2557 = vpack.c.b16 %v2065, %v2059
    %v2558 = vpack.c.b16 %v2066, %v2060
    %v2559 = vpack.c.b16 %v2067, %v2061
    %v2560 = vpack.c.b16 %v2068, %v2062
    %v2561 = vpack.c.b16 %v2075, %v2069
    %v2562 = vpack.c.b16 %v2076, %v2070
    %v2563 = vpack.c.b16 %v2077, %v2071
    %v2564 = vpack.c.b16 %v2078, %v2072
    %v2565 = vpack.c.b16 %v2079, %v2073
    %v2566 = vpack.c.b16 %v2080, %v2074
    %v2567 = vpack.c.b16 %v2087, %v2081
    %v2568 = vpack.c.b16 %v2088, %v2082
    %v2569 = vpack.c.b16 %v2089, %v2083
    %v2570 = vpack.c.b16 %v2090, %v2084
    %v2571 = vpack.c.b16 %v2091, %v2085
    %v2572 = vpack.c.b16 %v2092, %v2086
    %3053 = vmatprep.subr.bf16.mxu0 %v2094
    %3054 = vmatpush1.bf16.msra.mxu0 %v2093
    %3055 = vmatprep.subr.bf16.mxu0 %v2100
    %3056 = vmatpush1.bf16.msra.mxu0 %v2099
    %3057 = vmatprep.subr.bf16.mxu0 %v2106
    %3058 = vmatpush1.bf16.msra.mxu0 %v2105
    %3059 = vmatprep.subr.bf16.mxu0 %v2112
    %3060 = vmatpush1.bf16.msra.mxu0 %v2111
    %3061 = vmatprep.subr.bf16.mxu0 %v2118
    %3062 = vmatpush1.bf16.msra.mxu0 %v2117
    %3063 = vmatprep.subr.bf16.mxu0 %v2124
    %3064 = vmatpush1.bf16.msra.mxu0 %v2123
    %3065 = vmatprep.subr.bf16.mxu0 %v2130
    %3066 = vmatpush1.bf16.msra.mxu0 %v2129
    %3067 = vmatprep.subr.bf16.mxu0 %v2136
    %3068 = vmatpush1.bf16.msra.mxu0 %v2135
    %3069 = vmatprep.subr.bf16.mxu0 %v2142
    %3070 = vmatpush1.bf16.msra.mxu0 %v2141
    %3071 = vmatprep.subr.bf16.mxu0 %v2148
    %3072 = vmatpush1.bf16.msra.mxu0 %v2147
    %3073 = vmatprep.subr.bf16.mxu0 %v2154
    %3074 = vmatpush1.bf16.msra.mxu0 %v2153
    %3075 = vmatprep.subr.bf16.mxu0 %v2160
    %3076 = vmatpush1.bf16.msra.mxu0 %v2159
    %3077 = vmatprep.subr.bf16.mxu0 %v2166
    %3078 = vmatpush1.bf16.msra.mxu0 %v2165
    %3079 = vmatprep.subr.bf16.mxu0 %v2172
    %3080 = vmatpush1.bf16.msra.mxu0 %v2171
    %3081 = vmatprep.subr.bf16.mxu0 %v2178
    %3082 = vmatpush1.bf16.msra.mxu0 %v2177
    %3083 = vmatprep.subr.bf16.mxu0 %v2184
    %3084 = vmatpush1.bf16.msra.mxu0 %v2183
    %3085 = vmatprep.mubr.bf16.mxu0 %v132
    %3086 = vmatmul.mubr.bf16.gmra.mrb[0].mxu0 %v131
    %v3087 = vpop.f32.mrb[0].mxu0
    %v3088 = vadd.f32 %v626, %v3087
    %v3089 = vpop.f32.mrb[0].mxu0
    %v3090 = vadd.f32 %v630, %v3089
    %v3091 = vpop.f32.mrb[0].mxu0
    %v3092 = vpop.f32.mrb[0].mxu0
    %3093 = vdwg.mxu0
    %3094 = vmatprep.subr.bf16.mxu0 %v2190
    %3095 = vmatpush1.bf16.msra.mxu0 %v2189
    %3096 = vmatprep.subr.bf16.mxu0 %v2196
    %3097 = vmatpush1.bf16.msra.mxu0 %v2195
    %3098 = vmatprep.subr.bf16.mxu0 %v2202
    %3099 = vmatpush1.bf16.msra.mxu0 %v2201
    %3100 = vmatprep.subr.bf16.mxu0 %v2208
    %3101 = vmatpush1.bf16.msra.mxu0 %v2207
    %3102 = vmatprep.subr.bf16.mxu0 %v2214
    %3103 = vmatpush1.bf16.msra.mxu0 %v2213
    %3104 = vmatprep.subr.bf16.mxu0 %v2220
    %3105 = vmatpush1.bf16.msra.mxu0 %v2219
    %3106 = vmatprep.subr.bf16.mxu0 %v2226
    %3107 = vmatpush1.bf16.msra.mxu0 %v2225
    %3108 = vmatprep.subr.bf16.mxu0 %v2232
    %3109 = vmatpush1.bf16.msra.mxu0 %v2231
    %3110 = vmatprep.subr.bf16.mxu0 %v2238
    %3111 = vmatpush1.bf16.msra.mxu0 %v2237
    %3112 = vmatprep.subr.bf16.mxu0 %v2244
    %3113 = vmatpush1.bf16.msra.mxu0 %v2243
    %3114 = vmatprep.subr.bf16.mxu0 %v2250
    %3115 = vmatpush1.bf16.msra.mxu0 %v2249
    %3116 = vmatprep.subr.bf16.mxu0 %v2256
    %3117 = vmatpush1.bf16.msra.mxu0 %v2255
    %3118 = vmatprep.subr.bf16.mxu0 %v2262
    %3119 = vmatpush1.bf16.msra.mxu0 %v2261
    %3120 = vmatprep.subr.bf16.mxu0 %v2268
    %3121 = vmatpush1.bf16.msra.mxu0 %v2267
    %3122 = vmatprep.subr.bf16.mxu0 %v2274
    %3123 = vmatpush1.bf16.msra.mxu0 %v2273
    %3124 = vmatprep.subr.bf16.mxu0 %v2280
    %3125 = vmatpush1.bf16.msra.mxu0 %v2279
    %3126 = vmatprep.mubr.bf16.mxu0 %v134
    %3127 = vmatmul.mubr.bf16.gmra.mrb[0].mxu0 %v133
    %v3128 = vpop.f32.mrb[0].mxu0
    %v3129 = vadd.f32 %v3088, %v3128
    %v3130 = vpop.f32.mrb[0].mxu0
    %v3131 = vadd.f32 %v3090, %v3130
    %v3132 = vpop.f32.mrb[0].mxu0
    %v3133 = vpop.f32.mrb[0].mxu0
    %3134 = vdwg.mxu0
    %3135 = vmatprep.subr.bf16.mxu0 %v2286
    %3136 = vmatpush1.bf16.msra.mxu0 %v2285
    %3137 = vmatprep.subr.bf16.mxu0 %v2292
    %3138 = vmatpush1.bf16.msra.mxu0 %v2291
    %3139 = vmatprep.subr.bf16.mxu0 %v2298
    %3140 = vmatpush1.bf16.msra.mxu0 %v2297
    %3141 = vmatprep.subr.bf16.mxu0 %v2304
    %3142 = vmatpush1.bf16.msra.mxu0 %v2303
    %3143 = vmatprep.subr.bf16.mxu0 %v2310
    %3144 = vmatpush1.bf16.msra.mxu0 %v2309
    %3145 = vmatprep.subr.bf16.mxu0 %v2316
    %3146 = vmatpush1.bf16.msra.mxu0 %v2315
    %3147 = vmatprep.subr.bf16.mxu0 %v2322
    %3148 = vmatpush1.bf16.msra.mxu0 %v2321
    %3149 = vmatprep.subr.bf16.mxu0 %v2328
    %3150 = vmatpush1.bf16.msra.mxu0 %v2327
    %3151 = vmatprep.subr.bf16.mxu0 %v2334
    %3152 = vmatpush1.bf16.msra.mxu0 %v2333
    %3153 = vmatprep.subr.bf16.mxu0 %v2340
    %3154 = vmatpush1.bf16.msra.mxu0 %v2339
    %3155 = vmatprep.subr.bf16.mxu0 %v2346
    %3156 = vmatpush1.bf16.msra.mxu0 %v2345
    %3157 = vmatprep.subr.bf16.mxu0 %v2352
    %3158 = vmatpush1.bf16.msra.mxu0 %v2351
    %3159 = vmatprep.subr.bf16.mxu0 %v2358
    %3160 = vmatpush1.bf16.msra.mxu0 %v2357
    %3161 = vmatprep.subr.bf16.mxu0 %v2364
    %3162 = vmatpush1.bf16.msra.mxu0 %v2363
    %3163 = vmatprep.subr.bf16.mxu0 %v2370
    %3164 = vmatpush1.bf16.msra.mxu0 %v2369
    %3165 = vmatprep.subr.bf16.mxu0 %v2376
    %3166 = vmatpush1.bf16.msra.mxu0 %v2375
    %3167 = vmatprep.mubr.bf16.mxu0 %v136
    %3168 = vmatmul.mubr.bf16.gmra.mrb[0].mxu0 %v135
    %v3169 = vpop.f32.mrb[0].mxu0
    %v3170 = vadd.f32 %v3129, %v3169
    %v3171 = vpop.f32.mrb[0].mxu0
    %v3172 = vadd.f32 %v3131, %v3171
    %v3173 = vpop.f32.mrb[0].mxu0
    %v3174 = vpop.f32.mrb[0].mxu0
    %3175 = vdwg.mxu0
    %3176 = vmatprep.subr.bf16.mxu0 %v2382
    %3177 = vmatpush1.bf16.msra.mxu0 %v2381
    %3178 = vmatprep.subr.bf16.mxu0 %v2388
    %3179 = vmatpush1.bf16.msra.mxu0 %v2387
    %3180 = vmatprep.subr.bf16.mxu0 %v2394
    %3181 = vmatpush1.bf16.msra.mxu0 %v2393
    %3182 = vmatprep.subr.bf16.mxu0 %v2400
    %3183 = vmatpush1.bf16.msra.mxu0 %v2399
    %3184 = vmatprep.subr.bf16.mxu0 %v2406
    %3185 = vmatpush1.bf16.msra.mxu0 %v2405
    %3186 = vmatprep.subr.bf16.mxu0 %v2412
    %3187 = vmatpush1.bf16.msra.mxu0 %v2411
    %3188 = vmatprep.subr.bf16.mxu0 %v2418
    %3189 = vmatpush1.bf16.msra.mxu0 %v2417
    %3190 = vmatprep.subr.bf16.mxu0 %v2424
    %3191 = vmatpush1.bf16.msra.mxu0 %v2423
    %3192 = vmatprep.subr.bf16.mxu0 %v2430
    %3193 = vmatpush1.bf16.msra.mxu0 %v2429
    %3194 = vmatprep.subr.bf16.mxu0 %v2436
    %3195 = vmatpush1.bf16.msra.mxu0 %v2435
    %3196 = vmatprep.subr.bf16.mxu0 %v2442
    %3197 = vmatpush1.bf16.msra.mxu0 %v2441
    %3198 = vmatprep.subr.bf16.mxu0 %v2448
    %3199 = vmatpush1.bf16.msra.mxu0 %v2447
    %3200 = vmatprep.subr.bf16.mxu0 %v2454
    %3201 = vmatpush1.bf16.msra.mxu0 %v2453
    %3202 = vmatprep.subr.bf16.mxu0 %v2460
    %3203 = vmatpush1.bf16.msra.mxu0 %v2459
    %3204 = vmatprep.subr.bf16.mxu0 %v2466
    %3205 = vmatpush1.bf16.msra.mxu0 %v2465
    %3206 = vmatprep.subr.bf16.mxu0 %v2472
    %3207 = vmatpush1.bf16.msra.mxu0 %v2471
    %3208 = vmatprep.mubr.bf16.mxu0 %v138
    %3209 = vmatmul.mubr.bf16.gmra.mrb[0].mxu0 %v137
    %v3210 = vpop.f32.mrb[0].mxu0
    %v3211 = vadd.f32 %v3170, %v3210
    %v3212 = vpop.f32.mrb[0].mxu0
    %v3213 = vadd.f32 %v3172, %v3212
    %v3214 = vpop.f32.mrb[0].mxu0
    %v3215 = vpop.f32.mrb[0].mxu0
    %3216 = vdwg.mxu0
    %3217 = vmatprep.subr.bf16.mxu0 %v2478
    %3218 = vmatpush1.bf16.msra.mxu0 %v2477
    %3219 = vmatprep.subr.bf16.mxu0 %v2484
    %3220 = vmatpush1.bf16.msra.mxu0 %v2483
    %3221 = vmatprep.subr.bf16.mxu0 %v2490
    %3222 = vmatpush1.bf16.msra.mxu0 %v2489
    %3223 = vmatprep.subr.bf16.mxu0 %v2496
    %3224 = vmatpush1.bf16.msra.mxu0 %v2495
    %3225 = vmatprep.subr.bf16.mxu0 %v2502
    %3226 = vmatpush1.bf16.msra.mxu0 %v2501
    %3227 = vmatprep.subr.bf16.mxu0 %v2508
    %3228 = vmatpush1.bf16.msra.mxu0 %v2507
    %3229 = vmatprep.subr.bf16.mxu0 %v2514
    %3230 = vmatpush1.bf16.msra.mxu0 %v2513
    %3231 = vmatprep.subr.bf16.mxu0 %v2520
    %3232 = vmatpush1.bf16.msra.mxu0 %v2519
    %3233 = vmatprep.subr.bf16.mxu0 %v2526
    %3234 = vmatpush1.bf16.msra.mxu0 %v2525
    %3235 = vmatprep.subr.bf16.mxu0 %v2532
    %3236 = vmatpush1.bf16.msra.mxu0 %v2531
    %3237 = vmatprep.subr.bf16.mxu0 %v2538
    %3238 = vmatpush1.bf16.msra.mxu0 %v2537
    %3239 = vmatprep.subr.bf16.mxu0 %v2544
    %3240 = vmatpush1.bf16.msra.mxu0 %v2543
    %3241 = vmatprep.subr.bf16.mxu0 %v2550
    %3242 = vmatpush1.bf16.msra.mxu0 %v2549
    %3243 = vmatprep.subr.bf16.mxu0 %v2556
    %3244 = vmatpush1.bf16.msra.mxu0 %v2555
    %3245 = vmatprep.subr.bf16.mxu0 %v2562
    %3246 = vmatpush1.bf16.msra.mxu0 %v2561
    %3247 = vmatprep.subr.bf16.mxu0 %v2568
    %3248 = vmatpush1.bf16.msra.mxu0 %v2567
    %3249 = vmatprep.mubr.bf16.mxu0 %v140
    %3250 = vmatmul.mubr.bf16.gmra.mrb[0].mxu0 %v139
    %v3251 = vpop.f32.mrb[0].mxu0
    %v3252 = vadd.f32 %v3211, %v3251
    %v3253 = vpop.f32.mrb[0].mxu0
    %v3254 = vadd.f32 %v3213, %v3253
    %v3255 = vpop.f32.mrb[0].mxu0
    %v3256 = vpop.f32.mrb[0].mxu0
    %3257 = vdwg.mxu0
    %3258 = vmatprep.subr.bf16.mxu0 %v2096
    %3259 = vmatpush1.bf16.msra.mxu0 %v2095
    %3260 = vmatprep.subr.bf16.mxu0 %v2102
    %3261 = vmatpush1.bf16.msra.mxu0 %v2101
    %3262 = vmatprep.subr.bf16.mxu0 %v2108
    %3263 = vmatpush1.bf16.msra.mxu0 %v2107
    %3264 = vmatprep.subr.bf16.mxu0 %v2114
    %3265 = vmatpush1.bf16.msra.mxu0 %v2113
    %3266 = vmatprep.subr.bf16.mxu0 %v2120
    %3267 = vmatpush1.bf16.msra.mxu0 %v2119
    %3268 = vmatprep.subr.bf16.mxu0 %v2126
    %3269 = vmatpush1.bf16.msra.mxu0 %v2125
    %3270 = vmatprep.subr.bf16.mxu0 %v2132
    %3271 = vmatpush1.bf16.msra.mxu0 %v2131
    %3272 = vmatprep.subr.bf16.mxu0 %v2138
    %3273 = vmatpush1.bf16.msra.mxu0 %v2137
    %3274 = vmatprep.subr.bf16.mxu0 %v2144
    %3275 = vmatpush1.bf16.msra.mxu0 %v2143
    %3276 = vmatprep.subr.bf16.mxu0 %v2150
    %3277 = vmatpush1.bf16.msra.mxu0 %v2149
    %3278 = vmatprep.subr.bf16.mxu0 %v2156
    %3279 = vmatpush1.bf16.msra.mxu0 %v2155
    %3280 = vmatprep.subr.bf16.mxu0 %v2162
    %3281 = vmatpush1.bf16.msra.mxu0 %v2161
    %3282 = vmatprep.subr.bf16.mxu0 %v2168
    %3283 = vmatpush1.bf16.msra.mxu0 %v2167
    %3284 = vmatprep.subr.bf16.mxu0 %v2174
    %3285 = vmatpush1.bf16.msra.mxu0 %v2173
    %3286 = vmatprep.subr.bf16.mxu0 %v2180
    %3287 = vmatpush1.bf16.msra.mxu0 %v2179
    %3288 = vmatprep.subr.bf16.mxu0 %v2186
    %3289 = vmatpush1.bf16.msra.mxu0 %v2185
    %3290 = vmatprep.mubr.bf16.mxu0 %v132
    %3291 = vmatmul.mubr.bf16.gmra.mrb[0].mxu0 %v131
    %v3292 = vpop.f32.mrb[0].mxu0
    %v3293 = vadd.f32 %v634, %v3292
    %v3294 = vpop.f32.mrb[0].mxu0
    %v3295 = vadd.f32 %v638, %v3294
    %v3296 = vpop.f32.mrb[0].mxu0
    %v3297 = vpop.f32.mrb[0].mxu0
    %3298 = vdwg.mxu0
    %3299 = vmatprep.subr.bf16.mxu0 %v2192
    %3300 = vmatpush1.bf16.msra.mxu0 %v2191
    %3301 = vmatprep.subr.bf16.mxu0 %v2198
    %3302 = vmatpush1.bf16.msra.mxu0 %v2197
    %3303 = vmatprep.subr.bf16.mxu0 %v2204
    %3304 = vmatpush1.bf16.msra.mxu0 %v2203
    %3305 = vmatprep.subr.bf16.mxu0 %v2210
    %3306 = vmatpush1.bf16.msra.mxu0 %v2209
    %3307 = vmatprep.subr.bf16.mxu0 %v2216
    %3308 = vmatpush1.bf16.msra.mxu0 %v2215
    %3309 = vmatprep.subr.bf16.mxu0 %v2222
    %3310 = vmatpush1.bf16.msra.mxu0 %v2221
    %3311 = vmatprep.subr.bf16.mxu0 %v2228
    %3312 = vmatpush1.bf16.msra.mxu0 %v2227
    %3313 = vmatprep.subr.bf16.mxu0 %v2234
    %3314 = vmatpush1.bf16.msra.mxu0 %v2233
    %3315 = vmatprep.subr.bf16.mxu0 %v2240
    %3316 = vmatpush1.bf16.msra.mxu0 %v2239
    %3317 = vmatprep.subr.bf16.mxu0 %v2246
    %3318 = vmatpush1.bf16.msra.mxu0 %v2245
    %3319 = vmatprep.subr.bf16.mxu0 %v2252
    %3320 = vmatpush1.bf16.msra.mxu0 %v2251
    %3321 = vmatprep.subr.bf16.mxu0 %v2258
    %3322 = vmatpush1.bf16.msra.mxu0 %v2257
    %3323 = vmatprep.subr.bf16.mxu0 %v2264
    %3324 = vmatpush1.bf16.msra.mxu0 %v2263
    %3325 = vmatprep.subr.bf16.mxu0 %v2270
    %3326 = vmatpush1.bf16.msra.mxu0 %v2269
    %3327 = vmatprep.subr.bf16.mxu0 %v2276
    %3328 = vmatpush1.bf16.msra.mxu0 %v2275
    %3329 = vmatprep.subr.bf16.mxu0 %v2282
    %3330 = vmatpush1.bf16.msra.mxu0 %v2281
    %3331 = vmatprep.mubr.bf16.mxu0 %v134
    %3332 = vmatmul.mubr.bf16.gmra.mrb[0].mxu0 %v133
    %v3333 = vpop.f32.mrb[0].mxu0
    %v3334 = vadd.f32 %v3293, %v3333
    %v3335 = vpop.f32.mrb[0].mxu0
    %v3336 = vadd.f32 %v3295, %v3335
    %v3337 = vpop.f32.mrb[0].mxu0
    %v3338 = vpop.f32.mrb[0].mxu0
    %3339 = vdwg.mxu0
    %3340 = vmatprep.subr.bf16.mxu0 %v2288
    %3341 = vmatpush1.bf16.msra.mxu0 %v2287
    %3342 = vmatprep.subr.bf16.mxu0 %v2294
    %3343 = vmatpush1.bf16.msra.mxu0 %v2293
    %3344 = vmatprep.subr.bf16.mxu0 %v2300
    %3345 = vmatpush1.bf16.msra.mxu0 %v2299
    %3346 = vmatprep.subr.bf16.mxu0 %v2306
    %3347 = vmatpush1.bf16.msra.mxu0 %v2305
    %3348 = vmatprep.subr.bf16.mxu0 %v2312
    %3349 = vmatpush1.bf16.msra.mxu0 %v2311
    %3350 = vmatprep.subr.bf16.mxu0 %v2318
    %3351 = vmatpush1.bf16.msra.mxu0 %v2317
    %3352 = vmatprep.subr.bf16.mxu0 %v2324
    %3353 = vmatpush1.bf16.msra.mxu0 %v2323
    %3354 = vmatprep.subr.bf16.mxu0 %v2330
    %3355 = vmatpush1.bf16.msra.mxu0 %v2329
    %3356 = vmatprep.subr.bf16.mxu0 %v2336
    %3357 = vmatpush1.bf16.msra.mxu0 %v2335
    %3358 = vmatprep.subr.bf16.mxu0 %v2342
    %3359 = vmatpush1.bf16.msra.mxu0 %v2341
    %3360 = vmatprep.subr.bf16.mxu0 %v2348
    %3361 = vmatpush1.bf16.msra.mxu0 %v2347
    %3362 = vmatprep.subr.bf16.mxu0 %v2354
    %3363 = vmatpush1.bf16.msra.mxu0 %v2353
    %3364 = vmatprep.subr.bf16.mxu0 %v2360
    %3365 = vmatpush1.bf16.msra.mxu0 %v2359
    %3366 = vmatprep.subr.bf16.mxu0 %v2366
    %3367 = vmatpush1.bf16.msra.mxu0 %v2365
    %3368 = vmatprep.subr.bf16.mxu0 %v2372
    %3369 = vmatpush1.bf16.msra.mxu0 %v2371
    %3370 = vmatprep.subr.bf16.mxu0 %v2378
    %3371 = vmatpush1.bf16.msra.mxu0 %v2377
    %3372 = vmatprep.mubr.bf16.mxu0 %v136
    %3373 = vmatmul.mubr.bf16.gmra.mrb[0].mxu0 %v135
    %v3374 = vpop.f32.mrb[0].mxu0
    %v3375 = vadd.f32 %v3334, %v3374
    %v3376 = vpop.f32.mrb[0].mxu0
    %v3377 = vadd.f32 %v3336, %v3376
    %v3378 = vpop.f32.mrb[0].mxu0
    %v3379 = vpop.f32.mrb[0].mxu0
    %3380 = vdwg.mxu0
    %3381 = vmatprep.subr.bf16.mxu0 %v2384
    %3382 = vmatpush1.bf16.msra.mxu0 %v2383
    %3383 = vmatprep.subr.bf16.mxu0 %v2390
    %3384 = vmatpush1.bf16.msra.mxu0 %v2389
    %3385 = vmatprep.subr.bf16.mxu0 %v2396
    %3386 = vmatpush1.bf16.msra.mxu0 %v2395
    %3387 = vmatprep.subr.bf16.mxu0 %v2402
    %3388 = vmatpush1.bf16.msra.mxu0 %v2401
    %3389 = vmatprep.subr.bf16.mxu0 %v2408
    %3390 = vmatpush1.bf16.msra.mxu0 %v2407
    %3391 = vmatprep.subr.bf16.mxu0 %v2414
    %3392 = vmatpush1.bf16.msra.mxu0 %v2413
    %3393 = vmatprep.subr.bf16.mxu0 %v2420
    %3394 = vmatpush1.bf16.msra.mxu0 %v2419
    %3395 = vmatprep.subr.bf16.mxu0 %v2426
    %3396 = vmatpush1.bf16.msra.mxu0 %v2425
    %3397 = vmatprep.subr.bf16.mxu0 %v2432
    %3398 = vmatpush1.bf16.msra.mxu0 %v2431
    %3399 = vmatprep.subr.bf16.mxu0 %v2438
    %3400 = vmatpush1.bf16.msra.mxu0 %v2437
    %3401 = vmatprep.subr.bf16.mxu0 %v2444
    %3402 = vmatpush1.bf16.msra.mxu0 %v2443
    %3403 = vmatprep.subr.bf16.mxu0 %v2450
    %3404 = vmatpush1.bf16.msra.mxu0 %v2449
    %3405 = vmatprep.subr.bf16.mxu0 %v2456
    %3406 = vmatpush1.bf16.msra.mxu0 %v2455
    %3407 = vmatprep.subr.bf16.mxu0 %v2462
    %3408 = vmatpush1.bf16.msra.mxu0 %v2461
    %3409 = vmatprep.subr.bf16.mxu0 %v2468
    %3410 = vmatpush1.bf16.msra.mxu0 %v2467
    %3411 = vmatprep.subr.bf16.mxu0 %v2474
    %3412 = vmatpush1.bf16.msra.mxu0 %v2473
    %3413 = vmatprep.mubr.bf16.mxu0 %v138
    %3414 = vmatmul.mubr.bf16.gmra.mrb[0].mxu0 %v137
    %v3415 = vpop.f32.mrb[0].mxu0
    %v3416 = vadd.f32 %v3375, %v3415
    %v3417 = vpop.f32.mrb[0].mxu0
    %v3418 = vadd.f32 %v3377, %v3417
    %v3419 = vpop.f32.mrb[0].mxu0
    %v3420 = vpop.f32.mrb[0].mxu0
    %3421 = vdwg.mxu0
    %3422 = vmatprep.subr.bf16.mxu0 %v2480
    %3423 = vmatpush1.bf16.msra.mxu0 %v2479
    %3424 = vmatprep.subr.bf16.mxu0 %v2486
    %3425 = vmatpush1.bf16.msra.mxu0 %v2485
    %3426 = vmatprep.subr.bf16.mxu0 %v2492
    %3427 = vmatpush1.bf16.msra.mxu0 %v2491
    %3428 = vmatprep.subr.bf16.mxu0 %v2498
    %3429 = vmatpush1.bf16.msra.mxu0 %v2497
    %3430 = vmatprep.subr.bf16.mxu0 %v2504
    %3431 = vmatpush1.bf16.msra.mxu0 %v2503
    %3432 = vmatprep.subr.bf16.mxu0 %v2510
    %3433 = vmatpush1.bf16.msra.mxu0 %v2509
    %3434 = vmatprep.subr.bf16.mxu0 %v2516
    %3435 = vmatpush1.bf16.msra.mxu0 %v2515
    %3436 = vmatprep.subr.bf16.mxu0 %v2522
    %3437 = vmatpush1.bf16.msra.mxu0 %v2521
    %3438 = vmatprep.subr.bf16.mxu0 %v2528
    %3439 = vmatpush1.bf16.msra.mxu0 %v2527
    %3440 = vmatprep.subr.bf16.mxu0 %v2534
    %3441 = vmatpush1.bf16.msra.mxu0 %v2533
    %3442 = vmatprep.subr.bf16.mxu0 %v2540
    %3443 = vmatpush1.bf16.msra.mxu0 %v2539
    %3444 = vmatprep.subr.bf16.mxu0 %v2546
    %3445 = vmatpush1.bf16.msra.mxu0 %v2545
    %3446 = vmatprep.subr.bf16.mxu0 %v2552
    %3447 = vmatpush1.bf16.msra.mxu0 %v2551
    %3448 = vmatprep.subr.bf16.mxu0 %v2558
    %3449 = vmatpush1.bf16.msra.mxu0 %v2557
    %3450 = vmatprep.subr.bf16.mxu0 %v2564
    %3451 = vmatpush1.bf16.msra.mxu0 %v2563
    %3452 = vmatprep.subr.bf16.mxu0 %v2570
    %3453 = vmatpush1.bf16.msra.mxu0 %v2569
    %3454 = vmatprep.mubr.bf16.mxu0 %v140
    %3455 = vmatmul.mubr.bf16.gmra.mrb[0].mxu0 %v139
    %v3456 = vpop.f32.mrb[0].mxu0
    %v3457 = vadd.f32 %v3416, %v3456
    %v3458 = vpop.f32.mrb[0].mxu0
    %v3459 = vadd.f32 %v3418, %v3458
    %v3460 = vpop.f32.mrb[0].mxu0
    %v3461 = vpop.f32.mrb[0].mxu0
    %3462 = vdwg.mxu0
    %3463 = vmatprep.subr.bf16.mxu0 %v2098
    %3464 = vmatpush1.bf16.msra.mxu0 %v2097
    %3465 = vmatprep.subr.bf16.mxu0 %v2104
    %3466 = vmatpush1.bf16.msra.mxu0 %v2103
    %3467 = vmatprep.subr.bf16.mxu0 %v2110
    %3468 = vmatpush1.bf16.msra.mxu0 %v2109
    %3469 = vmatprep.subr.bf16.mxu0 %v2116
    %3470 = vmatpush1.bf16.msra.mxu0 %v2115
    %3471 = vmatprep.subr.bf16.mxu0 %v2122
    %3472 = vmatpush1.bf16.msra.mxu0 %v2121
    %3473 = vmatprep.subr.bf16.mxu0 %v2128
    %3474 = vmatpush1.bf16.msra.mxu0 %v2127
    %3475 = vmatprep.subr.bf16.mxu0 %v2134
    %3476 = vmatpush1.bf16.msra.mxu0 %v2133
    %3477 = vmatprep.subr.bf16.mxu0 %v2140
    %3478 = vmatpush1.bf16.msra.mxu0 %v2139
    %3479 = vmatprep.subr.bf16.mxu0 %v2146
    %3480 = vmatpush1.bf16.msra.mxu0 %v2145
    %3481 = vmatprep.subr.bf16.mxu0 %v2152
    %3482 = vmatpush1.bf16.msra.mxu0 %v2151
    %3483 = vmatprep.subr.bf16.mxu0 %v2158
    %3484 = vmatpush1.bf16.msra.mxu0 %v2157
    %3485 = vmatprep.subr.bf16.mxu0 %v2164
    %3486 = vmatpush1.bf16.msra.mxu0 %v2163
    %3487 = vmatprep.subr.bf16.mxu0 %v2170
    %3488 = vmatpush1.bf16.msra.mxu0 %v2169
    %3489 = vmatprep.subr.bf16.mxu0 %v2176
    %3490 = vmatpush1.bf16.msra.mxu0 %v2175
    %3491 = vmatprep.subr.bf16.mxu0 %v2182
    %3492 = vmatpush1.bf16.msra.mxu0 %v2181
    %3493 = vmatprep.subr.bf16.mxu0 %v2188
    %3494 = vmatpush1.bf16.msra.mxu0 %v2187
    %3495 = vmatprep.mubr.bf16.mxu0 %v132
    %3496 = vmatmul.mubr.bf16.gmra.mrb[0].mxu0 %v131
    %v3497 = vpop.f32.mrb[0].mxu0
    %v3498 = vadd.f32 %v642, %v3497
    %v3499 = vpop.f32.mrb[0].mxu0
    %v3500 = vadd.f32 %v646, %v3499
    %v3501 = vpop.f32.mrb[0].mxu0
    %v3502 = vpop.f32.mrb[0].mxu0
    %3503 = vdwg.mxu0
    %3504 = vmatprep.subr.bf16.mxu0 %v2194
    %3505 = vmatpush1.bf16.msra.mxu0 %v2193
    %3506 = vmatprep.subr.bf16.mxu0 %v2200
    %3507 = vmatpush1.bf16.msra.mxu0 %v2199
    %3508 = vmatprep.subr.bf16.mxu0 %v2206
    %3509 = vmatpush1.bf16.msra.mxu0 %v2205
    %3510 = vmatprep.subr.bf16.mxu0 %v2212
    %3511 = vmatpush1.bf16.msra.mxu0 %v2211
    %3512 = vmatprep.subr.bf16.mxu0 %v2218
    %3513 = vmatpush1.bf16.msra.mxu0 %v2217
    %3514 = vmatprep.subr.bf16.mxu0 %v2224
    %3515 = vmatpush1.bf16.msra.mxu0 %v2223
    %3516 = vmatprep.subr.bf16.mxu0 %v2230
    %3517 = vmatpush1.bf16.msra.mxu0 %v2229
    %3518 = vmatprep.subr.bf16.mxu0 %v2236
    %3519 = vmatpush1.bf16.msra.mxu0 %v2235
    %3520 = vmatprep.subr.bf16.mxu0 %v2242
    %3521 = vmatpush1.bf16.msra.mxu0 %v2241
    %3522 = vmatprep.subr.bf16.mxu0 %v2248
    %3523 = vmatpush1.bf16.msra.mxu0 %v2247
    %3524 = vmatprep.subr.bf16.mxu0 %v2254
    %3525 = vmatpush1.bf16.msra.mxu0 %v2253
    %3526 = vmatprep.subr.bf16.mxu0 %v2260
    %3527 = vmatpush1.bf16.msra.mxu0 %v2259
    %3528 = vmatprep.subr.bf16.mxu0 %v2266
    %3529 = vmatpush1.bf16.msra.mxu0 %v2265
    %3530 = vmatprep.subr.bf16.mxu0 %v2272
    %3531 = vmatpush1.bf16.msra.mxu0 %v2271
    %3532 = vmatprep.subr.bf16.mxu0 %v2278
    %3533 = vmatpush1.bf16.msra.mxu0 %v2277
    %3534 = vmatprep.subr.bf16.mxu0 %v2284
    %3535 = vmatpush1.bf16.msra.mxu0 %v2283
    %3536 = vmatprep.mubr.bf16.mxu0 %v134
    %3537 = vmatmul.mubr.bf16.gmra.mrb[0].mxu0 %v133
    %v3538 = vpop.f32.mrb[0].mxu0
    %v3539 = vadd.f32 %v3498, %v3538
    %v3540 = vpop.f32.mrb[0].mxu0
    %v3541 = vadd.f32 %v3500, %v3540
    %v3542 = vpop.f32.mrb[0].mxu0
    %v3543 = vpop.f32.mrb[0].mxu0
    %3544 = vdwg.mxu0
    %3545 = vmatprep.subr.bf16.mxu0 %v2290
    %3546 = vmatpush1.bf16.msra.mxu0 %v2289
    %3547 = vmatprep.subr.bf16.mxu0 %v2296
    %3548 = vmatpush1.bf16.msra.mxu0 %v2295
    %3549 = vmatprep.subr.bf16.mxu0 %v2302
    %3550 = vmatpush1.bf16.msra.mxu0 %v2301
    %3551 = vmatprep.subr.bf16.mxu0 %v2308
    %3552 = vmatpush1.bf16.msra.mxu0 %v2307
    %3553 = vmatprep.subr.bf16.mxu0 %v2314
    %3554 = vmatpush1.bf16.msra.mxu0 %v2313
    %3555 = vmatprep.subr.bf16.mxu0 %v2320
    %3556 = vmatpush1.bf16.msra.mxu0 %v2319
    %3557 = vmatprep.subr.bf16.mxu0 %v2326
    %3558 = vmatpush1.bf16.msra.mxu0 %v2325
    %3559 = vmatprep.subr.bf16.mxu0 %v2332
    %3560 = vmatpush1.bf16.msra.mxu0 %v2331
    %3561 = vmatprep.subr.bf16.mxu0 %v2338
    %3562 = vmatpush1.bf16.msra.mxu0 %v2337
    %3563 = vmatprep.subr.bf16.mxu0 %v2344
    %3564 = vmatpush1.bf16.msra.mxu0 %v2343
    %3565 = vmatprep.subr.bf16.mxu0 %v2350
    %3566 = vmatpush1.bf16.msra.mxu0 %v2349
    %3567 = vmatprep.subr.bf16.mxu0 %v2356
    %3568 = vmatpush1.bf16.msra.mxu0 %v2355
    %3569 = vmatprep.subr.bf16.mxu0 %v2362
    %3570 = vmatpush1.bf16.msra.mxu0 %v2361
    %3571 = vmatprep.subr.bf16.mxu0 %v2368
    %3572 = vmatpush1.bf16.msra.mxu0 %v2367
    %3573 = vmatprep.subr.bf16.mxu0 %v2374
    %3574 = vmatpush1.bf16.msra.mxu0 %v2373
    %3575 = vmatprep.subr.bf16.mxu0 %v2380
    %3576 = vmatpush1.bf16.msra.mxu0 %v2379
    %3577 = vmatprep.mubr.bf16.mxu0 %v136
    %3578 = vmatmul.mubr.bf16.gmra.mrb[0].mxu0 %v135
    %v3579 = vpop.f32.mrb[0].mxu0
    %v3580 = vadd.f32 %v3539, %v3579
    %v3581 = vpop.f32.mrb[0].mxu0
    %v3582 = vadd.f32 %v3541, %v3581
    %v3583 = vpop.f32.mrb[0].mxu0
    %v3584 = vpop.f32.mrb[0].mxu0
    %3585 = vdwg.mxu0
    %3586 = vmatprep.subr.bf16.mxu0 %v2386
    %3587 = vmatpush1.bf16.msra.mxu0 %v2385
    %3588 = vmatprep.subr.bf16.mxu0 %v2392
    %3589 = vmatpush1.bf16.msra.mxu0 %v2391
    %3590 = vmatprep.subr.bf16.mxu0 %v2398
    %3591 = vmatpush1.bf16.msra.mxu0 %v2397
    %3592 = vmatprep.subr.bf16.mxu0 %v2404
    %3593 = vmatpush1.bf16.msra.mxu0 %v2403
    %3594 = vmatprep.subr.bf16.mxu0 %v2410
    %3595 = vmatpush1.bf16.msra.mxu0 %v2409
    %3596 = vmatprep.subr.bf16.mxu0 %v2416
    %3597 = vmatpush1.bf16.msra.mxu0 %v2415
    %3598 = vmatprep.subr.bf16.mxu0 %v2422
    %3599 = vmatpush1.bf16.msra.mxu0 %v2421
    %3600 = vmatprep.subr.bf16.mxu0 %v2428
    %3601 = vmatpush1.bf16.msra.mxu0 %v2427
    %3602 = vmatprep.subr.bf16.mxu0 %v2434
    %3603 = vmatpush1.bf16.msra.mxu0 %v2433
    %3604 = vmatprep.subr.bf16.mxu0 %v2440
    %3605 = vmatpush1.bf16.msra.mxu0 %v2439
    %3606 = vmatprep.subr.bf16.mxu0 %v2446
    %3607 = vmatpush1.bf16.msra.mxu0 %v2445
    %3608 = vmatprep.subr.bf16.mxu0 %v2452
    %3609 = vmatpush1.bf16.msra.mxu0 %v2451
    %3610 = vmatprep.subr.bf16.mxu0 %v2458
    %3611 = vmatpush1.bf16.msra.mxu0 %v2457
    %3612 = vmatprep.subr.bf16.mxu0 %v2464
    %3613 = vmatpush1.bf16.msra.mxu0 %v2463
    %3614 = vmatprep.subr.bf16.mxu0 %v2470
    %3615 = vmatpush1.bf16.msra.mxu0 %v2469
    %3616 = vmatprep.subr.bf16.mxu0 %v2476
    %3617 = vmatpush1.bf16.msra.mxu0 %v2475
    %3618 = vmatprep.mubr.bf16.mxu0 %v138
    %3619 = vmatmul.mubr.bf16.gmra.mrb[0].mxu0 %v137
    %v3620 = vpop.f32.mrb[0].mxu0
    %v3621 = vadd.f32 %v3580, %v3620
    %v3622 = vpop.f32.mrb[0].mxu0
    %v3623 = vadd.f32 %v3582, %v3622
    %v3624 = vpop.f32.mrb[0].mxu0
    %v3625 = vpop.f32.mrb[0].mxu0
    %3626 = vdwg.mxu0
    %3627 = vmatprep.subr.bf16.mxu0 %v2482
    %3628 = vmatpush1.bf16.msra.mxu0 %v2481
    %3629 = vmatprep.subr.bf16.mxu0 %v2488
    %3630 = vmatpush1.bf16.msra.mxu0 %v2487
    %3631 = vmatprep.subr.bf16.mxu0 %v2494
    %3632 = vmatpush1.bf16.msra.mxu0 %v2493
    %3633 = vmatprep.subr.bf16.mxu0 %v2500
    %3634 = vmatpush1.bf16.msra.mxu0 %v2499
    %3635 = vmatprep.subr.bf16.mxu0 %v2506
    %3636 = vmatpush1.bf16.msra.mxu0 %v2505
    %3637 = vmatprep.subr.bf16.mxu0 %v2512
    %3638 = vmatpush1.bf16.msra.mxu0 %v2511
    %3639 = vmatprep.subr.bf16.mxu0 %v2518
    %3640 = vmatpush1.bf16.msra.mxu0 %v2517
    %3641 = vmatprep.subr.bf16.mxu0 %v2524
    %3642 = vmatpush1.bf16.msra.mxu0 %v2523
    %3643 = vmatprep.subr.bf16.mxu0 %v2530
    %3644 = vmatpush1.bf16.msra.mxu0 %v2529
    %3645 = vmatprep.subr.bf16.mxu0 %v2536
    %3646 = vmatpush1.bf16.msra.mxu0 %v2535
    %3647 = vmatprep.subr.bf16.mxu0 %v2542
    %3648 = vmatpush1.bf16.msra.mxu0 %v2541
    %3649 = vmatprep.subr.bf16.mxu0 %v2548
    %3650 = vmatpush1.bf16.msra.mxu0 %v2547
    %3651 = vmatprep.subr.bf16.mxu0 %v2554
    %3652 = vmatpush1.bf16.msra.mxu0 %v2553
    %3653 = vmatprep.subr.bf16.mxu0 %v2560
    %3654 = vmatpush1.bf16.msra.mxu0 %v2559
    %3655 = vmatprep.subr.bf16.mxu0 %v2566
    %3656 = vmatpush1.bf16.msra.mxu0 %v2565
    %3657 = vmatprep.subr.bf16.mxu0 %v2572
    %3658 = vmatpush1.bf16.msra.mxu0 %v2571
    %3659 = vmatprep.mubr.bf16.mxu0 %v140
    %3660 = vmatmul.mubr.bf16.gmra.mrb[0].mxu0 %v139
    %v3661 = vpop.f32.mrb[0].mxu0
    %v3662 = vadd.f32 %v3621, %v3661
    %v3663 = vpop.f32.mrb[0].mxu0
    %v3664 = vadd.f32 %v3623, %v3663
    %v3665 = vpop.f32.mrb[0].mxu0
    %v3666 = vpop.f32.mrb[0].mxu0
    %3667 = vdwg.mxu0
    %v3674 = vcombine.low %v3252, %v3254
    %v3675 = vcombine.low %v3457, %v3459
    %v3677 = vunpack.c.l.s4 1983009808
    %v3678 = vunpack.c.0.s8 %v3677
    %v3679 = vlaneseq
    %v3680 = vshrl.u32 %v3679, 7
    %v3681 = vsub.s32 %v3678, %v3680
    %v3682 = vrot.slane %v3674, %v3681
    %v3684 = vunpack.c.l.s4 1983009808
    %v3685 = vunpack.c.0.s8 %v3684
    %v3686 = vlaneseq
    %v3687 = vshrl.u32 %v3686, 7
    %v3688 = vsub.s32 %v3685, %v3687
    %v3689 = vrot.slane %v3675, %v3688
    %v3690 = vcombine.low %v3682, %v3689
    %v3691 = vcombine.low %v3662, %v3664
    %v3693 = vunpack.c.l.s4 1983009808
    %v3694 = vunpack.c.0.s8 %v3693
    %v3695 = vlaneseq
    %v3696 = vshrl.u32 %v3695, 7
    %v3697 = vsub.s32 %v3694, %v3696
    %v3698 = vrot.slane %v3691, %v3697
    %3701 = vst [vmem:[#allocation8] sm:$0xff] %v3690
    %3702 = vst [vmem:[#allocation8 + $0x8] sm:$0xf] %v3698
    // Predicated region
    $region26: #{tpu_custom_call.1} parent=1 // pred_check
      _
    $region27: #{tpu_custom_call.1} parent=1 // pred_check_branch
      %3704 = sbr.rel (0) target = $region29
    $region28: #{tpu_custom_call.1} parent=1 // pred_region
      %s3706 = ssub.s32 192, 192
      %3707 = vsyncadd [#allocation4], %s3706
      %s3709 = sshll.u32 [#allocation8], 4
      %s3710 = int_to_ptr.vmem [resolvable:$true] %s3709
      %3712 = dma.vmem_to_hbm [thread:$0]  %s3710, 192, %s3, [#allocation4]
    $region29: #{tpu_custom_call.1} parent=1 // pred_fallthru
      _
    // Predicated region
    $region30: #{tpu_custom_call.1} parent=1 // pred_check
      _
    $region31: #{tpu_custom_call.1} parent=1 // pred_check_branch
      %3714 = sbr.rel (0) target = $region33
    $region32: #{tpu_custom_call.1} parent=1 // pred_region
      %3715 = dma.done [#allocation4], 192
    $region33: #{tpu_custom_call.1} parent=1 // pred_fallthru
      _
    %3716 = vsyncpa [#allocation3], 1
    %3717 = vsyncpa [#allocation6], 1
    %3718 = vsyncpa [#allocation4], 1

</llo_original>
